<compile_context>
chip_gen: v5e
topology: v5e:2x2
jax: 0.10.0
libtpu: 0.0.40
codegen_flags: <defaults>
</compile_context>

<pallas_src>
import math
import functools

import jax
import jax.numpy as jnp
from jax import lax
from jax.experimental import pallas as pl
from jax.experimental.pallas import tpu as pltpu


# ----------------------------------------------------------------------------
# Fused Pallas kernel: conv stack + proj + PE + all encoder layers, batch folded
# into rows, single invocation, everything VMEM-resident.
# ----------------------------------------------------------------------------
def _fused_audio_encoder_kernel(
        p1_ref, c1w_ref, c1s_ref, c1h_ref,
        c2w_ref, c2s_ref, c2h_ref,
        c3w_ref, c3s_ref, c3h_ref,
        pw_ref, peb_ref, mask_ref,
        wqkv_ref, bqkv_ref, wo_ref, bo_ref, g1_ref, be1_ref,
        w1_ref, b1_ref, w2_ref, b2_ref, g2_ref, be2_ref,
        out_ref, pad2_ref, pad3_ref,
        *, batch, n_layers, n_heads, t1, t2, t3, d_model):
    f32 = jnp.float32
    bf16 = jnp.bfloat16
    eps = 1e-5
    C = c1s_ref.shape[1]
    dk = d_model // n_heads

    # ---- Conv1d(k=16, s=8, p=4) + folded BN + ReLU (patches pre-extracted) ----
    y1 = jnp.dot(p1_ref[...], c1w_ref[...], preferred_element_type=f32)
    y1 = jnp.maximum(y1 * c1s_ref[...] + c1h_ref[...], 0.0)          # (B*T1, C)

    zrow = jnp.zeros((1, C), f32)

    def fill_pad(pad_ref, y, t_in):
        # Zero only the two boundary rows of each batch band, then write the interior.
        for b in range(batch):
            base = b * (t_in + 2)
            pad_ref[pl.ds(base, 1), :] = zrow
            pad_ref[pl.ds(base + t_in + 1, 1), :] = zrow
            pad_ref[pl.ds(base + 1, t_in), :] = y[b * t_in:(b + 1) * t_in, :]

    def conv_stride2(pad_ref, w_ref, s_ref, h_ref, t_in, t_out, relu):
        # k=4 / stride=2 / pad=1 conv: build (rows, 4C) patch rows from 4 strided taps
        # and do a single matmul with a 4C-deep (=128 at C=32) contraction.
        rows = []
        for b in range(batch):
            base = b * (t_in + 2)
            taps = [pad_ref[pl.ds(base + k, t_out, stride=2), :] for k in range(4)]
            rows.append(jnp.concatenate(taps, axis=-1))
        patches = jnp.concatenate(rows, axis=0).astype(bf16)          # (B*t_out, 4C)
        y = jnp.dot(patches, w_ref[...], preferred_element_type=f32)
        y = y * s_ref[...] + h_ref[...]
        return jnp.maximum(y, 0.0) if relu else y

    # ---- Conv1d(k=4, s=2, p=1) + folded BN + ReLU ----
    fill_pad(pad2_ref, y1, t1)
    y2 = conv_stride2(pad2_ref, c2w_ref, c2s_ref, c2h_ref, t1, t2, True)   # (B*T2, C)

    # ---- Conv1d(k=4, s=2, p=1) + folded BN (no ReLU) ----
    fill_pad(pad3_ref, y2, t2)
    feat = conv_stride2(pad3_ref, c3w_ref, c3s_ref, c3h_ref, t2, t3, False)  # (B*T3, C)

    # ---- input_proj (Linear) + positional encoding (proj bias folded into peb) ----
    z = jnp.dot(feat.astype(bf16), pw_ref[...], preferred_element_type=f32) + peb_ref[...]

    # Block-diagonal batch mask (0 same-batch / -1e9 cross-batch), hoisted out of the loop.
    mask = mask_ref[...]                                              # (N, N)

    # ---- Transformer encoder layers (weights stacked along leading L axis) ----
    for l in range(n_layers):
        zb = z.astype(bf16)
        # fused QKV projection: one matmul, 1/sqrt(dk) pre-folded into Q block
        qkv = jnp.dot(zb, wqkv_ref[l], preferred_element_type=f32) + bqkv_ref[l]   # (N, 3D)
        qkv_b = qkv.astype(bf16)
        qh = jnp.stack([qkv_b[:, h * dk:(h + 1) * dk]
                        for h in range(n_heads)], axis=0)             # (H, N, dk)
        kh = jnp.stack([qkv_b[:, d_model + h * dk:d_model + (h + 1) * dk]
                        for h in range(n_heads)], axis=0)
        vh = jnp.stack([qkv_b[:, 2 * d_model + h * dk:2 * d_model + (h + 1) * dk]
                        for h in range(n_heads)], axis=0)

        s = jnp.einsum('hnd,hmd->hnm', qh, kh,
                       preferred_element_type=f32) + mask             # (H, N, N)
        s = s - jnp.max(s, axis=-1, keepdims=True)
        p = jnp.exp(s)
        p = p * pl.reciprocal(jnp.sum(p, axis=-1, keepdims=True), approx=True)

        ctx = jnp.einsum('hnm,hmd->hnd', p.astype(bf16), vh,
                         preferred_element_type=f32)                  # (H, N, dk)
        oh = jnp.einsum('hnd,hdf->hnf', ctx.astype(bf16), wo_ref[l],
                        preferred_element_type=f32)                   # (H, N, D)
        attn = jnp.sum(oh, axis=0) + bo_ref[l]                        # (N, D)

        # residual + LayerNorm 1
        h1 = z + attn
        mu = jnp.mean(h1, axis=-1, keepdims=True)
        var = jnp.mean((h1 - mu) ** 2, axis=-1, keepdims=True)
        h1n = (h1 - mu) * lax.rsqrt(var + eps) * g1_ref[l] + be1_ref[l]

        # FeedForward: Linear -> ReLU -> Linear (hidden dim zero-padded to 128 lanes)
        f = jnp.dot(h1n.astype(bf16), w1_ref[l], preferred_element_type=f32) + b1_ref[l]
        f = jnp.maximum(f, 0.0)
        f = jnp.dot(f.astype(bf16), w2_ref[l], preferred_element_type=f32) + b2_ref[l]

        # residual + LayerNorm 2
        h2 = h1n + f
        mu2 = jnp.mean(h2, axis=-1, keepdims=True)
        var2 = jnp.mean((h2 - mu2) ** 2, axis=-1, keepdims=True)
        z = (h2 - mu2) * lax.rsqrt(var2 + eps) * g2_ref[l] + be2_ref[l]

    out_ref[...] = z                                                  # (B*T3, D)


# ----------------------------------------------------------------------------
# JAX glue: positional encoding, parameter construction, wrapper
# ----------------------------------------------------------------------------
def positional_encoding(seq_len, d_model):
    pos = jnp.arange(seq_len, dtype=jnp.float32)[:, None]
    div = jnp.exp(jnp.arange(0, d_model, 2, dtype=jnp.float32)
                  * (-math.log(10000.0) / d_model))
    pe = jnp.zeros((seq_len, d_model), dtype=jnp.float32)
    pe = pe.at[:, 0::2].set(jnp.sin(pos * div))
    pe = pe.at[:, 1::2].set(jnp.cos(pos * div))
    return pe


def _uniform(key, shape, scale):
    return jax.random.uniform(key, shape, jnp.float32, -scale, scale)


def init_params(key, input_dim, d_model, n_layers, n_heads, d_ff):
    keys = iter(jax.random.split(key, 1024))
    nxt = lambda: next(keys)
    eps = 1e-5
    C = input_dim
    dk = d_model // n_heads
    inv_sqrt_dk = 1.0 / math.sqrt(dk)
    dffp = ((d_ff + 127) // 128) * 128          # FFN hidden padded to lane-dense width
    p = {}

    def conv_block(in_ch, ksize, name):
        bound = 1.0 / math.sqrt(in_ch * ksize)
        w = _uniform(nxt(), (C, in_ch, ksize), bound)      # PyTorch layout [out, in, k]
        b = _uniform(nxt(), (C,), bound)
        gamma = 1.0 + 0.1 * jax.random.normal(nxt(), (C,), jnp.float32)
        beta = 0.1 * jax.random.normal(nxt(), (C,), jnp.float32)
        # BatchNorm1d eval with running_mean=0 / running_var=1, fused with conv bias.
        scale = gamma / jnp.sqrt(1.0 + eps)
        shift = beta + b * scale
        if in_ch == 1:
            p[name + "_w"] = jnp.transpose(w.reshape(C, ksize))                      # [K, C]
        else:
            p[name + "_w"] = jnp.transpose(w, (2, 1, 0)).reshape(ksize * in_ch, C)   # [K*Cin, C]
        p[name + "_scale"] = scale.reshape(1, C)
        p[name + "_shift"] = shift.reshape(1, C)

    conv_block(1, 16, "conv1")
    conv_block(C, 4, "conv2")
    conv_block(C, 4, "conv3")

    p["proj_w"] = _uniform(nxt(), (C, d_model), 1.0 / math.sqrt(C))
    p["proj_b"] = _uniform(nxt(), (1, d_model), 1.0 / math.sqrt(C))

    bound_d = 1.0 / math.sqrt(d_model)
    bound_f = 1.0 / math.sqrt(d_ff)
    names = ["wqkv", "bqkv", "wo", "bo", "g1", "be1",
             "w1", "b1", "w2", "b2", "g2", "be2"]
    lw = {n: [] for n in names}
    for _ in range(n_layers):
        wq = _uniform(nxt(), (d_model, d_model), bound_d)
        wk = _uniform(nxt(), (d_model, d_model), bound_d)
        wv = _uniform(nxt(), (d_model, d_model), bound_d)
        wo = _uniform(nxt(), (d_model, d_model), bound_d)
        bq = _uniform(nxt(), (d_model,), bound_d)
        bk = _uniform(nxt(), (d_model,), bound_d)
        bv = _uniform(nxt(), (d_model,), bound_d)
        bo = _uniform(nxt(), (d_model,), bound_d)
        # fused QKV weight/bias; 1/sqrt(dk) folded into the Q columns (torch head order
        # == contiguous dk-column blocks, so the kernel's lane slices match torch concat).
        lw["wqkv"].append(jnp.concatenate([wq * inv_sqrt_dk, wk, wv], axis=1))   # [D, 3D]
        lw["bqkv"].append(jnp.concatenate([bq * inv_sqrt_dk, bk, bv]).reshape(1, 3 * d_model))
        lw["wo"].append(wo.reshape(n_heads, dk, d_model))                        # [H, dk, D]
        lw["bo"].append(bo.reshape(1, d_model))
        lw["g1"].append(1.0 + 0.05 * jax.random.normal(nxt(), (1, d_model), jnp.float32))
        lw["be1"].append(0.05 * jax.random.normal(nxt(), (1, d_model), jnp.float32))
        w1 = _uniform(nxt(), (d_model, d_ff), bound_d)
        b1 = _uniform(nxt(), (1, d_ff), bound_d)
        w2 = _uniform(nxt(), (d_ff, d_model), bound_f)
        b2 = _uniform(nxt(), (1, d_model), bound_f)
        # zero-pad FFN hidden dim: extra cols of w1 / entries of b1 are 0 -> ReLU gives 0,
        # extra rows of w2 are 0 -> exact same math, lane-unmasked stores.
        lw["w1"].append(jnp.pad(w1, ((0, 0), (0, dffp - d_ff))))
        lw["b1"].append(jnp.pad(b1, ((0, 0), (0, dffp - d_ff))))
        lw["w2"].append(jnp.pad(w2, ((0, dffp - d_ff), (0, 0))))
        lw["b2"].append(b2)
        lw["g2"].append(1.0 + 0.05 * jax.random.normal(nxt(), (1, d_model), jnp.float32))
        lw["be2"].append(0.05 * jax.random.normal(nxt(), (1, d_model), jnp.float32))
    for n in names:
        p[n] = jnp.stack(lw[n], axis=0)                               # leading L axis
    return p


def audio_encoder_forward(x, params):
    B, _, T = x.shape
    C = params["conv1_scale"].shape[1]
    D = params["proj_w"].shape[1]
    n_layers = params["wqkv"].shape[0]
    n_heads = params["wo"].shape[1]
    bf16 = jnp.bfloat16

    # Conv1 patch extraction without gather (k=16 == 2*stride): pad + reshape + concat.
    k1, s1, pd1 = 16, 8, 4
    T1 = (T + 2 * pd1 - k1) // s1 + 1
    xp = jnp.pad(x[:, 0, :], ((0, 0), (pd1, pd1)))                    # [B, T+8]
    blocks = xp.reshape(B, (T + 2 * pd1) // s1, s1)                   # [B, T1+1, 8]
    patches1 = jnp.concatenate([blocks[:, :T1, :], blocks[:, 1:T1 + 1, :]], axis=-1)
    patches1 = patches1.reshape(B * T1, k1).astype(bf16)              # [B*T1, 16]

    T2 = (T1 + 2 - 4) // 2 + 1
    T3 = (T2 + 2 - 4) // 2 + 1
    N = B * T3

    # Positional encoding tiled over row-stacked batch, with the proj bias folded in.
    peb = jnp.tile(positional_encoding(T3, D), (B, 1)) + params["proj_b"]   # [N, D]

    # Block-diagonal mask so row-stacked batch elements never attend to each other.
    rb = jnp.arange(N) // T3
    mask = jnp.where(rb[:, None] == rb[None, :], 0.0, -1e9).astype(jnp.float32)

    c = lambda a: a.astype(bf16)     # matmul operands in bf16, f32 accumulate
    inputs = [
        patches1,
        c(params["conv1_w"]), params["conv1_scale"], params["conv1_shift"],
        c(params["conv2_w"]), params["conv2_scale"], params["conv2_shift"],
        c(params["conv3_w"]), params["conv3_scale"], params["conv3_shift"],
        c(params["proj_w"]), peb, mask,
        c(params["wqkv"]), params["bqkv"], c(params["wo"]), params["bo"],
        params["g1"], params["be1"],
        c(params["w1"]), params["b1"], c(params["w2"]), params["b2"],
        params["g2"], params["be2"],
    ]

    kernel = functools.partial(
        _fused_audio_encoder_kernel,
        batch=B, n_layers=n_layers, n_heads=n_heads,
        t1=T1, t2=T2, t3=T3, d_model=D)

    out = pl.pallas_call(
        kernel,
        out_shape=jax.ShapeDtypeStruct((N, D), jnp.float32),
        scratch_shapes=[pltpu.VMEM((B * (T1 + 2), C), jnp.float32),
                        pltpu.VMEM((B * (T2 + 2), C), jnp.float32)],
    )(*inputs)
    return out.reshape(B, T3, D)


# ----------------------------------------------------------------------------
# Main
# ----------------------------------------------------------------------------
if __name__ == "__main__":
    # Small config: input_dim=32 (feature-extractor hidden), d_model=32,
    # n_layers=2, n_heads=4, d_ff=64, dropout=0.1 (identity in eval).
    input_dim, d_model, n_layers, n_heads, d_ff = 32, 32, 2, 4, 64
    B, Cin, T = 2, 1, 1024    # conv stack: 1024 -> 128 -> 64 -> 32 time steps

    key = jax.random.PRNGKey(0)
    k_x, k_p = jax.random.split(key)
    x = jax.random.normal(k_x, (B, Cin, T), dtype=jnp.float32)
    params = init_params(k_p, input_dim, d_model, n_layers, n_heads, d_ff)

    fwd = jax.jit(audio_encoder_forward)
    out = jax.block_until_ready(fwd(x, params))
    assert out.shape == (B, 32, d_model), out.shape
    assert bool(jnp.all(jnp.isfinite(out)))
    print("KERNEL_OK")
</pallas_src>

<mosaic_0001>
module attributes {stable_mosaic.version = 11 : i64} {
  func.func @_fused_audio_encoder_kernel(%arg0: memref<256x16xbf16, #tpu.memory_space<vmem>>, %arg1: memref<16x32xbf16, #tpu.memory_space<vmem>>, %arg2: memref<1x32xf32, #tpu.memory_space<vmem>>, %arg3: memref<1x32xf32, #tpu.memory_space<vmem>>, %arg4: memref<128x32xbf16, #tpu.memory_space<vmem>>, %arg5: memref<1x32xf32, #tpu.memory_space<vmem>>, %arg6: memref<1x32xf32, #tpu.memory_space<vmem>>, %arg7: memref<128x32xbf16, #tpu.memory_space<vmem>>, %arg8: memref<1x32xf32, #tpu.memory_space<vmem>>, %arg9: memref<1x32xf32, #tpu.memory_space<vmem>>, %arg10: memref<32x32xbf16, #tpu.memory_space<vmem>>, %arg11: memref<64x32xf32, #tpu.memory_space<vmem>>, %arg12: memref<64x64xf32, #tpu.memory_space<vmem>>, %arg13: memref<2x32x96xbf16, #tpu.memory_space<vmem>>, %arg14: memref<2x1x96xf32, #tpu.memory_space<vmem>>, %arg15: memref<2x4x8x32xbf16, #tpu.memory_space<vmem>>, %arg16: memref<2x1x32xf32, #tpu.memory_space<vmem>>, %arg17: memref<2x1x32xf32, #tpu.memory_space<vmem>>, %arg18: memref<2x1x32xf32, #tpu.memory_space<vmem>>, %arg19: memref<2x32x128xbf16, #tpu.memory_space<vmem>>, %arg20: memref<2x1x128xf32, #tpu.memory_space<vmem>>, %arg21: memref<2x128x32xbf16, #tpu.memory_space<vmem>>, %arg22: memref<2x1x32xf32, #tpu.memory_space<vmem>>, %arg23: memref<2x1x32xf32, #tpu.memory_space<vmem>>, %arg24: memref<2x1x32xf32, #tpu.memory_space<vmem>>, %arg25: memref<64x32xf32, #tpu.memory_space<vmem>>, %arg26: memref<260x32xf32, #tpu.memory_space<vmem>>, %arg27: memref<132x32xf32, #tpu.memory_space<vmem>>) attributes {dimension_semantics = [], scalar_prefetch = 0 : i64, scratch_operands = 2 : i64, tpu.core_type = #tpu.core_type<tc>} {
    %c0 = arith.constant 0 : index
    %c0_0 = arith.constant 0 : index
    %0 = vector.load %arg0[%c0, %c0_0] : memref<256x16xbf16, #tpu.memory_space<vmem>>, vector<256x16xbf16>
    %c0_1 = arith.constant 0 : index
    %c0_2 = arith.constant 0 : index
    %1 = vector.load %arg1[%c0_1, %c0_2] : memref<16x32xbf16, #tpu.memory_space<vmem>>, vector<16x32xbf16>
    %cst = arith.constant dense<0.000000e+00> : vector<256x32xf32>
    %2 = tpu.matmul %0, %1, %cst {dimension_numbers = #tpu.dot_dimension_numbers<[1], [0], [0], [1], [0, 0, 1, 1], [], []>} : vector<256x16xbf16>, vector<16x32xbf16>, vector<256x32xf32> -> vector<256x32xf32>
    %c0_3 = arith.constant 0 : index
    %c0_4 = arith.constant 0 : index
    %3 = vector.load %arg2[%c0_3, %c0_4] : memref<1x32xf32, #tpu.memory_space<vmem>>, vector<1x32xf32>
    %4 = vector.broadcast %3 : vector<1x32xf32> to vector<256x32xf32>
    %5 = arith.mulf %2, %4 : vector<256x32xf32>
    %c0_5 = arith.constant 0 : index
    %c0_6 = arith.constant 0 : index
    %6 = vector.load %arg3[%c0_5, %c0_6] : memref<1x32xf32, #tpu.memory_space<vmem>>, vector<1x32xf32>
    %7 = vector.broadcast %6 : vector<1x32xf32> to vector<256x32xf32>
    %8 = arith.addf %5, %7 : vector<256x32xf32>
    %cst_7 = arith.constant 0.000000e+00 : f32
    %9 = vector.broadcast %cst_7 : f32 to vector<256x32xf32>
    %10 = arith.maximumf %8, %9 : vector<256x32xf32>
    %cst_8 = arith.constant 0.000000e+00 : f32
    %11 = vector.broadcast %cst_8 : f32 to vector<1x32xf32>
    %c0_9 = arith.constant 0 : index
    %c0_10 = arith.constant 0 : index
    %12 = vector.load %arg26[%c0_9, %c0_10] : memref<260x32xf32, #tpu.memory_space<vmem>>, vector<1x32xf32>
    tpu.vector_store %arg26[%c0_9, %c0_10], %11 {strides = array<i32>} : memref<260x32xf32, #tpu.memory_space<vmem>>, vector<1x32xf32>,
    %c129 = arith.constant 129 : index
    %c0_11 = arith.constant 0 : index
    %13 = vector.load %arg26[%c129, %c0_11] : memref<260x32xf32, #tpu.memory_space<vmem>>, vector<1x32xf32>
    tpu.vector_store %arg26[%c129, %c0_11], %11 {strides = array<i32>} : memref<260x32xf32, #tpu.memory_space<vmem>>, vector<1x32xf32>,
    %14 = vector.extract_strided_slice %10 {offsets = [0, 0], sizes = [128, 32], strides = [1, 1]} : vector<256x32xf32> to vector<128x32xf32>
    %c1 = arith.constant 1 : index
    %c0_12 = arith.constant 0 : index
    %15 = vector.load %arg26[%c1, %c0_12] : memref<260x32xf32, #tpu.memory_space<vmem>>, vector<128x32xf32>
    tpu.vector_store %arg26[%c1, %c0_12], %14 {strides = array<i32>} : memref<260x32xf32, #tpu.memory_space<vmem>>, vector<128x32xf32>,
    %c130 = arith.constant 130 : index
    %c0_13 = arith.constant 0 : index
    %16 = vector.load %arg26[%c130, %c0_13] : memref<260x32xf32, #tpu.memory_space<vmem>>, vector<1x32xf32>
    tpu.vector_store %arg26[%c130, %c0_13], %11 {strides = array<i32>} : memref<260x32xf32, #tpu.memory_space<vmem>>, vector<1x32xf32>,
    %c259 = arith.constant 259 : index
    %c0_14 = arith.constant 0 : index
    %17 = vector.load %arg26[%c259, %c0_14] : memref<260x32xf32, #tpu.memory_space<vmem>>, vector<1x32xf32>
    tpu.vector_store %arg26[%c259, %c0_14], %11 {strides = array<i32>} : memref<260x32xf32, #tpu.memory_space<vmem>>, vector<1x32xf32>,
    %18 = vector.extract_strided_slice %10 {offsets = [128, 0], sizes = [128, 32], strides = [1, 1]} : vector<256x32xf32> to vector<128x32xf32>
    %c131 = arith.constant 131 : index
    %c0_15 = arith.constant 0 : index
    %19 = vector.load %arg26[%c131, %c0_15] : memref<260x32xf32, #tpu.memory_space<vmem>>, vector<128x32xf32>
    tpu.vector_store %arg26[%c131, %c0_15], %18 {strides = array<i32>} : memref<260x32xf32, #tpu.memory_space<vmem>>, vector<128x32xf32>,
    %c0_16 = arith.constant 0 : index
    %c0_17 = arith.constant 0 : index
    %20 = tpu.strided_load %arg26[%c0_16, %c0_17] {strides = array<i32: 2, 1>} : memref<260x32xf32, #tpu.memory_space<vmem>>, vector<64x32xf32>
    %c1_18 = arith.constant 1 : index
    %c0_19 = arith.constant 0 : index
    %21 = tpu.strided_load %arg26[%c1_18, %c0_19] {strides = array<i32: 2, 1>} : memref<260x32xf32, #tpu.memory_space<vmem>>, vector<64x32xf32>
    %c2 = arith.constant 2 : index
    %c0_20 = arith.constant 0 : index
    %22 = tpu.strided_load %arg26[%c2, %c0_20] {strides = array<i32: 2, 1>} : memref<260x32xf32, #tpu.memory_space<vmem>>, vector<64x32xf32>
    %c3 = arith.constant 3 : index
    %c0_21 = arith.constant 0 : index
    %23 = tpu.strided_load %arg26[%c3, %c0_21] {strides = array<i32: 2, 1>} : memref<260x32xf32, #tpu.memory_space<vmem>>, vector<64x32xf32>
    %24 = tpu.concatenate %20, %21, %22, %23 in 1 : vector<64x32xf32>, vector<64x32xf32>, vector<64x32xf32>, vector<64x32xf32> -> vector<64x128xf32>
    %c130_22 = arith.constant 130 : index
    %c0_23 = arith.constant 0 : index
    %25 = tpu.strided_load %arg26[%c130_22, %c0_23] {strides = array<i32: 2, 1>} : memref<260x32xf32, #tpu.memory_space<vmem>>, vector<64x32xf32>
    %c131_24 = arith.constant 131 : index
    %c0_25 = arith.constant 0 : index
    %26 = tpu.strided_load %arg26[%c131_24, %c0_25] {strides = array<i32: 2, 1>} : memref<260x32xf32, #tpu.memory_space<vmem>>, vector<64x32xf32>
    %c132 = arith.constant 132 : index
    %c0_26 = arith.constant 0 : index
    %27 = tpu.strided_load %arg26[%c132, %c0_26] {strides = array<i32: 2, 1>} : memref<260x32xf32, #tpu.memory_space<vmem>>, vector<64x32xf32>
    %c133 = arith.constant 133 : index
    %c0_27 = arith.constant 0 : index
    %28 = tpu.strided_load %arg26[%c133, %c0_27] {strides = array<i32: 2, 1>} : memref<260x32xf32, #tpu.memory_space<vmem>>, vector<64x32xf32>
    %29 = tpu.concatenate %25, %26, %27, %28 in 1 : vector<64x32xf32>, vector<64x32xf32>, vector<64x32xf32>, vector<64x32xf32> -> vector<64x128xf32>
    %30 = tpu.concatenate %24, %29 in 0 : vector<64x128xf32>, vector<64x128xf32> -> vector<128x128xf32>
    %31 = arith.truncf %30 : vector<128x128xf32> to vector<128x128xbf16>
    %c0_28 = arith.constant 0 : index
    %c0_29 = arith.constant 0 : index
    %32 = vector.load %arg4[%c0_28, %c0_29] : memref<128x32xbf16, #tpu.memory_space<vmem>>, vector<128x32xbf16>
    %cst_30 = arith.constant dense<0.000000e+00> : vector<128x32xf32>
    %33 = tpu.matmul %31, %32, %cst_30 {dimension_numbers = #tpu.dot_dimension_numbers<[1], [0], [0], [1], [0, 0, 1, 1], [], []>} : vector<128x128xbf16>, vector<128x32xbf16>, vector<128x32xf32> -> vector<128x32xf32>
    %c0_31 = arith.constant 0 : index
    %c0_32 = arith.constant 0 : index
    %34 = vector.load %arg5[%c0_31, %c0_32] : memref<1x32xf32, #tpu.memory_space<vmem>>, vector<1x32xf32>
    %35 = vector.broadcast %34 : vector<1x32xf32> to vector<128x32xf32>
    %36 = arith.mulf %33, %35 : vector<128x32xf32>
    %c0_33 = arith.constant 0 : index
    %c0_34 = arith.constant 0 : index
    %37 = vector.load %arg6[%c0_33, %c0_34] : memref<1x32xf32, #tpu.memory_space<vmem>>, vector<1x32xf32>
    %38 = vector.broadcast %37 : vector<1x32xf32> to vector<128x32xf32>
    %39 = arith.addf %36, %38 : vector<128x32xf32>
    %cst_35 = arith.constant 0.000000e+00 : f32
    %40 = vector.broadcast %cst_35 : f32 to vector<128x32xf32>
    %41 = arith.maximumf %39, %40 : vector<128x32xf32>
    %c0_36 = arith.constant 0 : index
    %c0_37 = arith.constant 0 : index
    %42 = vector.load %arg27[%c0_36, %c0_37] : memref<132x32xf32, #tpu.memory_space<vmem>>, vector<1x32xf32>
    tpu.vector_store %arg27[%c0_36, %c0_37], %11 {strides = array<i32>} : memref<132x32xf32, #tpu.memory_space<vmem>>, vector<1x32xf32>,
    %c65 = arith.constant 65 : index
    %c0_38 = arith.constant 0 : index
    %43 = vector.load %arg27[%c65, %c0_38] : memref<132x32xf32, #tpu.memory_space<vmem>>, vector<1x32xf32>
    tpu.vector_store %arg27[%c65, %c0_38], %11 {strides = array<i32>} : memref<132x32xf32, #tpu.memory_space<vmem>>, vector<1x32xf32>,
    %44 = vector.extract_strided_slice %41 {offsets = [0, 0], sizes = [64, 32], strides = [1, 1]} : vector<128x32xf32> to vector<64x32xf32>
    %c1_39 = arith.constant 1 : index
    %c0_40 = arith.constant 0 : index
    %45 = vector.load %arg27[%c1_39, %c0_40] : memref<132x32xf32, #tpu.memory_space<vmem>>, vector<64x32xf32>
    tpu.vector_store %arg27[%c1_39, %c0_40], %44 {strides = array<i32>} : memref<132x32xf32, #tpu.memory_space<vmem>>, vector<64x32xf32>,
    %c66 = arith.constant 66 : index
    %c0_41 = arith.constant 0 : index
    %46 = vector.load %arg27[%c66, %c0_41] : memref<132x32xf32, #tpu.memory_space<vmem>>, vector<1x32xf32>
    tpu.vector_store %arg27[%c66, %c0_41], %11 {strides = array<i32>} : memref<132x32xf32, #tpu.memory_space<vmem>>, vector<1x32xf32>,
    %c131_42 = arith.constant 131 : index
    %c0_43 = arith.constant 0 : index
    %47 = vector.load %arg27[%c131_42, %c0_43] : memref<132x32xf32, #tpu.memory_space<vmem>>, vector<1x32xf32>
    tpu.vector_store %arg27[%c131_42, %c0_43], %11 {strides = array<i32>} : memref<132x32xf32, #tpu.memory_space<vmem>>, vector<1x32xf32>,
    %48 = vector.extract_strided_slice %41 {offsets = [64, 0], sizes = [64, 32], strides = [1, 1]} : vector<128x32xf32> to vector<64x32xf32>
    %c67 = arith.constant 67 : index
    %c0_44 = arith.constant 0 : index
    %49 = vector.load %arg27[%c67, %c0_44] : memref<132x32xf32, #tpu.memory_space<vmem>>, vector<64x32xf32>
    tpu.vector_store %arg27[%c67, %c0_44], %48 {strides = array<i32>} : memref<132x32xf32, #tpu.memory_space<vmem>>, vector<64x32xf32>,
    %c0_45 = arith.constant 0 : index
    %c0_46 = arith.constant 0 : index
    %50 = tpu.strided_load %arg27[%c0_45, %c0_46] {strides = array<i32: 2, 1>} : memref<132x32xf32, #tpu.memory_space<vmem>>, vector<32x32xf32>
    %c1_47 = arith.constant 1 : index
    %c0_48 = arith.constant 0 : index
    %51 = tpu.strided_load %arg27[%c1_47, %c0_48] {strides = array<i32: 2, 1>} : memref<132x32xf32, #tpu.memory_space<vmem>>, vector<32x32xf32>
    %c2_49 = arith.constant 2 : index
    %c0_50 = arith.constant 0 : index
    %52 = tpu.strided_load %arg27[%c2_49, %c0_50] {strides = array<i32: 2, 1>} : memref<132x32xf32, #tpu.memory_space<vmem>>, vector<32x32xf32>
    %c3_51 = arith.constant 3 : index
    %c0_52 = arith.constant 0 : index
    %53 = tpu.strided_load %arg27[%c3_51, %c0_52] {strides = array<i32: 2, 1>} : memref<132x32xf32, #tpu.memory_space<vmem>>, vector<32x32xf32>
    %54 = tpu.concatenate %50, %51, %52, %53 in 1 : vector<32x32xf32>, vector<32x32xf32>, vector<32x32xf32>, vector<32x32xf32> -> vector<32x128xf32>
    %c66_53 = arith.constant 66 : index
    %c0_54 = arith.constant 0 : index
    %55 = tpu.strided_load %arg27[%c66_53, %c0_54] {strides = array<i32: 2, 1>} : memref<132x32xf32, #tpu.memory_space<vmem>>, vector<32x32xf32>
    %c67_55 = arith.constant 67 : index
    %c0_56 = arith.constant 0 : index
    %56 = tpu.strided_load %arg27[%c67_55, %c0_56] {strides = array<i32: 2, 1>} : memref<132x32xf32, #tpu.memory_space<vmem>>, vector<32x32xf32>
    %c68 = arith.constant 68 : index
    %c0_57 = arith.constant 0 : index
    %57 = tpu.strided_load %arg27[%c68, %c0_57] {strides = array<i32: 2, 1>} : memref<132x32xf32, #tpu.memory_space<vmem>>, vector<32x32xf32>
    %c69 = arith.constant 69 : index
    %c0_58 = arith.constant 0 : index
    %58 = tpu.strided_load %arg27[%c69, %c0_58] {strides = array<i32: 2, 1>} : memref<132x32xf32, #tpu.memory_space<vmem>>, vector<32x32xf32>
    %59 = tpu.concatenate %55, %56, %57, %58 in 1 : vector<32x32xf32>, vector<32x32xf32>, vector<32x32xf32>, vector<32x32xf32> -> vector<32x128xf32>
    %60 = tpu.concatenate %54, %59 in 0 : vector<32x128xf32>, vector<32x128xf32> -> vector<64x128xf32>
    %61 = arith.truncf %60 : vector<64x128xf32> to vector<64x128xbf16>
    %c0_59 = arith.constant 0 : index
    %c0_60 = arith.constant 0 : index
    %62 = vector.load %arg7[%c0_59, %c0_60] : memref<128x32xbf16, #tpu.memory_space<vmem>>, vector<128x32xbf16>
    %cst_61 = arith.constant dense<0.000000e+00> : vector<64x32xf32>
    %63 = tpu.matmul %61, %62, %cst_61 {dimension_numbers = #tpu.dot_dimension_numbers<[1], [0], [0], [1], [0, 0, 1, 1], [], []>} : vector<64x128xbf16>, vector<128x32xbf16>, vector<64x32xf32> -> vector<64x32xf32>
    %c0_62 = arith.constant 0 : index
    %c0_63 = arith.constant 0 : index
    %64 = vector.load %arg8[%c0_62, %c0_63] : memref<1x32xf32, #tpu.memory_space<vmem>>, vector<1x32xf32>
    %65 = vector.broadcast %64 : vector<1x32xf32> to vector<64x32xf32>
    %66 = arith.mulf %63, %65 : vector<64x32xf32>
    %c0_64 = arith.constant 0 : index
    %c0_65 = arith.constant 0 : index
    %67 = vector.load %arg9[%c0_64, %c0_65] : memref<1x32xf32, #tpu.memory_space<vmem>>, vector<1x32xf32>
    %68 = vector.broadcast %67 : vector<1x32xf32> to vector<64x32xf32>
    %69 = arith.addf %66, %68 : vector<64x32xf32>
    %70 = arith.truncf %69 : vector<64x32xf32> to vector<64x32xbf16>
    %c0_66 = arith.constant 0 : index
    %c0_67 = arith.constant 0 : index
    %71 = vector.load %arg10[%c0_66, %c0_67] : memref<32x32xbf16, #tpu.memory_space<vmem>>, vector<32x32xbf16>
    %cst_68 = arith.constant dense<0.000000e+00> : vector<64x32xf32>
    %72 = tpu.matmul %70, %71, %cst_68 {dimension_numbers = #tpu.dot_dimension_numbers<[1], [0], [0], [1], [0, 0, 1, 1], [], []>} : vector<64x32xbf16>, vector<32x32xbf16>, vector<64x32xf32> -> vector<64x32xf32>
    %c0_69 = arith.constant 0 : index
    %c0_70 = arith.constant 0 : index
    %73 = vector.load %arg11[%c0_69, %c0_70] : memref<64x32xf32, #tpu.memory_space<vmem>>, vector<64x32xf32>
    %74 = arith.addf %72, %73 : vector<64x32xf32>
    %c0_71 = arith.constant 0 : index
    %c0_72 = arith.constant 0 : index
    %75 = vector.load %arg12[%c0_71, %c0_72] : memref<64x64xf32, #tpu.memory_space<vmem>>, vector<64x64xf32>
    %76 = arith.truncf %74 : vector<64x32xf32> to vector<64x32xbf16>
    %c0_73 = arith.constant 0 : index
    %c0_74 = arith.constant 0 : index
    %c0_75 = arith.constant 0 : index
    %77 = vector.load %arg13[%c0_73, %c0_74, %c0_75] : memref<2x32x96xbf16, #tpu.memory_space<vmem>>, vector<1x32x96xbf16>
    %78 = vector.shape_cast %77 : vector<1x32x96xbf16> to vector<32x96xbf16>
    %cst_76 = arith.constant dense<0.000000e+00> : vector<64x96xf32>
    %79 = tpu.matmul %76, %78, %cst_76 {dimension_numbers = #tpu.dot_dimension_numbers<[1], [0], [0], [1], [0, 0, 1, 1], [], []>} : vector<64x32xbf16>, vector<32x96xbf16>, vector<64x96xf32> -> vector<64x96xf32>
    %c0_77 = arith.constant 0 : index
    %c0_78 = arith.constant 0 : index
    %c0_79 = arith.constant 0 : index
    %80 = vector.load %arg14[%c0_77, %c0_78, %c0_79] : memref<2x1x96xf32, #tpu.memory_space<vmem>>, vector<1x1x96xf32>
    %81 = vector.shape_cast %80 : vector<1x1x96xf32> to vector<1x96xf32>
    %82 = vector.broadcast %81 : vector<1x96xf32> to vector<64x96xf32>
    %83 = arith.addf %79, %82 : vector<64x96xf32>
    %84 = arith.truncf %83 : vector<64x96xf32> to vector<64x96xbf16>
    %85 = vector.extract_strided_slice %84 {offsets = [0, 0], sizes = [64, 8], strides = [1, 1]} : vector<64x96xbf16> to vector<64x8xbf16>
    %86 = vector.extract_strided_slice %84 {offsets = [0, 8], sizes = [64, 8], strides = [1, 1]} : vector<64x96xbf16> to vector<64x8xbf16>
    %87 = vector.extract_strided_slice %84 {offsets = [0, 16], sizes = [64, 8], strides = [1, 1]} : vector<64x96xbf16> to vector<64x8xbf16>
    %88 = vector.extract_strided_slice %84 {offsets = [0, 24], sizes = [64, 8], strides = [1, 1]} : vector<64x96xbf16> to vector<64x8xbf16>
    %89 = vector.shape_cast %85 : vector<64x8xbf16> to vector<1x64x8xbf16>
    %90 = vector.shape_cast %86 : vector<64x8xbf16> to vector<1x64x8xbf16>
    %91 = vector.shape_cast %87 : vector<64x8xbf16> to vector<1x64x8xbf16>
    %92 = vector.shape_cast %88 : vector<64x8xbf16> to vector<1x64x8xbf16>
    %93 = tpu.concatenate %89, %90, %91, %92 in 0 : vector<1x64x8xbf16>, vector<1x64x8xbf16>, vector<1x64x8xbf16>, vector<1x64x8xbf16> -> vector<4x64x8xbf16>
    %94 = vector.extract_strided_slice %84 {offsets = [0, 32], sizes = [64, 8], strides = [1, 1]} : vector<64x96xbf16> to vector<64x8xbf16>
    %95 = vector.extract_strided_slice %84 {offsets = [0, 40], sizes = [64, 8], strides = [1, 1]} : vector<64x96xbf16> to vector<64x8xbf16>
    %96 = vector.extract_strided_slice %84 {offsets = [0, 48], sizes = [64, 8], strides = [1, 1]} : vector<64x96xbf16> to vector<64x8xbf16>
    %97 = vector.extract_strided_slice %84 {offsets = [0, 56], sizes = [64, 8], strides = [1, 1]} : vector<64x96xbf16> to vector<64x8xbf16>
    %98 = vector.shape_cast %94 : vector<64x8xbf16> to vector<1x64x8xbf16>
    %99 = vector.shape_cast %95 : vector<64x8xbf16> to vector<1x64x8xbf16>
    %100 = vector.shape_cast %96 : vector<64x8xbf16> to vector<1x64x8xbf16>
    %101 = vector.shape_cast %97 : vector<64x8xbf16> to vector<1x64x8xbf16>
    %102 = tpu.concatenate %98, %99, %100, %101 in 0 : vector<1x64x8xbf16>, vector<1x64x8xbf16>, vector<1x64x8xbf16>, vector<1x64x8xbf16> -> vector<4x64x8xbf16>
    %103 = vector.extract_strided_slice %84 {offsets = [0, 64], sizes = [64, 8], strides = [1, 1]} : vector<64x96xbf16> to vector<64x8xbf16>
    %104 = vector.extract_strided_slice %84 {offsets = [0, 72], sizes = [64, 8], strides = [1, 1]} : vector<64x96xbf16> to vector<64x8xbf16>
    %105 = vector.extract_strided_slice %84 {offsets = [0, 80], sizes = [64, 8], strides = [1, 1]} : vector<64x96xbf16> to vector<64x8xbf16>
    %106 = vector.extract_strided_slice %84 {offsets = [0, 88], sizes = [64, 8], strides = [1, 1]} : vector<64x96xbf16> to vector<64x8xbf16>
    %107 = vector.shape_cast %103 : vector<64x8xbf16> to vector<1x64x8xbf16>
    %108 = vector.shape_cast %104 : vector<64x8xbf16> to vector<1x64x8xbf16>
    %109 = vector.shape_cast %105 : vector<64x8xbf16> to vector<1x64x8xbf16>
    %110 = vector.shape_cast %106 : vector<64x8xbf16> to vector<1x64x8xbf16>
    %111 = tpu.concatenate %107, %108, %109, %110 in 0 : vector<1x64x8xbf16>, vector<1x64x8xbf16>, vector<1x64x8xbf16>, vector<1x64x8xbf16> -> vector<4x64x8xbf16>
    "tpu.trace_start"() <{level = 10 : i32, message = "hnd,hmd->hnm"}> : () -> ()
    %cst_80 = arith.constant dense<0.000000e+00> : vector<4x64x64xf32>
    %112 = tpu.matmul %93, %102, %cst_80 {dimension_numbers = #tpu.dot_dimension_numbers<[2], [2], [1], [1], [0, 0, 0, 1, 1, 1], [0], [0]>} : vector<4x64x8xbf16>, vector<4x64x8xbf16>, vector<4x64x64xf32> -> vector<4x64x64xf32>
    "tpu.trace_stop"() : () -> ()
    %113 = vector.shape_cast %75 : vector<64x64xf32> to vector<1x64x64xf32>
    %114 = vector.broadcast %113 : vector<1x64x64xf32> to vector<4x64x64xf32>
    %115 = arith.addf %112, %114 : vector<4x64x64xf32>
    %cst_81 = arith.constant dense<0xFF800000> : vector<4x64xf32>
    %116 = vector.multi_reduction <maximumf>, %115, %cst_81 [2] : vector<4x64x64xf32> to vector<4x64xf32>
    %117 = vector.shape_cast %116 : vector<4x64xf32> to vector<4x64x1xf32>
    %118 = vector.broadcast %117 : vector<4x64x1xf32> to vector<4x64x64xf32>
    %119 = arith.subf %115, %118 : vector<4x64x64xf32>
    %120 = math.exp %119 : vector<4x64x64xf32>
    %cst_82 = arith.constant dense<0.000000e+00> : vector<4x64xf32>
    %121 = vector.multi_reduction <add>, %120, %cst_82 [2] : vector<4x64x64xf32> to vector<4x64xf32>
    %122 = vector.shape_cast %121 : vector<4x64xf32> to vector<4x64x1xf32>
    %123 = tpu.reciprocal %122 {approx = true} : vector<4x64x1xf32> -> vector<4x64x1xf32>
    %124 = vector.broadcast %123 : vector<4x64x1xf32> to vector<4x64x64xf32>
    %125 = arith.mulf %120, %124 : vector<4x64x64xf32>
    %126 = arith.truncf %125 : vector<4x64x64xf32> to vector<4x64x64xbf16>
    "tpu.trace_start"() <{level = 10 : i32, message = "hnm,hmd->hnd"}> : () -> ()
    %cst_83 = arith.constant dense<0.000000e+00> : vector<4x64x8xf32>
    %127 = tpu.matmul %126, %111, %cst_83 {dimension_numbers = #tpu.dot_dimension_numbers<[2], [1], [1], [2], [0, 0, 0, 1, 1, 2], [0], [0]>} : vector<4x64x64xbf16>, vector<4x64x8xbf16>, vector<4x64x8xf32> -> vector<4x64x8xf32>
    "tpu.trace_stop"() : () -> ()
    %128 = arith.truncf %127 : vector<4x64x8xf32> to vector<4x64x8xbf16>
    %c0_84 = arith.constant 0 : index
    %c0_85 = arith.constant 0 : index
    %c0_86 = arith.constant 0 : index
    %c0_87 = arith.constant 0 : index
    %129 = vector.load %arg15[%c0_84, %c0_85, %c0_86, %c0_87] : memref<2x4x8x32xbf16, #tpu.memory_space<vmem>>, vector<1x4x8x32xbf16>
    %130 = vector.shape_cast %129 : vector<1x4x8x32xbf16> to vector<4x8x32xbf16>
    "tpu.trace_start"() <{level = 10 : i32, message = "hnd,hdf->hnf"}> : () -> ()
    %cst_88 = arith.constant dense<0.000000e+00> : vector<4x64x32xf32>
    %131 = tpu.matmul %128, %130, %cst_88 {dimension_numbers = #tpu.dot_dimension_numbers<[2], [1], [1], [2], [0, 0, 0, 1, 1, 2], [0], [0]>} : vector<4x64x8xbf16>, vector<4x8x32xbf16>, vector<4x64x32xf32> -> vector<4x64x32xf32>
    "tpu.trace_stop"() : () -> ()
    %cst_89 = arith.constant dense<0.000000e+00> : vector<64x32xf32>
    %132 = vector.multi_reduction <add>, %131, %cst_89 [0] : vector<4x64x32xf32> to vector<64x32xf32>
    %c0_90 = arith.constant 0 : index
    %c0_91 = arith.constant 0 : index
    %c0_92 = arith.constant 0 : index
    %133 = vector.load %arg16[%c0_90, %c0_91, %c0_92] : memref<2x1x32xf32, #tpu.memory_space<vmem>>, vector<1x1x32xf32>
    %134 = vector.shape_cast %133 : vector<1x1x32xf32> to vector<1x32xf32>
    %135 = vector.broadcast %134 : vector<1x32xf32> to vector<64x32xf32>
    %136 = arith.addf %132, %135 : vector<64x32xf32>
    %137 = arith.addf %74, %136 : vector<64x32xf32>
    %cst_93 = arith.constant dense<0.000000e+00> : vector<64xf32>
    %138 = vector.multi_reduction <add>, %137, %cst_93 [1] : vector<64x32xf32> to vector<64xf32>
    %139 = vector.shape_cast %138 : vector<64xf32> to vector<64x1xf32>
    %cst_94 = arith.constant 3.200000e+01 : f32
    %140 = vector.broadcast %cst_94 : f32 to vector<64x1xf32>
    %141 = arith.divf %139, %140 : vector<64x1xf32>
    %142 = vector.broadcast %141 : vector<64x1xf32> to vector<64x32xf32>
    %143 = arith.subf %137, %142 : vector<64x32xf32>
    %144 = arith.mulf %143, %143 : vector<64x32xf32>
    %cst_95 = arith.constant dense<0.000000e+00> : vector<64xf32>
    %145 = vector.multi_reduction <add>, %144, %cst_95 [1] : vector<64x32xf32> to vector<64xf32>
    %146 = vector.shape_cast %145 : vector<64xf32> to vector<64x1xf32>
    %cst_96 = arith.constant 3.200000e+01 : f32
    %147 = vector.broadcast %cst_96 : f32 to vector<64x1xf32>
    %148 = arith.divf %146, %147 : vector<64x1xf32>
    %149 = vector.broadcast %141 : vector<64x1xf32> to vector<64x32xf32>
    %150 = arith.subf %137, %149 : vector<64x32xf32>
    %cst_97 = arith.constant 9.99999974E-6 : f32
    %151 = vector.broadcast %cst_97 : f32 to vector<64x1xf32>
    %152 = arith.addf %148, %151 : vector<64x1xf32>
    %153 = math.rsqrt %152 : vector<64x1xf32>
    %154 = vector.broadcast %153 : vector<64x1xf32> to vector<64x32xf32>
    %155 = arith.mulf %150, %154 : vector<64x32xf32>
    %c0_98 = arith.constant 0 : index
    %c0_99 = arith.constant 0 : index
    %c0_100 = arith.constant 0 : index
    %156 = vector.load %arg17[%c0_98, %c0_99, %c0_100] : memref<2x1x32xf32, #tpu.memory_space<vmem>>, vector<1x1x32xf32>
    %157 = vector.shape_cast %156 : vector<1x1x32xf32> to vector<1x32xf32>
    %158 = vector.broadcast %157 : vector<1x32xf32> to vector<64x32xf32>
    %159 = arith.mulf %155, %158 : vector<64x32xf32>
    %c0_101 = arith.constant 0 : index
    %c0_102 = arith.constant 0 : index
    %c0_103 = arith.constant 0 : index
    %160 = vector.load %arg18[%c0_101, %c0_102, %c0_103] : memref<2x1x32xf32, #tpu.memory_space<vmem>>, vector<1x1x32xf32>
    %161 = vector.shape_cast %160 : vector<1x1x32xf32> to vector<1x32xf32>
    %162 = vector.broadcast %161 : vector<1x32xf32> to vector<64x32xf32>
    %163 = arith.addf %159, %162 : vector<64x32xf32>
    %164 = arith.truncf %163 : vector<64x32xf32> to vector<64x32xbf16>
    %c0_104 = arith.constant 0 : index
    %c0_105 = arith.constant 0 : index
    %c0_106 = arith.constant 0 : index
    %165 = vector.load %arg19[%c0_104, %c0_105, %c0_106] : memref<2x32x128xbf16, #tpu.memory_space<vmem>>, vector<1x32x128xbf16>
    %166 = vector.shape_cast %165 : vector<1x32x128xbf16> to vector<32x128xbf16>
    %cst_107 = arith.constant dense<0.000000e+00> : vector<64x128xf32>
    %167 = tpu.matmul %164, %166, %cst_107 {dimension_numbers = #tpu.dot_dimension_numbers<[1], [0], [0], [1], [0, 0, 1, 1], [], []>} : vector<64x32xbf16>, vector<32x128xbf16>, vector<64x128xf32> -> vector<64x128xf32>
    %c0_108 = arith.constant 0 : index
    %c0_109 = arith.constant 0 : index
    %c0_110 = arith.constant 0 : index
    %168 = vector.load %arg20[%c0_108, %c0_109, %c0_110] : memref<2x1x128xf32, #tpu.memory_space<vmem>>, vector<1x1x128xf32>
    %169 = vector.shape_cast %168 : vector<1x1x128xf32> to vector<1x128xf32>
    %170 = vector.broadcast %169 : vector<1x128xf32> to vector<64x128xf32>
    %171 = arith.addf %167, %170 : vector<64x128xf32>
    %cst_111 = arith.constant 0.000000e+00 : f32
    %172 = vector.broadcast %cst_111 : f32 to vector<64x128xf32>
    %173 = arith.maximumf %171, %172 : vector<64x128xf32>
    %174 = arith.truncf %173 : vector<64x128xf32> to vector<64x128xbf16>
    %c0_112 = arith.constant 0 : index
    %c0_113 = arith.constant 0 : index
    %c0_114 = arith.constant 0 : index
    %175 = vector.load %arg21[%c0_112, %c0_113, %c0_114] : memref<2x128x32xbf16, #tpu.memory_space<vmem>>, vector<1x128x32xbf16>
    %176 = vector.shape_cast %175 : vector<1x128x32xbf16> to vector<128x32xbf16>
    %cst_115 = arith.constant dense<0.000000e+00> : vector<64x32xf32>
    %177 = tpu.matmul %174, %176, %cst_115 {dimension_numbers = #tpu.dot_dimension_numbers<[1], [0], [0], [1], [0, 0, 1, 1], [], []>} : vector<64x128xbf16>, vector<128x32xbf16>, vector<64x32xf32> -> vector<64x32xf32>
    %c0_116 = arith.constant 0 : index
    %c0_117 = arith.constant 0 : index
    %c0_118 = arith.constant 0 : index
    %178 = vector.load %arg22[%c0_116, %c0_117, %c0_118] : memref<2x1x32xf32, #tpu.memory_space<vmem>>, vector<1x1x32xf32>
    %179 = vector.shape_cast %178 : vector<1x1x32xf32> to vector<1x32xf32>
    %180 = vector.broadcast %179 : vector<1x32xf32> to vector<64x32xf32>
    %181 = arith.addf %177, %180 : vector<64x32xf32>
    %182 = arith.addf %163, %181 : vector<64x32xf32>
    %cst_119 = arith.constant dense<0.000000e+00> : vector<64xf32>
    %183 = vector.multi_reduction <add>, %182, %cst_119 [1] : vector<64x32xf32> to vector<64xf32>
    %184 = vector.shape_cast %183 : vector<64xf32> to vector<64x1xf32>
    %cst_120 = arith.constant 3.200000e+01 : f32
    %185 = vector.broadcast %cst_120 : f32 to vector<64x1xf32>
    %186 = arith.divf %184, %185 : vector<64x1xf32>
    %187 = vector.broadcast %186 : vector<64x1xf32> to vector<64x32xf32>
    %188 = arith.subf %182, %187 : vector<64x32xf32>
    %189 = arith.mulf %188, %188 : vector<64x32xf32>
    %cst_121 = arith.constant dense<0.000000e+00> : vector<64xf32>
    %190 = vector.multi_reduction <add>, %189, %cst_121 [1] : vector<64x32xf32> to vector<64xf32>
    %191 = vector.shape_cast %190 : vector<64xf32> to vector<64x1xf32>
    %cst_122 = arith.constant 3.200000e+01 : f32
    %192 = vector.broadcast %cst_122 : f32 to vector<64x1xf32>
    %193 = arith.divf %191, %192 : vector<64x1xf32>
    %194 = vector.broadcast %186 : vector<64x1xf32> to vector<64x32xf32>
    %195 = arith.subf %182, %194 : vector<64x32xf32>
    %cst_123 = arith.constant 9.99999974E-6 : f32
    %196 = vector.broadcast %cst_123 : f32 to vector<64x1xf32>
    %197 = arith.addf %193, %196 : vector<64x1xf32>
    %198 = math.rsqrt %197 : vector<64x1xf32>
    %199 = vector.broadcast %198 : vector<64x1xf32> to vector<64x32xf32>
    %200 = arith.mulf %195, %199 : vector<64x32xf32>
    %c0_124 = arith.constant 0 : index
    %c0_125 = arith.constant 0 : index
    %c0_126 = arith.constant 0 : index
    %201 = vector.load %arg23[%c0_124, %c0_125, %c0_126] : memref<2x1x32xf32, #tpu.memory_space<vmem>>, vector<1x1x32xf32>
    %202 = vector.shape_cast %201 : vector<1x1x32xf32> to vector<1x32xf32>
    %203 = vector.broadcast %202 : vector<1x32xf32> to vector<64x32xf32>
    %204 = arith.mulf %200, %203 : vector<64x32xf32>
    %c0_127 = arith.constant 0 : index
    %c0_128 = arith.constant 0 : index
    %c0_129 = arith.constant 0 : index
    %205 = vector.load %arg24[%c0_127, %c0_128, %c0_129] : memref<2x1x32xf32, #tpu.memory_space<vmem>>, vector<1x1x32xf32>
    %206 = vector.shape_cast %205 : vector<1x1x32xf32> to vector<1x32xf32>
    %207 = vector.broadcast %206 : vector<1x32xf32> to vector<64x32xf32>
    %208 = arith.addf %204, %207 : vector<64x32xf32>
    %209 = arith.truncf %208 : vector<64x32xf32> to vector<64x32xbf16>
    %c1_130 = arith.constant 1 : index
    %c0_131 = arith.constant 0 : index
    %c0_132 = arith.constant 0 : index
    %210 = vector.load %arg13[%c1_130, %c0_131, %c0_132] : memref<2x32x96xbf16, #tpu.memory_space<vmem>>, vector<1x32x96xbf16>
    %211 = vector.shape_cast %210 : vector<1x32x96xbf16> to vector<32x96xbf16>
    %cst_133 = arith.constant dense<0.000000e+00> : vector<64x96xf32>
    %212 = tpu.matmul %209, %211, %cst_133 {dimension_numbers = #tpu.dot_dimension_numbers<[1], [0], [0], [1], [0, 0, 1, 1], [], []>} : vector<64x32xbf16>, vector<32x96xbf16>, vector<64x96xf32> -> vector<64x96xf32>
    %c1_134 = arith.constant 1 : index
    %c0_135 = arith.constant 0 : index
    %c0_136 = arith.constant 0 : index
    %213 = vector.load %arg14[%c1_134, %c0_135, %c0_136] : memref<2x1x96xf32, #tpu.memory_space<vmem>>, vector<1x1x96xf32>
    %214 = vector.shape_cast %213 : vector<1x1x96xf32> to vector<1x96xf32>
    %215 = vector.broadcast %214 : vector<1x96xf32> to vector<64x96xf32>
    %216 = arith.addf %212, %215 : vector<64x96xf32>
    %217 = arith.truncf %216 : vector<64x96xf32> to vector<64x96xbf16>
    %218 = vector.extract_strided_slice %217 {offsets = [0, 0], sizes = [64, 8], strides = [1, 1]} : vector<64x96xbf16> to vector<64x8xbf16>
    %219 = vector.extract_strided_slice %217 {offsets = [0, 8], sizes = [64, 8], strides = [1, 1]} : vector<64x96xbf16> to vector<64x8xbf16>
    %220 = vector.extract_strided_slice %217 {offsets = [0, 16], sizes = [64, 8], strides = [1, 1]} : vector<64x96xbf16> to vector<64x8xbf16>
    %221 = vector.extract_strided_slice %217 {offsets = [0, 24], sizes = [64, 8], strides = [1, 1]} : vector<64x96xbf16> to vector<64x8xbf16>
    %222 = vector.shape_cast %218 : vector<64x8xbf16> to vector<1x64x8xbf16>
    %223 = vector.shape_cast %219 : vector<64x8xbf16> to vector<1x64x8xbf16>
    %224 = vector.shape_cast %220 : vector<64x8xbf16> to vector<1x64x8xbf16>
    %225 = vector.shape_cast %221 : vector<64x8xbf16> to vector<1x64x8xbf16>
    %226 = tpu.concatenate %222, %223, %224, %225 in 0 : vector<1x64x8xbf16>, vector<1x64x8xbf16>, vector<1x64x8xbf16>, vector<1x64x8xbf16> -> vector<4x64x8xbf16>
    %227 = vector.extract_strided_slice %217 {offsets = [0, 32], sizes = [64, 8], strides = [1, 1]} : vector<64x96xbf16> to vector<64x8xbf16>
    %228 = vector.extract_strided_slice %217 {offsets = [0, 40], sizes = [64, 8], strides = [1, 1]} : vector<64x96xbf16> to vector<64x8xbf16>
    %229 = vector.extract_strided_slice %217 {offsets = [0, 48], sizes = [64, 8], strides = [1, 1]} : vector<64x96xbf16> to vector<64x8xbf16>
    %230 = vector.extract_strided_slice %217 {offsets = [0, 56], sizes = [64, 8], strides = [1, 1]} : vector<64x96xbf16> to vector<64x8xbf16>
    %231 = vector.shape_cast %227 : vector<64x8xbf16> to vector<1x64x8xbf16>
    %232 = vector.shape_cast %228 : vector<64x8xbf16> to vector<1x64x8xbf16>
    %233 = vector.shape_cast %229 : vector<64x8xbf16> to vector<1x64x8xbf16>
    %234 = vector.shape_cast %230 : vector<64x8xbf16> to vector<1x64x8xbf16>
    %235 = tpu.concatenate %231, %232, %233, %234 in 0 : vector<1x64x8xbf16>, vector<1x64x8xbf16>, vector<1x64x8xbf16>, vector<1x64x8xbf16> -> vector<4x64x8xbf16>
    %236 = vector.extract_strided_slice %217 {offsets = [0, 64], sizes = [64, 8], strides = [1, 1]} : vector<64x96xbf16> to vector<64x8xbf16>
    %237 = vector.extract_strided_slice %217 {offsets = [0, 72], sizes = [64, 8], strides = [1, 1]} : vector<64x96xbf16> to vector<64x8xbf16>
    %238 = vector.extract_strided_slice %217 {offsets = [0, 80], sizes = [64, 8], strides = [1, 1]} : vector<64x96xbf16> to vector<64x8xbf16>
    %239 = vector.extract_strided_slice %217 {offsets = [0, 88], sizes = [64, 8], strides = [1, 1]} : vector<64x96xbf16> to vector<64x8xbf16>
    %240 = vector.shape_cast %236 : vector<64x8xbf16> to vector<1x64x8xbf16>
    %241 = vector.shape_cast %237 : vector<64x8xbf16> to vector<1x64x8xbf16>
    %242 = vector.shape_cast %238 : vector<64x8xbf16> to vector<1x64x8xbf16>
    %243 = vector.shape_cast %239 : vector<64x8xbf16> to vector<1x64x8xbf16>
    %244 = tpu.concatenate %240, %241, %242, %243 in 0 : vector<1x64x8xbf16>, vector<1x64x8xbf16>, vector<1x64x8xbf16>, vector<1x64x8xbf16> -> vector<4x64x8xbf16>
    "tpu.trace_start"() <{level = 10 : i32, message = "hnd,hmd->hnm"}> : () -> ()
    %cst_137 = arith.constant dense<0.000000e+00> : vector<4x64x64xf32>
    %245 = tpu.matmul %226, %235, %cst_137 {dimension_numbers = #tpu.dot_dimension_numbers<[2], [2], [1], [1], [0, 0, 0, 1, 1, 1], [0], [0]>} : vector<4x64x8xbf16>, vector<4x64x8xbf16>, vector<4x64x64xf32> -> vector<4x64x64xf32>
    "tpu.trace_stop"() : () -> ()
    %246 = vector.shape_cast %75 : vector<64x64xf32> to vector<1x64x64xf32>
    %247 = vector.broadcast %246 : vector<1x64x64xf32> to vector<4x64x64xf32>
    %248 = arith.addf %245, %247 : vector<4x64x64xf32>
    %cst_138 = arith.constant dense<0xFF800000> : vector<4x64xf32>
    %249 = vector.multi_reduction <maximumf>, %248, %cst_138 [2] : vector<4x64x64xf32> to vector<4x64xf32>
    %250 = vector.shape_cast %249 : vector<4x64xf32> to vector<4x64x1xf32>
    %251 = vector.broadcast %250 : vector<4x64x1xf32> to vector<4x64x64xf32>
    %252 = arith.subf %248, %251 : vector<4x64x64xf32>
    %253 = math.exp %252 : vector<4x64x64xf32>
    %cst_139 = arith.constant dense<0.000000e+00> : vector<4x64xf32>
    %254 = vector.multi_reduction <add>, %253, %cst_139 [2] : vector<4x64x64xf32> to vector<4x64xf32>
    %255 = vector.shape_cast %254 : vector<4x64xf32> to vector<4x64x1xf32>
    %256 = tpu.reciprocal %255 {approx = true} : vector<4x64x1xf32> -> vector<4x64x1xf32>
    %257 = vector.broadcast %256 : vector<4x64x1xf32> to vector<4x64x64xf32>
    %258 = arith.mulf %253, %257 : vector<4x64x64xf32>
    %259 = arith.truncf %258 : vector<4x64x64xf32> to vector<4x64x64xbf16>
    "tpu.trace_start"() <{level = 10 : i32, message = "hnm,hmd->hnd"}> : () -> ()
    %cst_140 = arith.constant dense<0.000000e+00> : vector<4x64x8xf32>
    %260 = tpu.matmul %259, %244, %cst_140 {dimension_numbers = #tpu.dot_dimension_numbers<[2], [1], [1], [2], [0, 0, 0, 1, 1, 2], [0], [0]>} : vector<4x64x64xbf16>, vector<4x64x8xbf16>, vector<4x64x8xf32> -> vector<4x64x8xf32>
    "tpu.trace_stop"() : () -> ()
    %261 = arith.truncf %260 : vector<4x64x8xf32> to vector<4x64x8xbf16>
    %c1_141 = arith.constant 1 : index
    %c0_142 = arith.constant 0 : index
    %c0_143 = arith.constant 0 : index
    %c0_144 = arith.constant 0 : index
    %262 = vector.load %arg15[%c1_141, %c0_142, %c0_143, %c0_144] : memref<2x4x8x32xbf16, #tpu.memory_space<vmem>>, vector<1x4x8x32xbf16>
    %263 = vector.shape_cast %262 : vector<1x4x8x32xbf16> to vector<4x8x32xbf16>
    "tpu.trace_start"() <{level = 10 : i32, message = "hnd,hdf->hnf"}> : () -> ()
    %cst_145 = arith.constant dense<0.000000e+00> : vector<4x64x32xf32>
    %264 = tpu.matmul %261, %263, %cst_145 {dimension_numbers = #tpu.dot_dimension_numbers<[2], [1], [1], [2], [0, 0, 0, 1, 1, 2], [0], [0]>} : vector<4x64x8xbf16>, vector<4x8x32xbf16>, vector<4x64x32xf32> -> vector<4x64x32xf32>
    "tpu.trace_stop"() : () -> ()
    %cst_146 = arith.constant dense<0.000000e+00> : vector<64x32xf32>
    %265 = vector.multi_reduction <add>, %264, %cst_146 [0] : vector<4x64x32xf32> to vector<64x32xf32>
    %c1_147 = arith.constant 1 : index
    %c0_148 = arith.constant 0 : index
    %c0_149 = arith.constant 0 : index
    %266 = vector.load %arg16[%c1_147, %c0_148, %c0_149] : memref<2x1x32xf32, #tpu.memory_space<vmem>>, vector<1x1x32xf32>
    %267 = vector.shape_cast %266 : vector<1x1x32xf32> to vector<1x32xf32>
    %268 = vector.broadcast %267 : vector<1x32xf32> to vector<64x32xf32>
    %269 = arith.addf %265, %268 : vector<64x32xf32>
    %270 = arith.addf %208, %269 : vector<64x32xf32>
    %cst_150 = arith.constant dense<0.000000e+00> : vector<64xf32>
    %271 = vector.multi_reduction <add>, %270, %cst_150 [1] : vector<64x32xf32> to vector<64xf32>
    %272 = vector.shape_cast %271 : vector<64xf32> to vector<64x1xf32>
    %cst_151 = arith.constant 3.200000e+01 : f32
    %273 = vector.broadcast %cst_151 : f32 to vector<64x1xf32>
    %274 = arith.divf %272, %273 : vector<64x1xf32>
    %275 = vector.broadcast %274 : vector<64x1xf32> to vector<64x32xf32>
    %276 = arith.subf %270, %275 : vector<64x32xf32>
    %277 = arith.mulf %276, %276 : vector<64x32xf32>
    %cst_152 = arith.constant dense<0.000000e+00> : vector<64xf32>
    %278 = vector.multi_reduction <add>, %277, %cst_152 [1] : vector<64x32xf32> to vector<64xf32>
    %279 = vector.shape_cast %278 : vector<64xf32> to vector<64x1xf32>
    %cst_153 = arith.constant 3.200000e+01 : f32
    %280 = vector.broadcast %cst_153 : f32 to vector<64x1xf32>
    %281 = arith.divf %279, %280 : vector<64x1xf32>
    %282 = vector.broadcast %274 : vector<64x1xf32> to vector<64x32xf32>
    %283 = arith.subf %270, %282 : vector<64x32xf32>
    %cst_154 = arith.constant 9.99999974E-6 : f32
    %284 = vector.broadcast %cst_154 : f32 to vector<64x1xf32>
    %285 = arith.addf %281, %284 : vector<64x1xf32>
    %286 = math.rsqrt %285 : vector<64x1xf32>
    %287 = vector.broadcast %286 : vector<64x1xf32> to vector<64x32xf32>
    %288 = arith.mulf %283, %287 : vector<64x32xf32>
    %c1_155 = arith.constant 1 : index
    %c0_156 = arith.constant 0 : index
    %c0_157 = arith.constant 0 : index
    %289 = vector.load %arg17[%c1_155, %c0_156, %c0_157] : memref<2x1x32xf32, #tpu.memory_space<vmem>>, vector<1x1x32xf32>
    %290 = vector.shape_cast %289 : vector<1x1x32xf32> to vector<1x32xf32>
    %291 = vector.broadcast %290 : vector<1x32xf32> to vector<64x32xf32>
    %292 = arith.mulf %288, %291 : vector<64x32xf32>
    %c1_158 = arith.constant 1 : index
    %c0_159 = arith.constant 0 : index
    %c0_160 = arith.constant 0 : index
    %293 = vector.load %arg18[%c1_158, %c0_159, %c0_160] : memref<2x1x32xf32, #tpu.memory_space<vmem>>, vector<1x1x32xf32>
    %294 = vector.shape_cast %293 : vector<1x1x32xf32> to vector<1x32xf32>
    %295 = vector.broadcast %294 : vector<1x32xf32> to vector<64x32xf32>
    %296 = arith.addf %292, %295 : vector<64x32xf32>
    %297 = arith.truncf %296 : vector<64x32xf32> to vector<64x32xbf16>
    %c1_161 = arith.constant 1 : index
    %c0_162 = arith.constant 0 : index
    %c0_163 = arith.constant 0 : index
    %298 = vector.load %arg19[%c1_161, %c0_162, %c0_163] : memref<2x32x128xbf16, #tpu.memory_space<vmem>>, vector<1x32x128xbf16>
    %299 = vector.shape_cast %298 : vector<1x32x128xbf16> to vector<32x128xbf16>
    %cst_164 = arith.constant dense<0.000000e+00> : vector<64x128xf32>
    %300 = tpu.matmul %297, %299, %cst_164 {dimension_numbers = #tpu.dot_dimension_numbers<[1], [0], [0], [1], [0, 0, 1, 1], [], []>} : vector<64x32xbf16>, vector<32x128xbf16>, vector<64x128xf32> -> vector<64x128xf32>
    %c1_165 = arith.constant 1 : index
    %c0_166 = arith.constant 0 : index
    %c0_167 = arith.constant 0 : index
    %301 = vector.load %arg20[%c1_165, %c0_166, %c0_167] : memref<2x1x128xf32, #tpu.memory_space<vmem>>, vector<1x1x128xf32>
    %302 = vector.shape_cast %301 : vector<1x1x128xf32> to vector<1x128xf32>
    %303 = vector.broadcast %302 : vector<1x128xf32> to vector<64x128xf32>
    %304 = arith.addf %300, %303 : vector<64x128xf32>
    %cst_168 = arith.constant 0.000000e+00 : f32
    %305 = vector.broadcast %cst_168 : f32 to vector<64x128xf32>
    %306 = arith.maximumf %304, %305 : vector<64x128xf32>
    %307 = arith.truncf %306 : vector<64x128xf32> to vector<64x128xbf16>
    %c1_169 = arith.constant 1 : index
    %c0_170 = arith.constant 0 : index
    %c0_171 = arith.constant 0 : index
    %308 = vector.load %arg21[%c1_169, %c0_170, %c0_171] : memref<2x128x32xbf16, #tpu.memory_space<vmem>>, vector<1x128x32xbf16>
    %309 = vector.shape_cast %308 : vector<1x128x32xbf16> to vector<128x32xbf16>
    %cst_172 = arith.constant dense<0.000000e+00> : vector<64x32xf32>
    %310 = tpu.matmul %307, %309, %cst_172 {dimension_numbers = #tpu.dot_dimension_numbers<[1], [0], [0], [1], [0, 0, 1, 1], [], []>} : vector<64x128xbf16>, vector<128x32xbf16>, vector<64x32xf32> -> vector<64x32xf32>
    %c1_173 = arith.constant 1 : index
    %c0_174 = arith.constant 0 : index
    %c0_175 = arith.constant 0 : index
    %311 = vector.load %arg22[%c1_173, %c0_174, %c0_175] : memref<2x1x32xf32, #tpu.memory_space<vmem>>, vector<1x1x32xf32>
    %312 = vector.shape_cast %311 : vector<1x1x32xf32> to vector<1x32xf32>
    %313 = vector.broadcast %312 : vector<1x32xf32> to vector<64x32xf32>
    %314 = arith.addf %310, %313 : vector<64x32xf32>
    %315 = arith.addf %296, %314 : vector<64x32xf32>
    %cst_176 = arith.constant dense<0.000000e+00> : vector<64xf32>
    %316 = vector.multi_reduction <add>, %315, %cst_176 [1] : vector<64x32xf32> to vector<64xf32>
    %317 = vector.shape_cast %316 : vector<64xf32> to vector<64x1xf32>
    %cst_177 = arith.constant 3.200000e+01 : f32
    %318 = vector.broadcast %cst_177 : f32 to vector<64x1xf32>
    %319 = arith.divf %317, %318 : vector<64x1xf32>
    %320 = vector.broadcast %319 : vector<64x1xf32> to vector<64x32xf32>
    %321 = arith.subf %315, %320 : vector<64x32xf32>
    %322 = arith.mulf %321, %321 : vector<64x32xf32>
    %cst_178 = arith.constant dense<0.000000e+00> : vector<64xf32>
    %323 = vector.multi_reduction <add>, %322, %cst_178 [1] : vector<64x32xf32> to vector<64xf32>
    %324 = vector.shape_cast %323 : vector<64xf32> to vector<64x1xf32>
    %cst_179 = arith.constant 3.200000e+01 : f32
    %325 = vector.broadcast %cst_179 : f32 to vector<64x1xf32>
    %326 = arith.divf %324, %325 : vector<64x1xf32>
    %327 = vector.broadcast %319 : vector<64x1xf32> to vector<64x32xf32>
    %328 = arith.subf %315, %327 : vector<64x32xf32>
    %cst_180 = arith.constant 9.99999974E-6 : f32
    %329 = vector.broadcast %cst_180 : f32 to vector<64x1xf32>
    %330 = arith.addf %326, %329 : vector<64x1xf32>
    %331 = math.rsqrt %330 : vector<64x1xf32>
    %332 = vector.broadcast %331 : vector<64x1xf32> to vector<64x32xf32>
    %333 = arith.mulf %328, %332 : vector<64x32xf32>
    %c1_181 = arith.constant 1 : index
    %c0_182 = arith.constant 0 : index
    %c0_183 = arith.constant 0 : index
    %334 = vector.load %arg23[%c1_181, %c0_182, %c0_183] : memref<2x1x32xf32, #tpu.memory_space<vmem>>, vector<1x1x32xf32>
    %335 = vector.shape_cast %334 : vector<1x1x32xf32> to vector<1x32xf32>
    %336 = vector.broadcast %335 : vector<1x32xf32> to vector<64x32xf32>
    %337 = arith.mulf %333, %336 : vector<64x32xf32>
    %c1_184 = arith.constant 1 : index
    %c0_185 = arith.constant 0 : index
    %c0_186 = arith.constant 0 : index
    %338 = vector.load %arg24[%c1_184, %c0_185, %c0_186] : memref<2x1x32xf32, #tpu.memory_space<vmem>>, vector<1x1x32xf32>
    %339 = vector.shape_cast %338 : vector<1x1x32xf32> to vector<1x32xf32>
    %340 = vector.broadcast %339 : vector<1x32xf32> to vector<64x32xf32>
    %341 = arith.addf %337, %340 : vector<64x32xf32>
    %c0_187 = arith.constant 0 : index
    %c0_188 = arith.constant 0 : index
    %342 = vector.load %arg25[%c0_187, %c0_188] : memref<64x32xf32, #tpu.memory_space<vmem>>, vector<64x32xf32>
    tpu.vector_store %arg25[%c0_187, %c0_188], %341 {strides = array<i32>} : memref<64x32xf32, #tpu.memory_space<vmem>>, vector<64x32xf32>,
    return
  }
}

</mosaic_0001>

<llo_original>
// kernel: audio_encoder_forward.1
$region0: #{audio_encoder_forward.1}
  #allocation0 [shape = 'u32[]', space=smem, size = 0x4, offset = 0x4, fixed_abs, tag = 'smem constant byte address 0x4 - core index']
  #allocation1 [shape = 'u32[72,128]{1,0:T(1,128)}', space=vmem, size = 0x9000, scoped, tag = 'internal scratch']
  #allocation2 [shape = 'f32[260,32]{1,0:T(8,128)}', space=vmem, size = 0x21000, scoped, tag = 'scratch operand']
  #allocation3 [shape = 'f32[132,32]{1,0:T(8,128)}', space=vmem, size = 0x11000, scoped, tag = 'scratch operand']
  %s0 = inlined_call_operand.vmem [shape: bf16[256,16], index: 0, kind: input, shape index: {}]
  %s1 = inlined_call_operand.vmem [shape: bf16[16,32], index: 1, kind: input, shape index: {}]
  %s2 = inlined_call_operand.vmem [shape: f32[1,32], index: 2, kind: input, shape index: {}]
  %s3 = inlined_call_operand.vmem [shape: f32[1,32], index: 3, kind: input, shape index: {}]
  %s4 = inlined_call_operand.vmem [shape: bf16[128,32], index: 4, kind: input, shape index: {}]
  %s5 = inlined_call_operand.vmem [shape: f32[1,32], index: 5, kind: input, shape index: {}]
  %s6 = inlined_call_operand.vmem [shape: f32[1,32], index: 6, kind: input, shape index: {}]
  %s7 = inlined_call_operand.vmem [shape: bf16[128,32], index: 7, kind: input, shape index: {}]
  %s8 = inlined_call_operand.vmem [shape: f32[1,32], index: 8, kind: input, shape index: {}]
  %s9 = inlined_call_operand.vmem [shape: f32[1,32], index: 9, kind: input, shape index: {}]
  %s10 = inlined_call_operand.vmem [shape: bf16[32,32], index: 10, kind: input, shape index: {}]
  %s11 = inlined_call_operand.vmem [shape: f32[64,32], index: 11, kind: input, shape index: {}]
  %s12 = inlined_call_operand.vmem [shape: f32[64,64], index: 12, kind: input, shape index: {}]
  %s13 = inlined_call_operand.vmem [shape: bf16[2,32,96], index: 13, kind: input, shape index: {}]
  %s14 = inlined_call_operand.vmem [shape: f32[2,1,96], index: 14, kind: input, shape index: {}]
  %s15 = inlined_call_operand.vmem [shape: bf16[2,4,8,32], index: 15, kind: input, shape index: {}]
  %s16 = inlined_call_operand.vmem [shape: f32[2,1,32], index: 16, kind: input, shape index: {}]
  %s17 = inlined_call_operand.vmem [shape: f32[2,1,32], index: 17, kind: input, shape index: {}]
  %s18 = inlined_call_operand.vmem [shape: f32[2,1,32], index: 18, kind: input, shape index: {}]
  %s19 = inlined_call_operand.vmem [shape: bf16[2,32,128], index: 19, kind: input, shape index: {}]
  %s20 = inlined_call_operand.vmem [shape: f32[2,1,128], index: 20, kind: input, shape index: {}]
  %s21 = inlined_call_operand.vmem [shape: bf16[2,128,32], index: 21, kind: input, shape index: {}]
  %s22 = inlined_call_operand.vmem [shape: f32[2,1,32], index: 22, kind: input, shape index: {}]
  %s23 = inlined_call_operand.vmem [shape: f32[2,1,32], index: 23, kind: input, shape index: {}]
  %s24 = inlined_call_operand.vmem [shape: f32[2,1,32], index: 24, kind: input, shape index: {}]
  %s25 = inlined_call_operand.hbm [shape: f32[64,32], index: 25, kind: output, shape index: {}]
  %s26 = sld [smem:[#allocation0]]
  $region110: #{audio_encoder_forward.1} parent=0
    _
  %s28 = ssub.s32 1, %s26
  %s29 = scalar_select 0, %s28, %s26
  $region1: #{audio_encoder_forward.1} parent=0
    #allocation4 [shape = 'u8[32768]{0}', space=vmem, size = 0x8000, scoped, tag = 'output window, operand 0, single buffered']
    #allocation5 [shape = 's32[1]{0}', space=sflag, size = 0x4, scoped, tag = 'scoped memory for audio_encoder_forward.1']
    %30 = vsyncpa [#allocation5], 0
    // Predicated region
    $region2: #{audio_encoder_forward.1} parent=1 // pred_check
      _
    $region3: #{audio_encoder_forward.1} parent=1 // pred_check_branch
      %32 = sbr.rel (0) target = $region5
    $region4: #{audio_encoder_forward.1} parent=1 // pred_region
      _
    $region5: #{audio_encoder_forward.1} parent=1 // pred_fallthru
      _
    // Predicated region
    $region6: #{audio_encoder_forward.1} parent=1 // pred_check
      _
    $region7: #{audio_encoder_forward.1} parent=1 // pred_check_branch
      %34 = sbr.rel (0) target = $region9
    $region8: #{audio_encoder_forward.1} parent=1 // pred_region
      _
    $region9: #{audio_encoder_forward.1} parent=1 // pred_fallthru
      _
    // Predicated region
    $region10: #{audio_encoder_forward.1} parent=1 // pred_check
      _
    $region11: #{audio_encoder_forward.1} parent=1 // pred_check_branch
      %36 = sbr.rel (0) target = $region13
    $region12: #{audio_encoder_forward.1} parent=1 // pred_region
      _
    $region13: #{audio_encoder_forward.1} parent=1 // pred_fallthru
      _
    // Predicated region
    $region14: #{audio_encoder_forward.1} parent=1 // pred_check
      _
    $region15: #{audio_encoder_forward.1} parent=1 // pred_check_branch
      %38 = sbr.rel (0) target = $region17
    $region16: #{audio_encoder_forward.1} parent=1 // pred_region
      _
    $region17: #{audio_encoder_forward.1} parent=1 // pred_fallthru
      _
    // Predicated region
    $region18: #{audio_encoder_forward.1} parent=1 // pred_check
      _
    $region19: #{audio_encoder_forward.1} parent=1 // pred_check_branch
      %40 = sbr.rel (0) target = $region21
    $region20: #{audio_encoder_forward.1} parent=1 // pred_region
      _
    $region21: #{audio_encoder_forward.1} parent=1 // pred_fallthru
      _
    // Predicated region
    $region22: #{audio_encoder_forward.1} parent=1 // pred_check
      _
    $region23: #{audio_encoder_forward.1} parent=1 // pred_check_branch
      %42 = sbr.rel (0) target = $region25
    $region24: #{audio_encoder_forward.1} parent=1 // pred_region
      _
    $region25: #{audio_encoder_forward.1} parent=1 // pred_fallthru
      _
    // Predicated region
    $region26: #{audio_encoder_forward.1} parent=1 // pred_check
      _
    $region27: #{audio_encoder_forward.1} parent=1 // pred_check_branch
      %44 = sbr.rel (0) target = $region29
    $region28: #{audio_encoder_forward.1} parent=1 // pred_region
      _
    $region29: #{audio_encoder_forward.1} parent=1 // pred_fallthru
      _
    // Predicated region
    $region30: #{audio_encoder_forward.1} parent=1 // pred_check
      _
    $region31: #{audio_encoder_forward.1} parent=1 // pred_check_branch
      %46 = sbr.rel (0) target = $region33
    $region32: #{audio_encoder_forward.1} parent=1 // pred_region
      _
    $region33: #{audio_encoder_forward.1} parent=1 // pred_fallthru
      _
    // Predicated region
    $region34: #{audio_encoder_forward.1} parent=1 // pred_check
      _
    $region35: #{audio_encoder_forward.1} parent=1 // pred_check_branch
      %48 = sbr.rel (0) target = $region37
    $region36: #{audio_encoder_forward.1} parent=1 // pred_region
      _
    $region37: #{audio_encoder_forward.1} parent=1 // pred_fallthru
      _
    // Predicated region
    $region38: #{audio_encoder_forward.1} parent=1 // pred_check
      _
    $region39: #{audio_encoder_forward.1} parent=1 // pred_check_branch
      %50 = sbr.rel (0) target = $region41
    $region40: #{audio_encoder_forward.1} parent=1 // pred_region
      _
    $region41: #{audio_encoder_forward.1} parent=1 // pred_fallthru
      _
    // Predicated region
    $region42: #{audio_encoder_forward.1} parent=1 // pred_check
      _
    $region43: #{audio_encoder_forward.1} parent=1 // pred_check_branch
      %52 = sbr.rel (0) target = $region45
    $region44: #{audio_encoder_forward.1} parent=1 // pred_region
      _
    $region45: #{audio_encoder_forward.1} parent=1 // pred_fallthru
      _
    // Predicated region
    $region46: #{audio_encoder_forward.1} parent=1 // pred_check
      _
    $region47: #{audio_encoder_forward.1} parent=1 // pred_check_branch
      %54 = sbr.rel (0) target = $region49
    $region48: #{audio_encoder_forward.1} parent=1 // pred_region
      _
    $region49: #{audio_encoder_forward.1} parent=1 // pred_fallthru
      _
    // Predicated region
    $region50: #{audio_encoder_forward.1} parent=1 // pred_check
      _
    $region51: #{audio_encoder_forward.1} parent=1 // pred_check_branch
      %56 = sbr.rel (0) target = $region53
    $region52: #{audio_encoder_forward.1} parent=1 // pred_region
      _
    $region53: #{audio_encoder_forward.1} parent=1 // pred_fallthru
      _
    // Predicated region
    $region54: #{audio_encoder_forward.1} parent=1 // pred_check
      _
    $region55: #{audio_encoder_forward.1} parent=1 // pred_check_branch
      %58 = sbr.rel (0) target = $region57
    $region56: #{audio_encoder_forward.1} parent=1 // pred_region
      _
    $region57: #{audio_encoder_forward.1} parent=1 // pred_fallthru
      _
    // Predicated region
    $region58: #{audio_encoder_forward.1} parent=1 // pred_check
      _
    $region59: #{audio_encoder_forward.1} parent=1 // pred_check_branch
      %60 = sbr.rel (0) target = $region61
    $region60: #{audio_encoder_forward.1} parent=1 // pred_region
      _
    $region61: #{audio_encoder_forward.1} parent=1 // pred_fallthru
      _
    // Predicated region
    $region62: #{audio_encoder_forward.1} parent=1 // pred_check
      _
    $region63: #{audio_encoder_forward.1} parent=1 // pred_check_branch
      %62 = sbr.rel (0) target = $region65
    $region64: #{audio_encoder_forward.1} parent=1 // pred_region
      _
    $region65: #{audio_encoder_forward.1} parent=1 // pred_fallthru
      _
    // Predicated region
    $region66: #{audio_encoder_forward.1} parent=1 // pred_check
      _
    $region67: #{audio_encoder_forward.1} parent=1 // pred_check_branch
      %64 = sbr.rel (0) target = $region69
    $region68: #{audio_encoder_forward.1} parent=1 // pred_region
      _
    $region69: #{audio_encoder_forward.1} parent=1 // pred_fallthru
      _
    // Predicated region
    $region70: #{audio_encoder_forward.1} parent=1 // pred_check
      _
    $region71: #{audio_encoder_forward.1} parent=1 // pred_check_branch
      %66 = sbr.rel (0) target = $region73
    $region72: #{audio_encoder_forward.1} parent=1 // pred_region
      _
    $region73: #{audio_encoder_forward.1} parent=1 // pred_fallthru
      _
    // Predicated region
    $region74: #{audio_encoder_forward.1} parent=1 // pred_check
      _
    $region75: #{audio_encoder_forward.1} parent=1 // pred_check_branch
      %68 = sbr.rel (0) target = $region77
    $region76: #{audio_encoder_forward.1} parent=1 // pred_region
      _
    $region77: #{audio_encoder_forward.1} parent=1 // pred_fallthru
      _
    // Predicated region
    $region78: #{audio_encoder_forward.1} parent=1 // pred_check
      _
    $region79: #{audio_encoder_forward.1} parent=1 // pred_check_branch
      %70 = sbr.rel (0) target = $region81
    $region80: #{audio_encoder_forward.1} parent=1 // pred_region
      _
    $region81: #{audio_encoder_forward.1} parent=1 // pred_fallthru
      _
    // Predicated region
    $region82: #{audio_encoder_forward.1} parent=1 // pred_check
      _
    $region83: #{audio_encoder_forward.1} parent=1 // pred_check_branch
      %72 = sbr.rel (0) target = $region85
    $region84: #{audio_encoder_forward.1} parent=1 // pred_region
      _
    $region85: #{audio_encoder_forward.1} parent=1 // pred_fallthru
      _
    // Predicated region
    $region86: #{audio_encoder_forward.1} parent=1 // pred_check
      _
    $region87: #{audio_encoder_forward.1} parent=1 // pred_check_branch
      %74 = sbr.rel (0) target = $region89
    $region88: #{audio_encoder_forward.1} parent=1 // pred_region
      _
    $region89: #{audio_encoder_forward.1} parent=1 // pred_fallthru
      _
    // Predicated region
    $region90: #{audio_encoder_forward.1} parent=1 // pred_check
      _
    $region91: #{audio_encoder_forward.1} parent=1 // pred_check_branch
      %76 = sbr.rel (0) target = $region93
    $region92: #{audio_encoder_forward.1} parent=1 // pred_region
      _
    $region93: #{audio_encoder_forward.1} parent=1 // pred_fallthru
      _
    // Predicated region
    $region94: #{audio_encoder_forward.1} parent=1 // pred_check
      _
    $region95: #{audio_encoder_forward.1} parent=1 // pred_check_branch
      %78 = sbr.rel (0) target = $region97
    $region96: #{audio_encoder_forward.1} parent=1 // pred_region
      _
    $region97: #{audio_encoder_forward.1} parent=1 // pred_fallthru
      _
    // Predicated region
    $region98: #{audio_encoder_forward.1} parent=1 // pred_check
      _
    $region99: #{audio_encoder_forward.1} parent=1 // pred_check_branch
      %80 = sbr.rel (0) target = $region101
    $region100: #{audio_encoder_forward.1} parent=1 // pred_region
      _
    $region101: #{audio_encoder_forward.1} parent=1 // pred_fallthru
      _
    %v82 = vld [vmem:[%s0] sm:$0xf]
    %v83 = vld [vmem:[%s0 + $0x4] sm:$0xf]
    %v84 = vld [vmem:[%s0 + $0x8] sm:$0xf]
    %v85 = vld [vmem:[%s0 + $0xc] sm:$0xf]
    %v86 = vld [vmem:[%s0 + $0x10] sm:$0xf]
    %v87 = vld [vmem:[%s0 + $0x14] sm:$0xf]
    %v88 = vld [vmem:[%s0 + $0x18] sm:$0xf]
    %v89 = vld [vmem:[%s0 + $0x1c] sm:$0xf]
    %v90 = vld [vmem:[%s0 + $0x20] sm:$0xf]
    %v91 = vld [vmem:[%s0 + $0x24] sm:$0xf]
    %v92 = vld [vmem:[%s0 + $0x28] sm:$0xf]
    %v93 = vld [vmem:[%s0 + $0x2c] sm:$0xf]
    %v94 = vld [vmem:[%s0 + $0x30] sm:$0xf]
    %v95 = vld [vmem:[%s0 + $0x34] sm:$0xf]
    %v96 = vld [vmem:[%s0 + $0x38] sm:$0xf]
    %v97 = vld [vmem:[%s0 + $0x3c] sm:$0xf]
    %v98 = vld [vmem:[%s0 + $0x40] sm:$0xf]
    %v99 = vld [vmem:[%s0 + $0x44] sm:$0xf]
    %v100 = vld [vmem:[%s0 + $0x48] sm:$0xf]
    %v101 = vld [vmem:[%s0 + $0x4c] sm:$0xf]
    %v102 = vld [vmem:[%s0 + $0x50] sm:$0xf]
    %v103 = vld [vmem:[%s0 + $0x54] sm:$0xf]
    %v104 = vld [vmem:[%s0 + $0x58] sm:$0xf]
    %v105 = vld [vmem:[%s0 + $0x5c] sm:$0xf]
    %v106 = vld [vmem:[%s0 + $0x60] sm:$0xf]
    %v107 = vld [vmem:[%s0 + $0x64] sm:$0xf]
    %v108 = vld [vmem:[%s0 + $0x68] sm:$0xf]
    %v109 = vld [vmem:[%s0 + $0x6c] sm:$0xf]
    %v110 = vld [vmem:[%s0 + $0x70] sm:$0xf]
    %v111 = vld [vmem:[%s0 + $0x74] sm:$0xf]
    %v112 = vld [vmem:[%s0 + $0x78] sm:$0xf]
    %v113 = vld [vmem:[%s0 + $0x7c] sm:$0xf]
    %v114 = vld [vmem:[%s1] sm:$0xf]
    %v115 = vld [vmem:[%s1 + $0x4] sm:$0xf]
    %v148 = vunpack.c.l.b16 %v82
    %v149 = vunpack.c.l.b16 %v83
    %v150 = vunpack.c.l.b16 %v84
    %v151 = vunpack.c.l.b16 %v85
    %v152 = vunpack.c.l.b16 %v86
    %v153 = vunpack.c.l.b16 %v87
    %v154 = vunpack.c.l.b16 %v88
    %v155 = vunpack.c.l.b16 %v89
    %v156 = vunpack.c.l.b16 %v90
    %v157 = vunpack.c.l.b16 %v91
    %v158 = vunpack.c.l.b16 %v92
    %v159 = vunpack.c.l.b16 %v93
    %v160 = vunpack.c.l.b16 %v94
    %v161 = vunpack.c.l.b16 %v95
    %v162 = vunpack.c.l.b16 %v96
    %v163 = vunpack.c.l.b16 %v97
    %v164 = vunpack.c.l.b16 %v98
    %v165 = vunpack.c.l.b16 %v99
    %v166 = vunpack.c.l.b16 %v100
    %v167 = vunpack.c.l.b16 %v101
    %v168 = vunpack.c.l.b16 %v102
    %v169 = vunpack.c.l.b16 %v103
    %v170 = vunpack.c.l.b16 %v104
    %v171 = vunpack.c.l.b16 %v105
    %v172 = vunpack.c.l.b16 %v106
    %v173 = vunpack.c.l.b16 %v107
    %v174 = vunpack.c.l.b16 %v108
    %v175 = vunpack.c.l.b16 %v109
    %v176 = vunpack.c.l.b16 %v110
    %v177 = vunpack.c.l.b16 %v111
    %v178 = vunpack.c.l.b16 %v112
    %v179 = vunpack.c.l.b16 %v113
    %v180 = vpack.c.b16 %v149, %v148
    %v181 = vpack.c.b16 %v151, %v150
    %v182 = vpack.c.b16 %v153, %v152
    %v183 = vpack.c.b16 %v155, %v154
    %v184 = vpack.c.b16 %v157, %v156
    %v185 = vpack.c.b16 %v159, %v158
    %v186 = vpack.c.b16 %v161, %v160
    %v187 = vpack.c.b16 %v163, %v162
    %v188 = vpack.c.b16 %v165, %v164
    %v189 = vpack.c.b16 %v167, %v166
    %v190 = vpack.c.b16 %v169, %v168
    %v191 = vpack.c.b16 %v171, %v170
    %v192 = vpack.c.b16 %v173, %v172
    %v193 = vpack.c.b16 %v175, %v174
    %v194 = vpack.c.b16 %v177, %v176
    %v195 = vpack.c.b16 %v179, %v178
    %v198 = vunpack.c.l.b16 %v114
    %v199 = vunpack.c.l.b16 %v115
    %v200 = vpack.c.b16 %v199, %v198
    %vm202 = vcmask 130048
    %v204 = vsel %vm202, %v180, 0
    %v207 = vsel %vm202, %v181, 0
    %v210 = vsel %vm202, %v182, 0
    %v213 = vsel %vm202, %v183, 0
    %v216 = vsel %vm202, %v184, 0
    %v219 = vsel %vm202, %v185, 0
    %v222 = vsel %vm202, %v186, 0
    %v225 = vsel %vm202, %v187, 0
    %v228 = vsel %vm202, %v188, 0
    %v231 = vsel %vm202, %v189, 0
    %v234 = vsel %vm202, %v190, 0
    %v237 = vsel %vm202, %v191, 0
    %v240 = vsel %vm202, %v192, 0
    %v243 = vsel %vm202, %v193, 0
    %v246 = vsel %vm202, %v194, 0
    %v249 = vsel %vm202, %v195, 0
    %251 = vmatpush.bf16.msra.mxu0 0
    %252 = vmatpush.bf16.msra.mxu0 0
    %253 = vmatpush.bf16.msra.mxu0 0
    %254 = vmatpush.bf16.msra.mxu0 0
    %255 = vmatpush.bf16.msra.mxu0 0
    %256 = vmatpush.bf16.msra.mxu0 0
    %257 = vmatpush.bf16.msra.mxu0 0
    %258 = vmatpush.bf16.msra.mxu0 %v200
    %259 = vmatmul.bf16.gmra.mxu0 %v204
    %v260 = vpop.f32.mrf.mxu0
    %v261 = vadd.f32 0.0, %v260
    %v262 = vpop.f32.mrf.mxu0
    %v263 = vadd.f32 0.0, %v262
    %264 = vmatmul.bf16.gmra.mxu0 %v207
    %v265 = vpop.f32.mrf.mxu0
    %v266 = vadd.f32 0.0, %v265
    %v267 = vpop.f32.mrf.mxu0
    %v268 = vadd.f32 0.0, %v267
    %269 = vmatmul.bf16.gmra.mxu0 %v210
    %v270 = vpop.f32.mrf.mxu0
    %v271 = vadd.f32 0.0, %v270
    %v272 = vpop.f32.mrf.mxu0
    %v273 = vadd.f32 0.0, %v272
    %274 = vmatmul.bf16.gmra.mxu0 %v213
    %v275 = vpop.f32.mrf.mxu0
    %v276 = vadd.f32 0.0, %v275
    %v277 = vpop.f32.mrf.mxu0
    %v278 = vadd.f32 0.0, %v277
    %279 = vmatmul.bf16.gmra.mxu0 %v216
    %v280 = vpop.f32.mrf.mxu0
    %v281 = vadd.f32 0.0, %v280
    %v282 = vpop.f32.mrf.mxu0
    %v283 = vadd.f32 0.0, %v282
    %284 = vmatmul.bf16.gmra.mxu0 %v219
    %v285 = vpop.f32.mrf.mxu0
    %v286 = vadd.f32 0.0, %v285
    %v287 = vpop.f32.mrf.mxu0
    %v288 = vadd.f32 0.0, %v287
    %289 = vmatmul.bf16.gmra.mxu0 %v222
    %v290 = vpop.f32.mrf.mxu0
    %v291 = vadd.f32 0.0, %v290
    %v292 = vpop.f32.mrf.mxu0
    %v293 = vadd.f32 0.0, %v292
    %294 = vmatmul.bf16.gmra.mxu0 %v225
    %v295 = vpop.f32.mrf.mxu0
    %v296 = vadd.f32 0.0, %v295
    %v297 = vpop.f32.mrf.mxu0
    %v298 = vadd.f32 0.0, %v297
    %299 = vmatmul.bf16.gmra.mxu0 %v228
    %v300 = vpop.f32.mrf.mxu0
    %v301 = vadd.f32 0.0, %v300
    %v302 = vpop.f32.mrf.mxu0
    %v303 = vadd.f32 0.0, %v302
    %304 = vmatmul.bf16.gmra.mxu0 %v231
    %v305 = vpop.f32.mrf.mxu0
    %v306 = vadd.f32 0.0, %v305
    %v307 = vpop.f32.mrf.mxu0
    %v308 = vadd.f32 0.0, %v307
    %309 = vmatmul.bf16.gmra.mxu0 %v234
    %v310 = vpop.f32.mrf.mxu0
    %v311 = vadd.f32 0.0, %v310
    %v312 = vpop.f32.mrf.mxu0
    %v313 = vadd.f32 0.0, %v312
    %314 = vmatmul.bf16.gmra.mxu0 %v237
    %v315 = vpop.f32.mrf.mxu0
    %v316 = vadd.f32 0.0, %v315
    %v317 = vpop.f32.mrf.mxu0
    %v318 = vadd.f32 0.0, %v317
    %319 = vmatmul.bf16.gmra.mxu0 %v240
    %v320 = vpop.f32.mrf.mxu0
    %v321 = vadd.f32 0.0, %v320
    %v322 = vpop.f32.mrf.mxu0
    %v323 = vadd.f32 0.0, %v322
    %324 = vmatmul.bf16.gmra.mxu0 %v243
    %v325 = vpop.f32.mrf.mxu0
    %v326 = vadd.f32 0.0, %v325
    %v327 = vpop.f32.mrf.mxu0
    %v328 = vadd.f32 0.0, %v327
    %329 = vmatmul.bf16.gmra.mxu0 %v246
    %v330 = vpop.f32.mrf.mxu0
    %v331 = vadd.f32 0.0, %v330
    %v332 = vpop.f32.mrf.mxu0
    %v333 = vadd.f32 0.0, %v332
    %334 = vmatmul.bf16.gmra.mxu0 %v249
    %v335 = vpop.f32.mrf.mxu0
    %v336 = vadd.f32 0.0, %v335
    %v337 = vpop.f32.mrf.mxu0
    %v338 = vadd.f32 0.0, %v337
    %339 = vdwg.mxu0
    %v340 = vld [vmem:[%s2] sm:$0x1]
    %v342 = vperm.slane %v340, 0
    %v344 = vmul.f32 %v261, %v342
    %v345 = vmul.f32 %v263, %v342
    %v346 = vmul.f32 %v266, %v342
    %v347 = vmul.f32 %v268, %v342
    %v348 = vmul.f32 %v271, %v342
    %v349 = vmul.f32 %v273, %v342
    %v350 = vmul.f32 %v276, %v342
    %v351 = vmul.f32 %v278, %v342
    %v352 = vmul.f32 %v281, %v342
    %v353 = vmul.f32 %v283, %v342
    %v354 = vmul.f32 %v286, %v342
    %v355 = vmul.f32 %v288, %v342
    %v356 = vmul.f32 %v291, %v342
    %v357 = vmul.f32 %v293, %v342
    %v358 = vmul.f32 %v296, %v342
    %v359 = vmul.f32 %v298, %v342
    %v360 = vmul.f32 %v301, %v342
    %v361 = vmul.f32 %v303, %v342
    %v362 = vmul.f32 %v306, %v342
    %v363 = vmul.f32 %v308, %v342
    %v364 = vmul.f32 %v311, %v342
    %v365 = vmul.f32 %v313, %v342
    %v366 = vmul.f32 %v316, %v342
    %v367 = vmul.f32 %v318, %v342
    %v368 = vmul.f32 %v321, %v342
    %v369 = vmul.f32 %v323, %v342
    %v370 = vmul.f32 %v326, %v342
    %v371 = vmul.f32 %v328, %v342
    %v372 = vmul.f32 %v331, %v342
    %v373 = vmul.f32 %v333, %v342
    %v374 = vmul.f32 %v336, %v342
    %v375 = vmul.f32 %v338, %v342
    %v376 = vld [vmem:[%s3] sm:$0x1]
    %v378 = vperm.slane %v376, 0
    %v380 = vadd.f32 %v344, %v378
    %v381 = vadd.f32 %v345, %v378
    %v382 = vadd.f32 %v346, %v378
    %v383 = vadd.f32 %v347, %v378
    %v384 = vadd.f32 %v348, %v378
    %v385 = vadd.f32 %v349, %v378
    %v386 = vadd.f32 %v350, %v378
    %v387 = vadd.f32 %v351, %v378
    %v388 = vadd.f32 %v352, %v378
    %v389 = vadd.f32 %v353, %v378
    %v390 = vadd.f32 %v354, %v378
    %v391 = vadd.f32 %v355, %v378
    %v392 = vadd.f32 %v356, %v378
    %v393 = vadd.f32 %v357, %v378
    %v394 = vadd.f32 %v358, %v378
    %v395 = vadd.f32 %v359, %v378
    %v396 = vadd.f32 %v360, %v378
    %v397 = vadd.f32 %v361, %v378
    %v398 = vadd.f32 %v362, %v378
    %v399 = vadd.f32 %v363, %v378
    %v400 = vadd.f32 %v364, %v378
    %v401 = vadd.f32 %v365, %v378
    %v402 = vadd.f32 %v366, %v378
    %v403 = vadd.f32 %v367, %v378
    %v404 = vadd.f32 %v368, %v378
    %v405 = vadd.f32 %v369, %v378
    %v406 = vadd.f32 %v370, %v378
    %v407 = vadd.f32 %v371, %v378
    %v408 = vadd.f32 %v372, %v378
    %v409 = vadd.f32 %v373, %v378
    %v410 = vadd.f32 %v374, %v378
    %v411 = vadd.f32 %v375, %v378
    %v412 = vmax.f32 %v380, 0.0
    %v413 = vmax.f32 %v381, 0.0
    %v414 = vmax.f32 %v382, 0.0
    %v415 = vmax.f32 %v383, 0.0
    %v416 = vmax.f32 %v384, 0.0
    %v417 = vmax.f32 %v385, 0.0
    %v418 = vmax.f32 %v386, 0.0
    %v419 = vmax.f32 %v387, 0.0
    %v420 = vmax.f32 %v388, 0.0
    %v421 = vmax.f32 %v389, 0.0
    %v422 = vmax.f32 %v390, 0.0
    %v423 = vmax.f32 %v391, 0.0
    %v424 = vmax.f32 %v392, 0.0
    %v425 = vmax.f32 %v393, 0.0
    %v426 = vmax.f32 %v394, 0.0
    %v427 = vmax.f32 %v395, 0.0
    %v428 = vmax.f32 %v396, 0.0
    %v429 = vmax.f32 %v397, 0.0
    %v430 = vmax.f32 %v398, 0.0
    %v431 = vmax.f32 %v399, 0.0
    %v432 = vmax.f32 %v400, 0.0
    %v433 = vmax.f32 %v401, 0.0
    %v434 = vmax.f32 %v402, 0.0
    %v435 = vmax.f32 %v403, 0.0
    %v436 = vmax.f32 %v404, 0.0
    %v437 = vmax.f32 %v405, 0.0
    %v438 = vmax.f32 %v406, 0.0
    %v439 = vmax.f32 %v407, 0.0
    %v440 = vmax.f32 %v408, 0.0
    %v441 = vmax.f32 %v409, 0.0
    %v442 = vmax.f32 %v410, 0.0
    %v443 = vmax.f32 %v411, 0.0
    %vm444 = vcmask 253952
    %445 = vst.msk [vmem:[#allocation2] sm:$0x1] %vm444, 0.0
    %446 = vst.msk [vmem:[#allocation2 + $0x81] sm:$0x1] %vm444, 0.0
    %vm447 = vcmask 261120
    %448 = vst.msk [vmem:[#allocation2 + $0x1] sm:$0xff] %vm447, %v412
    %449 = vst.msk [vmem:[#allocation2 + $0x9] sm:$0xff] %vm447, %v413
    %450 = vst.msk [vmem:[#allocation2 + $0x11] sm:$0xff] %vm447, %v414
    %451 = vst.msk [vmem:[#allocation2 + $0x19] sm:$0xff] %vm447, %v415
    %452 = vst.msk [vmem:[#allocation2 + $0x21] sm:$0xff] %vm447, %v416
    %453 = vst.msk [vmem:[#allocation2 + $0x29] sm:$0xff] %vm447, %v417
    %454 = vst.msk [vmem:[#allocation2 + $0x31] sm:$0xff] %vm447, %v418
    %455 = vst.msk [vmem:[#allocation2 + $0x39] sm:$0xff] %vm447, %v419
    %456 = vst.msk [vmem:[#allocation2 + $0x41] sm:$0xff] %vm447, %v420
    %457 = vst.msk [vmem:[#allocation2 + $0x49] sm:$0xff] %vm447, %v421
    %458 = vst.msk [vmem:[#allocation2 + $0x51] sm:$0xff] %vm447, %v422
    %459 = vst.msk [vmem:[#allocation2 + $0x59] sm:$0xff] %vm447, %v423
    %460 = vst.msk [vmem:[#allocation2 + $0x61] sm:$0xff] %vm447, %v424
    %461 = vst.msk [vmem:[#allocation2 + $0x69] sm:$0xff] %vm447, %v425
    %462 = vst.msk [vmem:[#allocation2 + $0x71] sm:$0xff] %vm447, %v426
    %463 = vst.msk [vmem:[#allocation2 + $0x79] sm:$0xff] %vm447, %v427
    %464 = vst.msk [vmem:[#allocation2 + $0x82] sm:$0x1] %vm444, 0.0
    %465 = vst.msk [vmem:[#allocation2 + $0x103] sm:$0x1] %vm444, 0.0
    %466 = vst.msk [vmem:[#allocation2 + $0x83] sm:$0xff] %vm447, %v428
    %467 = vst.msk [vmem:[#allocation2 + $0x8b] sm:$0xff] %vm447, %v429
    %468 = vst.msk [vmem:[#allocation2 + $0x93] sm:$0xff] %vm447, %v430
    %469 = vst.msk [vmem:[#allocation2 + $0x9b] sm:$0xff] %vm447, %v431
    %470 = vst.msk [vmem:[#allocation2 + $0xa3] sm:$0xff] %vm447, %v432
    %471 = vst.msk [vmem:[#allocation2 + $0xab] sm:$0xff] %vm447, %v433
    %472 = vst.msk [vmem:[#allocation2 + $0xb3] sm:$0xff] %vm447, %v434
    %473 = vst.msk [vmem:[#allocation2 + $0xbb] sm:$0xff] %vm447, %v435
    %474 = vst.msk [vmem:[#allocation2 + $0xc3] sm:$0xff] %vm447, %v436
    %475 = vst.msk [vmem:[#allocation2 + $0xcb] sm:$0xff] %vm447, %v437
    %476 = vst.msk [vmem:[#allocation2 + $0xd3] sm:$0xff] %vm447, %v438
    %477 = vst.msk [vmem:[#allocation2 + $0xdb] sm:$0xff] %vm447, %v439
    %478 = vst.msk [vmem:[#allocation2 + $0xe3] sm:$0xff] %vm447, %v440
    %479 = vst.msk [vmem:[#allocation2 + $0xeb] sm:$0xff] %vm447, %v441
    %480 = vst.msk [vmem:[#allocation2 + $0xf3] sm:$0xff] %vm447, %v442
    %481 = vst.msk [vmem:[#allocation2 + $0xfb] sm:$0xff] %vm447, %v443
    %v482 = vld [vmem:[#allocation2] ss:$2 sm:$0xff]
    %s483 = scalar_lea.vmem [#allocation2], 16
    %v484 = vld [vmem:[%s483] ss:$2 sm:$0xff]
    %s485 = scalar_lea.vmem [#allocation2], 32
    %v486 = vld [vmem:[%s485] ss:$2 sm:$0xff]
    %s487 = scalar_lea.vmem [#allocation2], 48
    %v488 = vld [vmem:[%s487] ss:$2 sm:$0xff]
    %s489 = scalar_lea.vmem [#allocation2], 64
    %v490 = vld [vmem:[%s489] ss:$2 sm:$0xff]
    %s491 = scalar_lea.vmem [#allocation2], 80
    %v492 = vld [vmem:[%s491] ss:$2 sm:$0xff]
    %s493 = scalar_lea.vmem [#allocation2], 96
    %v494 = vld [vmem:[%s493] ss:$2 sm:$0xff]
    %s495 = scalar_lea.vmem [#allocation2], 112
    %v496 = vld [vmem:[%s495] ss:$2 sm:$0xff]
    %s497 = scalar_lea.vmem [#allocation2], 1
    %v498 = vld [vmem:[%s497] ss:$2 sm:$0xff]
    %s499 = scalar_lea.vmem [#allocation2], 17
    %v500 = vld [vmem:[%s499] ss:$2 sm:$0xff]
    %s501 = scalar_lea.vmem [#allocation2], 33
    %v502 = vld [vmem:[%s501] ss:$2 sm:$0xff]
    %s503 = scalar_lea.vmem [#allocation2], 49
    %v504 = vld [vmem:[%s503] ss:$2 sm:$0xff]
    %s505 = scalar_lea.vmem [#allocation2], 65
    %v506 = vld [vmem:[%s505] ss:$2 sm:$0xff]
    %s507 = scalar_lea.vmem [#allocation2], 81
    %v508 = vld [vmem:[%s507] ss:$2 sm:$0xff]
    %s509 = scalar_lea.vmem [#allocation2], 97
    %v510 = vld [vmem:[%s509] ss:$2 sm:$0xff]
    %s511 = scalar_lea.vmem [#allocation2], 113
    %v512 = vld [vmem:[%s511] ss:$2 sm:$0xff]
    %s513 = scalar_lea.vmem [#allocation2], 2
    %v514 = vld [vmem:[%s513] ss:$2 sm:$0xff]
    %s515 = scalar_lea.vmem [#allocation2], 18
    %v516 = vld [vmem:[%s515] ss:$2 sm:$0xff]
    %s517 = scalar_lea.vmem [#allocation2], 34
    %v518 = vld [vmem:[%s517] ss:$2 sm:$0xff]
    %s519 = scalar_lea.vmem [#allocation2], 50
    %v520 = vld [vmem:[%s519] ss:$2 sm:$0xff]
    %s521 = scalar_lea.vmem [#allocation2], 66
    %v522 = vld [vmem:[%s521] ss:$2 sm:$0xff]
    %s523 = scalar_lea.vmem [#allocation2], 82
    %v524 = vld [vmem:[%s523] ss:$2 sm:$0xff]
    %s525 = scalar_lea.vmem [#allocation2], 98
    %v526 = vld [vmem:[%s525] ss:$2 sm:$0xff]
    %s527 = scalar_lea.vmem [#allocation2], 114
    %v528 = vld [vmem:[%s527] ss:$2 sm:$0xff]
    %s529 = scalar_lea.vmem [#allocation2], 3
    %v530 = vld [vmem:[%s529] ss:$2 sm:$0xff]
    %s531 = scalar_lea.vmem [#allocation2], 19
    %v532 = vld [vmem:[%s531] ss:$2 sm:$0xff]
    %s533 = scalar_lea.vmem [#allocation2], 35
    %v534 = vld [vmem:[%s533] ss:$2 sm:$0xff]
    %s535 = scalar_lea.vmem [#allocation2], 51
    %v536 = vld [vmem:[%s535] ss:$2 sm:$0xff]
    %s537 = scalar_lea.vmem [#allocation2], 67
    %v538 = vld [vmem:[%s537] ss:$2 sm:$0xff]
    %s539 = scalar_lea.vmem [#allocation2], 83
    %v540 = vld [vmem:[%s539] ss:$2 sm:$0xff]
    %s541 = scalar_lea.vmem [#allocation2], 99
    %v542 = vld [vmem:[%s541] ss:$2 sm:$0xff]
    %s543 = scalar_lea.vmem [#allocation2], 115
    %v544 = vld [vmem:[%s543] ss:$2 sm:$0xff]
    %553 = vrot.lane.b32.xlu0 %v498, 32
    %v554 = vpop.permute.xlu0 %553
    %555 = vrot.lane.b32.xlu0 %v500, 32
    %v556 = vpop.permute.xlu0 %555
    %557 = vrot.lane.b32.xlu0 %v502, 32
    %v558 = vpop.permute.xlu0 %557
    %559 = vrot.lane.b32.xlu0 %v504, 32
    %v560 = vpop.permute.xlu0 %559
    %561 = vrot.lane.b32.xlu0 %v506, 32
    %v562 = vpop.permute.xlu0 %561
    %563 = vrot.lane.b32.xlu0 %v508, 32
    %v564 = vpop.permute.xlu0 %563
    %565 = vrot.lane.b32.xlu0 %v510, 32
    %v566 = vpop.permute.xlu0 %565
    %567 = vrot.lane.b32.xlu0 %v512, 32
    %v568 = vpop.permute.xlu0 %567
    %585 = vrot.lane.b32.xlu0 %v514, 64
    %v586 = vpop.permute.xlu0 %585
    %587 = vrot.lane.b32.xlu0 %v516, 64
    %v588 = vpop.permute.xlu0 %587
    %589 = vrot.lane.b32.xlu0 %v518, 64
    %v590 = vpop.permute.xlu0 %589
    %591 = vrot.lane.b32.xlu0 %v520, 64
    %v592 = vpop.permute.xlu0 %591
    %593 = vrot.lane.b32.xlu0 %v522, 64
    %v594 = vpop.permute.xlu0 %593
    %595 = vrot.lane.b32.xlu0 %v524, 64
    %v596 = vpop.permute.xlu0 %595
    %597 = vrot.lane.b32.xlu0 %v526, 64
    %v598 = vpop.permute.xlu0 %597
    %599 = vrot.lane.b32.xlu0 %v528, 64
    %v600 = vpop.permute.xlu0 %599
    %617 = vrot.lane.b32.xlu0 %v530, 96
    %v618 = vpop.permute.xlu0 %617
    %619 = vrot.lane.b32.xlu0 %v532, 96
    %v620 = vpop.permute.xlu0 %619
    %621 = vrot.lane.b32.xlu0 %v534, 96
    %v622 = vpop.permute.xlu0 %621
    %623 = vrot.lane.b32.xlu0 %v536, 96
    %v624 = vpop.permute.xlu0 %623
    %625 = vrot.lane.b32.xlu0 %v538, 96
    %v626 = vpop.permute.xlu0 %625
    %627 = vrot.lane.b32.xlu0 %v540, 96
    %v628 = vpop.permute.xlu0 %627
    %629 = vrot.lane.b32.xlu0 %v542, 96
    %v630 = vpop.permute.xlu0 %629
    %631 = vrot.lane.b32.xlu0 %v544, 96
    %v632 = vpop.permute.xlu0 %631
    %v641 = vsel %vm447, %v482, %v554
    %v642 = vsel %vm447, %v484, %v556
    %v643 = vsel %vm447, %v486, %v558
    %v644 = vsel %vm447, %v488, %v560
    %v645 = vsel %vm447, %v490, %v562
    %v646 = vsel %vm447, %v492, %v564
    %v647 = vsel %vm447, %v494, %v566
    %v648 = vsel %vm447, %v496, %v568
    %vm649 = vcmask 523264
    %v650 = vsel %vm649, %v641, %v586
    %v651 = vsel %vm649, %v642, %v588
    %v652 = vsel %vm649, %v643, %v590
    %v653 = vsel %vm649, %v644, %v592
    %v654 = vsel %vm649, %v645, %v594
    %v655 = vsel %vm649, %v646, %v596
    %v656 = vsel %vm649, %v647, %v598
    %v657 = vsel %vm649, %v648, %v600
    %vm658 = vcmask 785408
    %v659 = vsel %vm658, %v650, %v618
    %v660 = vsel %vm658, %v651, %v620
    %v661 = vsel %vm658, %v652, %v622
    %v662 = vsel %vm658, %v653, %v624
    %v663 = vsel %vm658, %v654, %v626
    %v664 = vsel %vm658, %v655, %v628
    %v665 = vsel %vm658, %v656, %v630
    %v666 = vsel %vm658, %v657, %v632
    %s667 = scalar_lea.vmem [#allocation2], 130
    %v668 = vld [vmem:[%s667] ss:$2 sm:$0xff]
    %s669 = scalar_lea.vmem [#allocation2], 146
    %v670 = vld [vmem:[%s669] ss:$2 sm:$0xff]
    %s671 = scalar_lea.vmem [#allocation2], 162
    %v672 = vld [vmem:[%s671] ss:$2 sm:$0xff]
    %s673 = scalar_lea.vmem [#allocation2], 178
    %v674 = vld [vmem:[%s673] ss:$2 sm:$0xff]
    %s675 = scalar_lea.vmem [#allocation2], 194
    %v676 = vld [vmem:[%s675] ss:$2 sm:$0xff]
    %s677 = scalar_lea.vmem [#allocation2], 210
    %v678 = vld [vmem:[%s677] ss:$2 sm:$0xff]
    %s679 = scalar_lea.vmem [#allocation2], 226
    %v680 = vld [vmem:[%s679] ss:$2 sm:$0xff]
    %s681 = scalar_lea.vmem [#allocation2], 242
    %v682 = vld [vmem:[%s681] ss:$2 sm:$0xff]
    %s683 = scalar_lea.vmem [#allocation2], 131
    %v684 = vld [vmem:[%s683] ss:$2 sm:$0xff]
    %s685 = scalar_lea.vmem [#allocation2], 147
    %v686 = vld [vmem:[%s685] ss:$2 sm:$0xff]
    %s687 = scalar_lea.vmem [#allocation2], 163
    %v688 = vld [vmem:[%s687] ss:$2 sm:$0xff]
    %s689 = scalar_lea.vmem [#allocation2], 179
    %v690 = vld [vmem:[%s689] ss:$2 sm:$0xff]
    %s691 = scalar_lea.vmem [#allocation2], 195
    %v692 = vld [vmem:[%s691] ss:$2 sm:$0xff]
    %s693 = scalar_lea.vmem [#allocation2], 211
    %v694 = vld [vmem:[%s693] ss:$2 sm:$0xff]
    %s695 = scalar_lea.vmem [#allocation2], 227
    %v696 = vld [vmem:[%s695] ss:$2 sm:$0xff]
    %s697 = scalar_lea.vmem [#allocation2], 243
    %v698 = vld [vmem:[%s697] ss:$2 sm:$0xff]
    %s699 = scalar_lea.vmem [#allocation2], 132
    %v700 = vld [vmem:[%s699] ss:$2 sm:$0xff]
    %s701 = scalar_lea.vmem [#allocation2], 148
    %v702 = vld [vmem:[%s701] ss:$2 sm:$0xff]
    %s703 = scalar_lea.vmem [#allocation2], 164
    %v704 = vld [vmem:[%s703] ss:$2 sm:$0xff]
    %s705 = scalar_lea.vmem [#allocation2], 180
    %v706 = vld [vmem:[%s705] ss:$2 sm:$0xff]
    %s707 = scalar_lea.vmem [#allocation2], 196
    %v708 = vld [vmem:[%s707] ss:$2 sm:$0xff]
    %s709 = scalar_lea.vmem [#allocation2], 212
    %v710 = vld [vmem:[%s709] ss:$2 sm:$0xff]
    %s711 = scalar_lea.vmem [#allocation2], 228
    %v712 = vld [vmem:[%s711] ss:$2 sm:$0xff]
    %s713 = scalar_lea.vmem [#allocation2], 244
    %v714 = vld [vmem:[%s713] ss:$2 sm:$0xff]
    %s715 = scalar_lea.vmem [#allocation2], 133
    %v716 = vld [vmem:[%s715] ss:$2 sm:$0xff]
    %s717 = scalar_lea.vmem [#allocation2], 149
    %v718 = vld [vmem:[%s717] ss:$2 sm:$0xff]
    %s719 = scalar_lea.vmem [#allocation2], 165
    %v720 = vld [vmem:[%s719] ss:$2 sm:$0xff]
    %s721 = scalar_lea.vmem [#allocation2], 181
    %v722 = vld [vmem:[%s721] ss:$2 sm:$0xff]
    %s723 = scalar_lea.vmem [#allocation2], 197
    %v724 = vld [vmem:[%s723] ss:$2 sm:$0xff]
    %s725 = scalar_lea.vmem [#allocation2], 213
    %v726 = vld [vmem:[%s725] ss:$2 sm:$0xff]
    %s727 = scalar_lea.vmem [#allocation2], 229
    %v728 = vld [vmem:[%s727] ss:$2 sm:$0xff]
    %s729 = scalar_lea.vmem [#allocation2], 245
    %v730 = vld [vmem:[%s729] ss:$2 sm:$0xff]
    %739 = vrot.lane.b32.xlu0 %v684, 32
    %v740 = vpop.permute.xlu0 %739
    %741 = vrot.lane.b32.xlu0 %v686, 32
    %v742 = vpop.permute.xlu0 %741
    %743 = vrot.lane.b32.xlu0 %v688, 32
    %v744 = vpop.permute.xlu0 %743
    %745 = vrot.lane.b32.xlu0 %v690, 32
    %v746 = vpop.permute.xlu0 %745
    %747 = vrot.lane.b32.xlu0 %v692, 32
    %v748 = vpop.permute.xlu0 %747
    %749 = vrot.lane.b32.xlu0 %v694, 32
    %v750 = vpop.permute.xlu0 %749
    %751 = vrot.lane.b32.xlu0 %v696, 32
    %v752 = vpop.permute.xlu0 %751
    %753 = vrot.lane.b32.xlu0 %v698, 32
    %v754 = vpop.permute.xlu0 %753
    %771 = vrot.lane.b32.xlu0 %v700, 64
    %v772 = vpop.permute.xlu0 %771
    %773 = vrot.lane.b32.xlu0 %v702, 64
    %v774 = vpop.permute.xlu0 %773
    %775 = vrot.lane.b32.xlu0 %v704, 64
    %v776 = vpop.permute.xlu0 %775
    %777 = vrot.lane.b32.xlu0 %v706, 64
    %v778 = vpop.permute.xlu0 %777
    %779 = vrot.lane.b32.xlu0 %v708, 64
    %v780 = vpop.permute.xlu0 %779
    %781 = vrot.lane.b32.xlu0 %v710, 64
    %v782 = vpop.permute.xlu0 %781
    %783 = vrot.lane.b32.xlu0 %v712, 64
    %v784 = vpop.permute.xlu0 %783
    %785 = vrot.lane.b32.xlu0 %v714, 64
    %v786 = vpop.permute.xlu0 %785
    %803 = vrot.lane.b32.xlu0 %v716, 96
    %v804 = vpop.permute.xlu0 %803
    %805 = vrot.lane.b32.xlu0 %v718, 96
    %v806 = vpop.permute.xlu0 %805
    %807 = vrot.lane.b32.xlu0 %v720, 96
    %v808 = vpop.permute.xlu0 %807
    %809 = vrot.lane.b32.xlu0 %v722, 96
    %v810 = vpop.permute.xlu0 %809
    %811 = vrot.lane.b32.xlu0 %v724, 96
    %v812 = vpop.permute.xlu0 %811
    %813 = vrot.lane.b32.xlu0 %v726, 96
    %v814 = vpop.permute.xlu0 %813
    %815 = vrot.lane.b32.xlu0 %v728, 96
    %v816 = vpop.permute.xlu0 %815
    %817 = vrot.lane.b32.xlu0 %v730, 96
    %v818 = vpop.permute.xlu0 %817
    %v827 = vsel %vm447, %v668, %v740
    %v828 = vsel %vm447, %v670, %v742
    %v829 = vsel %vm447, %v672, %v744
    %v830 = vsel %vm447, %v674, %v746
    %v831 = vsel %vm447, %v676, %v748
    %v832 = vsel %vm447, %v678, %v750
    %v833 = vsel %vm447, %v680, %v752
    %v834 = vsel %vm447, %v682, %v754
    %v835 = vsel %vm649, %v827, %v772
    %v836 = vsel %vm649, %v828, %v774
    %v837 = vsel %vm649, %v829, %v776
    %v838 = vsel %vm649, %v830, %v778
    %v839 = vsel %vm649, %v831, %v780
    %v840 = vsel %vm649, %v832, %v782
    %v841 = vsel %vm649, %v833, %v784
    %v842 = vsel %vm649, %v834, %v786
    %v843 = vsel %vm658, %v835, %v804
    %v844 = vsel %vm658, %v836, %v806
    %v845 = vsel %vm658, %v837, %v808
    %v846 = vsel %vm658, %v838, %v810
    %v847 = vsel %vm658, %v839, %v812
    %v848 = vsel %vm658, %v840, %v814
    %v849 = vsel %vm658, %v841, %v816
    %v850 = vsel %vm658, %v842, %v818
    %v851 = vpack.c.bf16 %v660, %v659
    %v852 = vpack.c.bf16 %v662, %v661
    %v853 = vpack.c.bf16 %v664, %v663
    %v854 = vpack.c.bf16 %v666, %v665
    %v855 = vpack.c.bf16 %v844, %v843
    %v856 = vpack.c.bf16 %v846, %v845
    %v857 = vpack.c.bf16 %v848, %v847
    %v858 = vpack.c.bf16 %v850, %v849
    %v859 = vld [vmem:[%s4] sm:$0xf]
    %v860 = vld [vmem:[%s4 + $0x4] sm:$0xf]
    %v861 = vld [vmem:[%s4 + $0x8] sm:$0xf]
    %v862 = vld [vmem:[%s4 + $0xc] sm:$0xf]
    %v863 = vld [vmem:[%s4 + $0x10] sm:$0xf]
    %v864 = vld [vmem:[%s4 + $0x14] sm:$0xf]
    %v865 = vld [vmem:[%s4 + $0x18] sm:$0xf]
    %v866 = vld [vmem:[%s4 + $0x1c] sm:$0xf]
    %v867 = vld [vmem:[%s4 + $0x20] sm:$0xf]
    %v868 = vld [vmem:[%s4 + $0x24] sm:$0xf]
    %v869 = vld [vmem:[%s4 + $0x28] sm:$0xf]
    %v870 = vld [vmem:[%s4 + $0x2c] sm:$0xf]
    %v871 = vld [vmem:[%s4 + $0x30] sm:$0xf]
    %v872 = vld [vmem:[%s4 + $0x34] sm:$0xf]
    %v873 = vld [vmem:[%s4 + $0x38] sm:$0xf]
    %v874 = vld [vmem:[%s4 + $0x3c] sm:$0xf]
    %v891 = vunpack.c.l.b16 %v859
    %v892 = vunpack.c.l.b16 %v860
    %v893 = vunpack.c.l.b16 %v861
    %v894 = vunpack.c.l.b16 %v862
    %v895 = vunpack.c.l.b16 %v863
    %v896 = vunpack.c.l.b16 %v864
    %v897 = vunpack.c.l.b16 %v865
    %v898 = vunpack.c.l.b16 %v866
    %v899 = vunpack.c.l.b16 %v867
    %v900 = vunpack.c.l.b16 %v868
    %v901 = vunpack.c.l.b16 %v869
    %v902 = vunpack.c.l.b16 %v870
    %v903 = vunpack.c.l.b16 %v871
    %v904 = vunpack.c.l.b16 %v872
    %v905 = vunpack.c.l.b16 %v873
    %v906 = vunpack.c.l.b16 %v874
    %v907 = vpack.c.b16 %v892, %v891
    %v908 = vpack.c.b16 %v894, %v893
    %v909 = vpack.c.b16 %v896, %v895
    %v910 = vpack.c.b16 %v898, %v897
    %v911 = vpack.c.b16 %v900, %v899
    %v912 = vpack.c.b16 %v902, %v901
    %v913 = vpack.c.b16 %v904, %v903
    %v914 = vpack.c.b16 %v906, %v905
    %923 = vmatpush.bf16.msra.mxu0 %v914
    %924 = vmatpush.bf16.msra.mxu0 %v913
    %925 = vmatpush.bf16.msra.mxu0 %v912
    %926 = vmatpush.bf16.msra.mxu0 %v911
    %927 = vmatpush.bf16.msra.mxu0 %v910
    %928 = vmatpush.bf16.msra.mxu0 %v909
    %929 = vmatpush.bf16.msra.mxu0 %v908
    %930 = vmatpush.bf16.msra.mxu0 %v907
    %931 = vmatmul.bf16.gmra.mxu0 %v851
    %v932 = vpop.f32.mrf.mxu0
    %v933 = vadd.f32 0.0, %v932
    %v934 = vpop.f32.mrf.mxu0
    %v935 = vadd.f32 0.0, %v934
    %936 = vmatmul.bf16.gmra.mxu0 %v852
    %v937 = vpop.f32.mrf.mxu0
    %v938 = vadd.f32 0.0, %v937
    %v939 = vpop.f32.mrf.mxu0
    %v940 = vadd.f32 0.0, %v939
    %941 = vmatmul.bf16.gmra.mxu0 %v853
    %v942 = vpop.f32.mrf.mxu0
    %v943 = vadd.f32 0.0, %v942
    %v944 = vpop.f32.mrf.mxu0
    %v945 = vadd.f32 0.0, %v944
    %946 = vmatmul.bf16.gmra.mxu0 %v854
    %v947 = vpop.f32.mrf.mxu0
    %v948 = vadd.f32 0.0, %v947
    %v949 = vpop.f32.mrf.mxu0
    %v950 = vadd.f32 0.0, %v949
    %951 = vmatmul.bf16.gmra.mxu0 %v855
    %v952 = vpop.f32.mrf.mxu0
    %v953 = vadd.f32 0.0, %v952
    %v954 = vpop.f32.mrf.mxu0
    %v955 = vadd.f32 0.0, %v954
    %956 = vmatmul.bf16.gmra.mxu0 %v856
    %v957 = vpop.f32.mrf.mxu0
    %v958 = vadd.f32 0.0, %v957
    %v959 = vpop.f32.mrf.mxu0
    %v960 = vadd.f32 0.0, %v959
    %961 = vmatmul.bf16.gmra.mxu0 %v857
    %v962 = vpop.f32.mrf.mxu0
    %v963 = vadd.f32 0.0, %v962
    %v964 = vpop.f32.mrf.mxu0
    %v965 = vadd.f32 0.0, %v964
    %966 = vmatmul.bf16.gmra.mxu0 %v858
    %v967 = vpop.f32.mrf.mxu0
    %v968 = vadd.f32 0.0, %v967
    %v969 = vpop.f32.mrf.mxu0
    %v970 = vadd.f32 0.0, %v969
    %971 = vdwg.mxu0
    %v972 = vld [vmem:[%s5] sm:$0x1]
    %v974 = vperm.slane %v972, 0
    %v976 = vmul.f32 %v933, %v974
    %v977 = vmul.f32 %v935, %v974
    %v978 = vmul.f32 %v938, %v974
    %v979 = vmul.f32 %v940, %v974
    %v980 = vmul.f32 %v943, %v974
    %v981 = vmul.f32 %v945, %v974
    %v982 = vmul.f32 %v948, %v974
    %v983 = vmul.f32 %v950, %v974
    %v984 = vmul.f32 %v953, %v974
    %v985 = vmul.f32 %v955, %v974
    %v986 = vmul.f32 %v958, %v974
    %v987 = vmul.f32 %v960, %v974
    %v988 = vmul.f32 %v963, %v974
    %v989 = vmul.f32 %v965, %v974
    %v990 = vmul.f32 %v968, %v974
    %v991 = vmul.f32 %v970, %v974
    %v992 = vld [vmem:[%s6] sm:$0x1]
    %v994 = vperm.slane %v992, 0
    %v996 = vadd.f32 %v976, %v994
    %v997 = vadd.f32 %v977, %v994
    %v998 = vadd.f32 %v978, %v994
    %v999 = vadd.f32 %v979, %v994
    %v1000 = vadd.f32 %v980, %v994
    %v1001 = vadd.f32 %v981, %v994
    %v1002 = vadd.f32 %v982, %v994
    %v1003 = vadd.f32 %v983, %v994
    %v1004 = vadd.f32 %v984, %v994
    %v1005 = vadd.f32 %v985, %v994
    %v1006 = vadd.f32 %v986, %v994
    %v1007 = vadd.f32 %v987, %v994
    %v1008 = vadd.f32 %v988, %v994
    %v1009 = vadd.f32 %v989, %v994
    %v1010 = vadd.f32 %v990, %v994
    %v1011 = vadd.f32 %v991, %v994
    %v1012 = vmax.f32 %v996, 0.0
    %v1013 = vmax.f32 %v997, 0.0
    %v1014 = vmax.f32 %v998, 0.0
    %v1015 = vmax.f32 %v999, 0.0
    %v1016 = vmax.f32 %v1000, 0.0
    %v1017 = vmax.f32 %v1001, 0.0
    %v1018 = vmax.f32 %v1002, 0.0
    %v1019 = vmax.f32 %v1003, 0.0
    %v1020 = vmax.f32 %v1004, 0.0
    %v1021 = vmax.f32 %v1005, 0.0
    %v1022 = vmax.f32 %v1006, 0.0
    %v1023 = vmax.f32 %v1007, 0.0
    %v1024 = vmax.f32 %v1008, 0.0
    %v1025 = vmax.f32 %v1009, 0.0
    %v1026 = vmax.f32 %v1010, 0.0
    %v1027 = vmax.f32 %v1011, 0.0
    %1028 = vst.msk [vmem:[#allocation3] sm:$0x1] %vm444, 0.0
    %1029 = vst.msk [vmem:[#allocation3 + $0x41] sm:$0x1] %vm444, 0.0
    %1030 = vst.msk [vmem:[#allocation3 + $0x1] sm:$0xff] %vm447, %v1012
    %1031 = vst.msk [vmem:[#allocation3 + $0x9] sm:$0xff] %vm447, %v1013
    %1032 = vst.msk [vmem:[#allocation3 + $0x11] sm:$0xff] %vm447, %v1014
    %1033 = vst.msk [vmem:[#allocation3 + $0x19] sm:$0xff] %vm447, %v1015
    %1034 = vst.msk [vmem:[#allocation3 + $0x21] sm:$0xff] %vm447, %v1016
    %1035 = vst.msk [vmem:[#allocation3 + $0x29] sm:$0xff] %vm447, %v1017
    %1036 = vst.msk [vmem:[#allocation3 + $0x31] sm:$0xff] %vm447, %v1018
    %1037 = vst.msk [vmem:[#allocation3 + $0x39] sm:$0xff] %vm447, %v1019
    %1038 = vst.msk [vmem:[#allocation3 + $0x42] sm:$0x1] %vm444, 0.0
    %1039 = vst.msk [vmem:[#allocation3 + $0x83] sm:$0x1] %vm444, 0.0
    %1040 = vst.msk [vmem:[#allocation3 + $0x43] sm:$0xff] %vm447, %v1020
    %1041 = vst.msk [vmem:[#allocation3 + $0x4b] sm:$0xff] %vm447, %v1021
    %1042 = vst.msk [vmem:[#allocation3 + $0x53] sm:$0xff] %vm447, %v1022
    %1043 = vst.msk [vmem:[#allocation3 + $0x5b] sm:$0xff] %vm447, %v1023
    %1044 = vst.msk [vmem:[#allocation3 + $0x63] sm:$0xff] %vm447, %v1024
    %1045 = vst.msk [vmem:[#allocation3 + $0x6b] sm:$0xff] %vm447, %v1025
    %1046 = vst.msk [vmem:[#allocation3 + $0x73] sm:$0xff] %vm447, %v1026
    %1047 = vst.msk [vmem:[#allocation3 + $0x7b] sm:$0xff] %vm447, %v1027
    %v1048 = vld [vmem:[#allocation3] ss:$2 sm:$0xff]
    %s1049 = scalar_lea.vmem [#allocation3], 16
    %v1050 = vld [vmem:[%s1049] ss:$2 sm:$0xff]
    %s1051 = scalar_lea.vmem [#allocation3], 32
    %v1052 = vld [vmem:[%s1051] ss:$2 sm:$0xff]
    %s1053 = scalar_lea.vmem [#allocation3], 48
    %v1054 = vld [vmem:[%s1053] ss:$2 sm:$0xff]
    %s1055 = scalar_lea.vmem [#allocation3], 1
    %v1056 = vld [vmem:[%s1055] ss:$2 sm:$0xff]
    %s1057 = scalar_lea.vmem [#allocation3], 17
    %v1058 = vld [vmem:[%s1057] ss:$2 sm:$0xff]
    %s1059 = scalar_lea.vmem [#allocation3], 33
    %v1060 = vld [vmem:[%s1059] ss:$2 sm:$0xff]
    %s1061 = scalar_lea.vmem [#allocation3], 49
    %v1062 = vld [vmem:[%s1061] ss:$2 sm:$0xff]
    %s1063 = scalar_lea.vmem [#allocation3], 2
    %v1064 = vld [vmem:[%s1063] ss:$2 sm:$0xff]
    %s1065 = scalar_lea.vmem [#allocation3], 18
    %v1066 = vld [vmem:[%s1065] ss:$2 sm:$0xff]
    %s1067 = scalar_lea.vmem [#allocation3], 34
    %v1068 = vld [vmem:[%s1067] ss:$2 sm:$0xff]
    %s1069 = scalar_lea.vmem [#allocation3], 50
    %v1070 = vld [vmem:[%s1069] ss:$2 sm:$0xff]
    %s1071 = scalar_lea.vmem [#allocation3], 3
    %v1072 = vld [vmem:[%s1071] ss:$2 sm:$0xff]
    %s1073 = scalar_lea.vmem [#allocation3], 19
    %v1074 = vld [vmem:[%s1073] ss:$2 sm:$0xff]
    %s1075 = scalar_lea.vmem [#allocation3], 35
    %v1076 = vld [vmem:[%s1075] ss:$2 sm:$0xff]
    %s1077 = scalar_lea.vmem [#allocation3], 51
    %v1078 = vld [vmem:[%s1077] ss:$2 sm:$0xff]
    %1083 = vrot.lane.b32.xlu0 %v1056, 32
    %v1084 = vpop.permute.xlu0 %1083
    %1085 = vrot.lane.b32.xlu0 %v1058, 32
    %v1086 = vpop.permute.xlu0 %1085
    %1087 = vrot.lane.b32.xlu0 %v1060, 32
    %v1088 = vpop.permute.xlu0 %1087
    %1089 = vrot.lane.b32.xlu0 %v1062, 32
    %v1090 = vpop.permute.xlu0 %1089
    %1099 = vrot.lane.b32.xlu0 %v1064, 64
    %v1100 = vpop.permute.xlu0 %1099
    %1101 = vrot.lane.b32.xlu0 %v1066, 64
    %v1102 = vpop.permute.xlu0 %1101
    %1103 = vrot.lane.b32.xlu0 %v1068, 64
    %v1104 = vpop.permute.xlu0 %1103
    %1105 = vrot.lane.b32.xlu0 %v1070, 64
    %v1106 = vpop.permute.xlu0 %1105
    %1115 = vrot.lane.b32.xlu0 %v1072, 96
    %v1116 = vpop.permute.xlu0 %1115
    %1117 = vrot.lane.b32.xlu0 %v1074, 96
    %v1118 = vpop.permute.xlu0 %1117
    %1119 = vrot.lane.b32.xlu0 %v1076, 96
    %v1120 = vpop.permute.xlu0 %1119
    %1121 = vrot.lane.b32.xlu0 %v1078, 96
    %v1122 = vpop.permute.xlu0 %1121
    %v1127 = vsel %vm447, %v1048, %v1084
    %v1128 = vsel %vm447, %v1050, %v1086
    %v1129 = vsel %vm447, %v1052, %v1088
    %v1130 = vsel %vm447, %v1054, %v1090
    %v1131 = vsel %vm649, %v1127, %v1100
    %v1132 = vsel %vm649, %v1128, %v1102
    %v1133 = vsel %vm649, %v1129, %v1104
    %v1134 = vsel %vm649, %v1130, %v1106
    %v1135 = vsel %vm658, %v1131, %v1116
    %v1136 = vsel %vm658, %v1132, %v1118
    %v1137 = vsel %vm658, %v1133, %v1120
    %v1138 = vsel %vm658, %v1134, %v1122
    %s1139 = scalar_lea.vmem [#allocation3], 66
    %v1140 = vld [vmem:[%s1139] ss:$2 sm:$0xff]
    %s1141 = scalar_lea.vmem [#allocation3], 82
    %v1142 = vld [vmem:[%s1141] ss:$2 sm:$0xff]
    %s1143 = scalar_lea.vmem [#allocation3], 98
    %v1144 = vld [vmem:[%s1143] ss:$2 sm:$0xff]
    %s1145 = scalar_lea.vmem [#allocation3], 114
    %v1146 = vld [vmem:[%s1145] ss:$2 sm:$0xff]
    %s1147 = scalar_lea.vmem [#allocation3], 67
    %v1148 = vld [vmem:[%s1147] ss:$2 sm:$0xff]
    %s1149 = scalar_lea.vmem [#allocation3], 83
    %v1150 = vld [vmem:[%s1149] ss:$2 sm:$0xff]
    %s1151 = scalar_lea.vmem [#allocation3], 99
    %v1152 = vld [vmem:[%s1151] ss:$2 sm:$0xff]
    %s1153 = scalar_lea.vmem [#allocation3], 115
    %v1154 = vld [vmem:[%s1153] ss:$2 sm:$0xff]
    %s1155 = scalar_lea.vmem [#allocation3], 68
    %v1156 = vld [vmem:[%s1155] ss:$2 sm:$0xff]
    %s1157 = scalar_lea.vmem [#allocation3], 84
    %v1158 = vld [vmem:[%s1157] ss:$2 sm:$0xff]
    %s1159 = scalar_lea.vmem [#allocation3], 100
    %v1160 = vld [vmem:[%s1159] ss:$2 sm:$0xff]
    %s1161 = scalar_lea.vmem [#allocation3], 116
    %v1162 = vld [vmem:[%s1161] ss:$2 sm:$0xff]
    %s1163 = scalar_lea.vmem [#allocation3], 69
    %v1164 = vld [vmem:[%s1163] ss:$2 sm:$0xff]
    %s1165 = scalar_lea.vmem [#allocation3], 85
    %v1166 = vld [vmem:[%s1165] ss:$2 sm:$0xff]
    %s1167 = scalar_lea.vmem [#allocation3], 101
    %v1168 = vld [vmem:[%s1167] ss:$2 sm:$0xff]
    %s1169 = scalar_lea.vmem [#allocation3], 117
    %v1170 = vld [vmem:[%s1169] ss:$2 sm:$0xff]
    %1175 = vrot.lane.b32.xlu0 %v1148, 32
    %v1176 = vpop.permute.xlu0 %1175
    %1177 = vrot.lane.b32.xlu0 %v1150, 32
    %v1178 = vpop.permute.xlu0 %1177
    %1179 = vrot.lane.b32.xlu0 %v1152, 32
    %v1180 = vpop.permute.xlu0 %1179
    %1181 = vrot.lane.b32.xlu0 %v1154, 32
    %v1182 = vpop.permute.xlu0 %1181
    %1191 = vrot.lane.b32.xlu0 %v1156, 64
    %v1192 = vpop.permute.xlu0 %1191
    %1193 = vrot.lane.b32.xlu0 %v1158, 64
    %v1194 = vpop.permute.xlu0 %1193
    %1195 = vrot.lane.b32.xlu0 %v1160, 64
    %v1196 = vpop.permute.xlu0 %1195
    %1197 = vrot.lane.b32.xlu0 %v1162, 64
    %v1198 = vpop.permute.xlu0 %1197
    %1207 = vrot.lane.b32.xlu0 %v1164, 96
    %v1208 = vpop.permute.xlu0 %1207
    %1209 = vrot.lane.b32.xlu0 %v1166, 96
    %v1210 = vpop.permute.xlu0 %1209
    %1211 = vrot.lane.b32.xlu0 %v1168, 96
    %v1212 = vpop.permute.xlu0 %1211
    %1213 = vrot.lane.b32.xlu0 %v1170, 96
    %v1214 = vpop.permute.xlu0 %1213
    %v1219 = vsel %vm447, %v1140, %v1176
    %v1220 = vsel %vm447, %v1142, %v1178
    %v1221 = vsel %vm447, %v1144, %v1180
    %v1222 = vsel %vm447, %v1146, %v1182
    %v1223 = vsel %vm649, %v1219, %v1192
    %v1224 = vsel %vm649, %v1220, %v1194
    %v1225 = vsel %vm649, %v1221, %v1196
    %v1226 = vsel %vm649, %v1222, %v1198
    %v1227 = vsel %vm658, %v1223, %v1208
    %v1228 = vsel %vm658, %v1224, %v1210
    %v1229 = vsel %vm658, %v1225, %v1212
    %v1230 = vsel %vm658, %v1226, %v1214
    %v1231 = vpack.c.bf16 %v1136, %v1135
    %v1232 = vpack.c.bf16 %v1138, %v1137
    %v1233 = vpack.c.bf16 %v1228, %v1227
    %v1234 = vpack.c.bf16 %v1230, %v1229
    %v1235 = vld [vmem:[%s7] sm:$0xf]
    %v1236 = vld [vmem:[%s7 + $0x4] sm:$0xf]
    %v1237 = vld [vmem:[%s7 + $0x8] sm:$0xf]
    %v1238 = vld [vmem:[%s7 + $0xc] sm:$0xf]
    %v1239 = vld [vmem:[%s7 + $0x10] sm:$0xf]
    %v1240 = vld [vmem:[%s7 + $0x14] sm:$0xf]
    %v1241 = vld [vmem:[%s7 + $0x18] sm:$0xf]
    %v1242 = vld [vmem:[%s7 + $0x1c] sm:$0xf]
    %v1243 = vld [vmem:[%s7 + $0x20] sm:$0xf]
    %v1244 = vld [vmem:[%s7 + $0x24] sm:$0xf]
    %v1245 = vld [vmem:[%s7 + $0x28] sm:$0xf]
    %v1246 = vld [vmem:[%s7 + $0x2c] sm:$0xf]
    %v1247 = vld [vmem:[%s7 + $0x30] sm:$0xf]
    %v1248 = vld [vmem:[%s7 + $0x34] sm:$0xf]
    %v1249 = vld [vmem:[%s7 + $0x38] sm:$0xf]
    %v1250 = vld [vmem:[%s7 + $0x3c] sm:$0xf]
    %v1267 = vunpack.c.l.b16 %v1235
    %v1268 = vunpack.c.l.b16 %v1236
    %v1269 = vunpack.c.l.b16 %v1237
    %v1270 = vunpack.c.l.b16 %v1238
    %v1271 = vunpack.c.l.b16 %v1239
    %v1272 = vunpack.c.l.b16 %v1240
    %v1273 = vunpack.c.l.b16 %v1241
    %v1274 = vunpack.c.l.b16 %v1242
    %v1275 = vunpack.c.l.b16 %v1243
    %v1276 = vunpack.c.l.b16 %v1244
    %v1277 = vunpack.c.l.b16 %v1245
    %v1278 = vunpack.c.l.b16 %v1246
    %v1279 = vunpack.c.l.b16 %v1247
    %v1280 = vunpack.c.l.b16 %v1248
    %v1281 = vunpack.c.l.b16 %v1249
    %v1282 = vunpack.c.l.b16 %v1250
    %v1283 = vpack.c.b16 %v1268, %v1267
    %v1284 = vpack.c.b16 %v1270, %v1269
    %v1285 = vpack.c.b16 %v1272, %v1271
    %v1286 = vpack.c.b16 %v1274, %v1273
    %v1287 = vpack.c.b16 %v1276, %v1275
    %v1288 = vpack.c.b16 %v1278, %v1277
    %v1289 = vpack.c.b16 %v1280, %v1279
    %v1290 = vpack.c.b16 %v1282, %v1281
    %1299 = vmatpush.bf16.msra.mxu0 %v1290
    %1300 = vmatpush.bf16.msra.mxu0 %v1289
    %1301 = vmatpush.bf16.msra.mxu0 %v1288
    %1302 = vmatpush.bf16.msra.mxu0 %v1287
    %1303 = vmatpush.bf16.msra.mxu0 %v1286
    %1304 = vmatpush.bf16.msra.mxu0 %v1285
    %1305 = vmatpush.bf16.msra.mxu0 %v1284
    %1306 = vmatpush.bf16.msra.mxu0 %v1283
    %1307 = vmatmul.bf16.gmra.mxu0 %v1231
    %v1308 = vpop.f32.mrf.mxu0
    %v1309 = vadd.f32 0.0, %v1308
    %v1310 = vpop.f32.mrf.mxu0
    %v1311 = vadd.f32 0.0, %v1310
    %1312 = vmatmul.bf16.gmra.mxu0 %v1232
    %v1313 = vpop.f32.mrf.mxu0
    %v1314 = vadd.f32 0.0, %v1313
    %v1315 = vpop.f32.mrf.mxu0
    %v1316 = vadd.f32 0.0, %v1315
    %1317 = vmatmul.bf16.gmra.mxu0 %v1233
    %v1318 = vpop.f32.mrf.mxu0
    %v1319 = vadd.f32 0.0, %v1318
    %v1320 = vpop.f32.mrf.mxu0
    %v1321 = vadd.f32 0.0, %v1320
    %1322 = vmatmul.bf16.gmra.mxu0 %v1234
    %v1323 = vpop.f32.mrf.mxu0
    %v1324 = vadd.f32 0.0, %v1323
    %v1325 = vpop.f32.mrf.mxu0
    %v1326 = vadd.f32 0.0, %v1325
    %1327 = vdwg.mxu0
    %v1328 = vld [vmem:[%s8] sm:$0x1]
    %v1330 = vperm.slane %v1328, 0
    %v1332 = vmul.f32 %v1309, %v1330
    %v1333 = vmul.f32 %v1311, %v1330
    %v1334 = vmul.f32 %v1314, %v1330
    %v1335 = vmul.f32 %v1316, %v1330
    %v1336 = vmul.f32 %v1319, %v1330
    %v1337 = vmul.f32 %v1321, %v1330
    %v1338 = vmul.f32 %v1324, %v1330
    %v1339 = vmul.f32 %v1326, %v1330
    %v1340 = vld [vmem:[%s9] sm:$0x1]
    %v1342 = vperm.slane %v1340, 0
    %v1344 = vadd.f32 %v1332, %v1342
    %v1345 = vadd.f32 %v1333, %v1342
    %v1346 = vadd.f32 %v1334, %v1342
    %v1347 = vadd.f32 %v1335, %v1342
    %v1348 = vadd.f32 %v1336, %v1342
    %v1349 = vadd.f32 %v1337, %v1342
    %v1350 = vadd.f32 %v1338, %v1342
    %v1351 = vadd.f32 %v1339, %v1342
    %v1352 = vpack.c.bf16 %v1345, %v1344
    %v1353 = vpack.c.bf16 %v1347, %v1346
    %v1354 = vpack.c.bf16 %v1349, %v1348
    %v1355 = vpack.c.bf16 %v1351, %v1350
    %v1356 = vld [vmem:[%s10] sm:$0xf]
    %v1357 = vld [vmem:[%s10 + $0x4] sm:$0xf]
    %v1358 = vld [vmem:[%s10 + $0x8] sm:$0xf]
    %v1359 = vld [vmem:[%s10 + $0xc] sm:$0xf]
    %v1360 = vld [vmem:[%s11] sm:$0xff]
    %v1361 = vld [vmem:[%s11 + $0x8] sm:$0xff]
    %v1362 = vld [vmem:[%s11 + $0x10] sm:$0xff]
    %v1363 = vld [vmem:[%s11 + $0x18] sm:$0xff]
    %v1364 = vld [vmem:[%s11 + $0x20] sm:$0xff]
    %v1365 = vld [vmem:[%s11 + $0x28] sm:$0xff]
    %v1366 = vld [vmem:[%s11 + $0x30] sm:$0xff]
    %v1367 = vld [vmem:[%s11 + $0x38] sm:$0xff]
    %v1372 = vunpack.c.l.b16 %v1356
    %v1373 = vunpack.c.l.b16 %v1357
    %v1374 = vunpack.c.l.b16 %v1358
    %v1375 = vunpack.c.l.b16 %v1359
    %v1376 = vpack.c.b16 %v1373, %v1372
    %v1377 = vpack.c.b16 %v1375, %v1374
    %v1381 = vsel %vm447, %v1352, 0
    %v1384 = vsel %vm447, %v1353, 0
    %v1387 = vsel %vm447, %v1354, 0
    %v1390 = vsel %vm447, %v1355, 0
    %1392 = vmatpush.bf16.msra.mxu0 0
    %1393 = vmatpush.bf16.msra.mxu0 0
    %1394 = vmatpush.bf16.msra.mxu0 0
    %1395 = vmatpush.bf16.msra.mxu0 0
    %1396 = vmatpush.bf16.msra.mxu0 0
    %1397 = vmatpush.bf16.msra.mxu0 0
    %1398 = vmatpush.bf16.msra.mxu0 %v1377
    %1399 = vmatpush.bf16.msra.mxu0 %v1376
    %1400 = vmatmul.bf16.gmra.mxu0 %v1381
    %v1401 = vpop.f32.mrf.mxu0
    %v1402 = vadd.f32 %v1360, %v1401
    %v1403 = vpop.f32.mrf.mxu0
    %v1404 = vadd.f32 %v1361, %v1403
    %1405 = vmatmul.bf16.gmra.mxu0 %v1384
    %v1406 = vpop.f32.mrf.mxu0
    %v1407 = vadd.f32 %v1362, %v1406
    %v1408 = vpop.f32.mrf.mxu0
    %v1409 = vadd.f32 %v1363, %v1408
    %1410 = vmatmul.bf16.gmra.mxu0 %v1387
    %v1411 = vpop.f32.mrf.mxu0
    %v1412 = vadd.f32 %v1364, %v1411
    %v1413 = vpop.f32.mrf.mxu0
    %v1414 = vadd.f32 %v1365, %v1413
    %1415 = vmatmul.bf16.gmra.mxu0 %v1390
    %v1416 = vpop.f32.mrf.mxu0
    %v1417 = vadd.f32 %v1366, %v1416
    %v1418 = vpop.f32.mrf.mxu0
    %v1419 = vadd.f32 %v1367, %v1418
    %1420 = vdwg.mxu0
    %v1421 = vld [vmem:[%s12] sm:$0xff]
    %v1422 = vld [vmem:[%s12 + $0x8] sm:$0xff]
    %v1423 = vld [vmem:[%s12 + $0x10] sm:$0xff]
    %v1424 = vld [vmem:[%s12 + $0x18] sm:$0xff]
    %v1425 = vld [vmem:[%s12 + $0x20] sm:$0xff]
    %v1426 = vld [vmem:[%s12 + $0x28] sm:$0xff]
    %v1427 = vld [vmem:[%s12 + $0x30] sm:$0xff]
    %v1428 = vld [vmem:[%s12 + $0x38] sm:$0xff]
    %v1429 = vpack.c.bf16 %v1404, %v1402
    %v1430 = vpack.c.bf16 %v1409, %v1407
    %v1431 = vpack.c.bf16 %v1414, %v1412
    %v1432 = vpack.c.bf16 %v1419, %v1417
    %v1433 = vld [vmem:[%s13] sm:$0xf]
    %v1434 = vld [vmem:[%s13 + $0x4] sm:$0xf]
    %v1435 = vld [vmem:[%s13 + $0x8] sm:$0xf]
    %v1436 = vld [vmem:[%s13 + $0xc] sm:$0xf]
    %v1437 = vld [vmem:[%s14] sm:$0x1]
    %v1439 = vperm.slane %v1437, 0
    %v1445 = vunpack.c.l.b16 %v1433
    %v1446 = vunpack.c.l.b16 %v1434
    %v1447 = vunpack.c.l.b16 %v1435
    %v1448 = vunpack.c.l.b16 %v1436
    %v1449 = vpack.c.b16 %v1446, %v1445
    %v1450 = vpack.c.b16 %v1448, %v1447
    %v1454 = vsel %vm447, %v1429, 0
    %v1457 = vsel %vm447, %v1430, 0
    %v1460 = vsel %vm447, %v1431, 0
    %v1463 = vsel %vm447, %v1432, 0
    %1465 = vmatpush.bf16.msra.mxu0 0
    %1466 = vmatpush.bf16.msra.mxu0 0
    %1467 = vmatpush.bf16.msra.mxu0 0
    %1468 = vmatpush.bf16.msra.mxu0 0
    %1469 = vmatpush.bf16.msra.mxu0 0
    %1470 = vmatpush.bf16.msra.mxu0 0
    %1471 = vmatpush.bf16.msra.mxu0 %v1450
    %1472 = vmatpush.bf16.msra.mxu0 %v1449
    %1473 = vmatmul.bf16.gmra.mxu0 %v1454
    %v1474 = vpop.f32.mrf.mxu0
    %v1475 = vadd.f32 %v1439, %v1474
    %v1476 = vpop.f32.mrf.mxu0
    %v1477 = vadd.f32 %v1439, %v1476
    %1478 = vmatmul.bf16.gmra.mxu0 %v1457
    %v1479 = vpop.f32.mrf.mxu0
    %v1480 = vadd.f32 %v1439, %v1479
    %v1481 = vpop.f32.mrf.mxu0
    %v1482 = vadd.f32 %v1439, %v1481
    %1483 = vmatmul.bf16.gmra.mxu0 %v1460
    %v1484 = vpop.f32.mrf.mxu0
    %v1485 = vadd.f32 %v1439, %v1484
    %v1486 = vpop.f32.mrf.mxu0
    %v1487 = vadd.f32 %v1439, %v1486
    %1488 = vmatmul.bf16.gmra.mxu0 %v1463
    %v1489 = vpop.f32.mrf.mxu0
    %v1490 = vadd.f32 %v1439, %v1489
    %v1491 = vpop.f32.mrf.mxu0
    %v1492 = vadd.f32 %v1439, %v1491
    %1493 = vdwg.mxu0
    %v1494 = vpack.c.bf16 %v1475, %v1475
    %v1495 = vpack.c.bf16 %v1477, %v1477
    %v1496 = vpack.c.bf16 %v1480, %v1480
    %v1497 = vpack.c.bf16 %v1482, %v1482
    %v1498 = vpack.c.bf16 %v1485, %v1485
    %v1499 = vpack.c.bf16 %v1487, %v1487
    %v1500 = vpack.c.bf16 %v1490, %v1490
    %v1501 = vpack.c.bf16 %v1492, %v1492
    %1510 = vrot.lane.b32.xlu0 %v1494, 120
    %v1511 = vpop.permute.xlu0 %1510
    %1512 = vrot.lane.b32.xlu0 %v1495, 120
    %v1513 = vpop.permute.xlu0 %1512
    %1514 = vrot.lane.b32.xlu0 %v1496, 120
    %v1515 = vpop.permute.xlu0 %1514
    %1516 = vrot.lane.b32.xlu0 %v1497, 120
    %v1517 = vpop.permute.xlu0 %1516
    %1518 = vrot.lane.b32.xlu0 %v1498, 120
    %v1519 = vpop.permute.xlu0 %1518
    %1520 = vrot.lane.b32.xlu0 %v1499, 120
    %v1521 = vpop.permute.xlu0 %1520
    %1522 = vrot.lane.b32.xlu0 %v1500, 120
    %v1523 = vpop.permute.xlu0 %1522
    %1524 = vrot.lane.b32.xlu0 %v1501, 120
    %v1525 = vpop.permute.xlu0 %1524
    %1526 = vrot.lane.b32.xlu0 %v1494, 112
    %v1527 = vpop.permute.xlu0 %1526
    %1528 = vrot.lane.b32.xlu0 %v1495, 112
    %v1529 = vpop.permute.xlu0 %1528
    %1530 = vrot.lane.b32.xlu0 %v1496, 112
    %v1531 = vpop.permute.xlu0 %1530
    %1532 = vrot.lane.b32.xlu0 %v1497, 112
    %v1533 = vpop.permute.xlu0 %1532
    %1534 = vrot.lane.b32.xlu0 %v1498, 112
    %v1535 = vpop.permute.xlu0 %1534
    %1536 = vrot.lane.b32.xlu0 %v1499, 112
    %v1537 = vpop.permute.xlu0 %1536
    %1538 = vrot.lane.b32.xlu0 %v1500, 112
    %v1539 = vpop.permute.xlu0 %1538
    %1540 = vrot.lane.b32.xlu0 %v1501, 112
    %v1541 = vpop.permute.xlu0 %1540
    %1542 = vrot.lane.b32.xlu0 %v1494, 104
    %v1543 = vpop.permute.xlu0 %1542
    %1544 = vrot.lane.b32.xlu0 %v1495, 104
    %v1545 = vpop.permute.xlu0 %1544
    %1546 = vrot.lane.b32.xlu0 %v1496, 104
    %v1547 = vpop.permute.xlu0 %1546
    %1548 = vrot.lane.b32.xlu0 %v1497, 104
    %v1549 = vpop.permute.xlu0 %1548
    %1550 = vrot.lane.b32.xlu0 %v1498, 104
    %v1551 = vpop.permute.xlu0 %1550
    %1552 = vrot.lane.b32.xlu0 %v1499, 104
    %v1553 = vpop.permute.xlu0 %1552
    %1554 = vrot.lane.b32.xlu0 %v1500, 104
    %v1555 = vpop.permute.xlu0 %1554
    %1556 = vrot.lane.b32.xlu0 %v1501, 104
    %v1557 = vpop.permute.xlu0 %1556
    %v1558 = vunpack.c.l.b16 %v1494
    %v1559 = vunpack.c.l.b16 %v1495
    %v1560 = vunpack.c.l.b16 %v1496
    %v1561 = vunpack.c.l.b16 %v1497
    %v1562 = vunpack.c.l.b16 %v1498
    %v1563 = vunpack.c.l.b16 %v1499
    %v1564 = vunpack.c.l.b16 %v1500
    %v1565 = vunpack.c.l.b16 %v1501
    %v1566 = vpack.c.b16 %v1559, %v1558
    %v1567 = vpack.c.b16 %v1561, %v1560
    %v1568 = vpack.c.b16 %v1563, %v1562
    %v1569 = vpack.c.b16 %v1565, %v1564
    %1570 = vrot.lane.b32.xlu0 %v1566, 96
    %v1571 = vpop.permute.xlu0 %1570
    %1572 = vrot.lane.b32.xlu0 %v1567, 96
    %v1573 = vpop.permute.xlu0 %1572
    %1574 = vrot.lane.b32.xlu0 %v1568, 96
    %v1575 = vpop.permute.xlu0 %1574
    %1576 = vrot.lane.b32.xlu0 %v1569, 96
    %v1577 = vpop.permute.xlu0 %1576
    %vm1578 = vcmask 64512
    %v1580 = vsel %vm1578, %v1566, 0
    %v1583 = vsel %vm1578, %v1567, 0
    %v1586 = vsel %vm1578, %v1568, 0
    %v1589 = vsel %vm1578, %v1569, 0
    %v1592 = vsel %vm1578, %v1571, 0
    %v1595 = vsel %vm1578, %v1573, 0
    %v1598 = vsel %vm1578, %v1575, 0
    %v1601 = vsel %vm1578, %v1577, 0
    %1603 = vmatpush.bf16.xpose.msra.mxu0 0
    %1604 = vmatpush.bf16.xpose.msra.mxu0 0
    %1605 = vmatpush.bf16.xpose.msra.mxu0 0
    %1606 = vmatpush.bf16.xpose.msra.mxu0 0
    %1607 = vmatpush.bf16.xpose.msra.mxu0 %v1601
    %1608 = vmatpush.bf16.xpose.msra.mxu0 %v1598
    %1609 = vmatpush.bf16.xpose.msra.mxu0 %v1595
    %1610 = vmatpush.bf16.xpose.msra.mxu0 %v1592
    %1611 = vmatmul.bf16.gmra.mxu0 %v1580
    %v1612 = vpop.f32.mrf.mxu0
    %v1613 = vadd.f32 %v1421, %v1612
    %v1614 = vpop.f32.mrf.mxu0
    %v1615 = vadd.f32 %v1422, %v1614
    %1616 = vmatmul.bf16.gmra.mxu0 %v1583
    %v1617 = vpop.f32.mrf.mxu0
    %v1618 = vadd.f32 %v1423, %v1617
    %v1619 = vpop.f32.mrf.mxu0
    %v1620 = vadd.f32 %v1424, %v1619
    %1621 = vmatmul.bf16.gmra.mxu0 %v1586
    %v1622 = vpop.f32.mrf.mxu0
    %v1623 = vadd.f32 %v1425, %v1622
    %v1624 = vpop.f32.mrf.mxu0
    %v1625 = vadd.f32 %v1426, %v1624
    %1626 = vmatmul.bf16.gmra.mxu0 %v1589
    %v1627 = vpop.f32.mrf.mxu0
    %v1628 = vadd.f32 %v1427, %v1627
    %v1629 = vpop.f32.mrf.mxu0
    %v1630 = vadd.f32 %v1428, %v1629
    %1631 = vdwg.mxu0
    %v1632 = vunpack.c.l.b16 %v1511
    %v1633 = vunpack.c.l.b16 %v1513
    %v1634 = vunpack.c.l.b16 %v1515
    %v1635 = vunpack.c.l.b16 %v1517
    %v1636 = vunpack.c.l.b16 %v1519
    %v1637 = vunpack.c.l.b16 %v1521
    %v1638 = vunpack.c.l.b16 %v1523
    %v1639 = vunpack.c.l.b16 %v1525
    %v1640 = vpack.c.b16 %v1633, %v1632
    %v1641 = vpack.c.b16 %v1635, %v1634
    %v1642 = vpack.c.b16 %v1637, %v1636
    %v1643 = vpack.c.b16 %v1639, %v1638
    %1644 = vrot.lane.b32.xlu0 %v1640, 96
    %v1645 = vpop.permute.xlu0 %1644
    %1646 = vrot.lane.b32.xlu0 %v1641, 96
    %v1647 = vpop.permute.xlu0 %1646
    %1648 = vrot.lane.b32.xlu0 %v1642, 96
    %v1649 = vpop.permute.xlu0 %1648
    %1650 = vrot.lane.b32.xlu0 %v1643, 96
    %v1651 = vpop.permute.xlu0 %1650
    %v1653 = vsel %vm1578, %v1640, 0
    %v1656 = vsel %vm1578, %v1641, 0
    %v1659 = vsel %vm1578, %v1642, 0
    %v1662 = vsel %vm1578, %v1643, 0
    %v1665 = vsel %vm1578, %v1645, 0
    %v1668 = vsel %vm1578, %v1647, 0
    %v1671 = vsel %vm1578, %v1649, 0
    %v1674 = vsel %vm1578, %v1651, 0
    %1676 = vmatpush.bf16.xpose.msra.mxu0 0
    %1677 = vmatpush.bf16.xpose.msra.mxu0 0
    %1678 = vmatpush.bf16.xpose.msra.mxu0 0
    %1679 = vmatpush.bf16.xpose.msra.mxu0 0
    %1680 = vmatpush.bf16.xpose.msra.mxu0 %v1674
    %1681 = vmatpush.bf16.xpose.msra.mxu0 %v1671
    %1682 = vmatpush.bf16.xpose.msra.mxu0 %v1668
    %1683 = vmatpush.bf16.xpose.msra.mxu0 %v1665
    %1684 = vmatmul.bf16.gmra.mxu0 %v1653
    %v1685 = vpop.f32.mrf.mxu0
    %v1686 = vadd.f32 %v1421, %v1685
    %v1687 = vpop.f32.mrf.mxu0
    %v1688 = vadd.f32 %v1422, %v1687
    %1689 = vmatmul.bf16.gmra.mxu0 %v1656
    %v1690 = vpop.f32.mrf.mxu0
    %v1691 = vadd.f32 %v1423, %v1690
    %v1692 = vpop.f32.mrf.mxu0
    %v1693 = vadd.f32 %v1424, %v1692
    %1694 = vmatmul.bf16.gmra.mxu0 %v1659
    %v1695 = vpop.f32.mrf.mxu0
    %v1696 = vadd.f32 %v1425, %v1695
    %v1697 = vpop.f32.mrf.mxu0
    %v1698 = vadd.f32 %v1426, %v1697
    %1699 = vmatmul.bf16.gmra.mxu0 %v1662
    %v1700 = vpop.f32.mrf.mxu0
    %v1701 = vadd.f32 %v1427, %v1700
    %v1702 = vpop.f32.mrf.mxu0
    %v1703 = vadd.f32 %v1428, %v1702
    %1704 = vdwg.mxu0
    %v1705 = vunpack.c.l.b16 %v1527
    %v1706 = vunpack.c.l.b16 %v1529
    %v1707 = vunpack.c.l.b16 %v1531
    %v1708 = vunpack.c.l.b16 %v1533
    %v1709 = vunpack.c.l.b16 %v1535
    %v1710 = vunpack.c.l.b16 %v1537
    %v1711 = vunpack.c.l.b16 %v1539
    %v1712 = vunpack.c.l.b16 %v1541
    %v1713 = vpack.c.b16 %v1706, %v1705
    %v1714 = vpack.c.b16 %v1708, %v1707
    %v1715 = vpack.c.b16 %v1710, %v1709
    %v1716 = vpack.c.b16 %v1712, %v1711
    %1717 = vrot.lane.b32.xlu0 %v1713, 96
    %v1718 = vpop.permute.xlu0 %1717
    %1719 = vrot.lane.b32.xlu0 %v1714, 96
    %v1720 = vpop.permute.xlu0 %1719
    %1721 = vrot.lane.b32.xlu0 %v1715, 96
    %v1722 = vpop.permute.xlu0 %1721
    %1723 = vrot.lane.b32.xlu0 %v1716, 96
    %v1724 = vpop.permute.xlu0 %1723
    %v1726 = vsel %vm1578, %v1713, 0
    %v1729 = vsel %vm1578, %v1714, 0
    %v1732 = vsel %vm1578, %v1715, 0
    %v1735 = vsel %vm1578, %v1716, 0
    %v1738 = vsel %vm1578, %v1718, 0
    %v1741 = vsel %vm1578, %v1720, 0
    %v1744 = vsel %vm1578, %v1722, 0
    %v1747 = vsel %vm1578, %v1724, 0
    %1749 = vmatpush.bf16.xpose.msra.mxu0 0
    %1750 = vmatpush.bf16.xpose.msra.mxu0 0
    %1751 = vmatpush.bf16.xpose.msra.mxu0 0
    %1752 = vmatpush.bf16.xpose.msra.mxu0 0
    %1753 = vmatpush.bf16.xpose.msra.mxu0 %v1747
    %1754 = vmatpush.bf16.xpose.msra.mxu0 %v1744
    %1755 = vmatpush.bf16.xpose.msra.mxu0 %v1741
    %1756 = vmatpush.bf16.xpose.msra.mxu0 %v1738
    %1757 = vmatmul.bf16.gmra.mxu0 %v1726
    %v1758 = vpop.f32.mrf.mxu0
    %v1759 = vadd.f32 %v1421, %v1758
    %v1760 = vpop.f32.mrf.mxu0
    %v1761 = vadd.f32 %v1422, %v1760
    %1762 = vmatmul.bf16.gmra.mxu0 %v1729
    %v1763 = vpop.f32.mrf.mxu0
    %v1764 = vadd.f32 %v1423, %v1763
    %v1765 = vpop.f32.mrf.mxu0
    %v1766 = vadd.f32 %v1424, %v1765
    %1767 = vmatmul.bf16.gmra.mxu0 %v1732
    %v1768 = vpop.f32.mrf.mxu0
    %v1769 = vadd.f32 %v1425, %v1768
    %v1770 = vpop.f32.mrf.mxu0
    %v1771 = vadd.f32 %v1426, %v1770
    %1772 = vmatmul.bf16.gmra.mxu0 %v1735
    %v1773 = vpop.f32.mrf.mxu0
    %v1774 = vadd.f32 %v1427, %v1773
    %v1775 = vpop.f32.mrf.mxu0
    %v1776 = vadd.f32 %v1428, %v1775
    %1777 = vdwg.mxu0
    %v1778 = vunpack.c.l.b16 %v1543
    %v1779 = vunpack.c.l.b16 %v1545
    %v1780 = vunpack.c.l.b16 %v1547
    %v1781 = vunpack.c.l.b16 %v1549
    %v1782 = vunpack.c.l.b16 %v1551
    %v1783 = vunpack.c.l.b16 %v1553
    %v1784 = vunpack.c.l.b16 %v1555
    %v1785 = vunpack.c.l.b16 %v1557
    %v1786 = vpack.c.b16 %v1779, %v1778
    %v1787 = vpack.c.b16 %v1781, %v1780
    %v1788 = vpack.c.b16 %v1783, %v1782
    %v1789 = vpack.c.b16 %v1785, %v1784
    %1790 = vrot.lane.b32.xlu0 %v1786, 96
    %v1791 = vpop.permute.xlu0 %1790
    %1792 = vrot.lane.b32.xlu0 %v1787, 96
    %v1793 = vpop.permute.xlu0 %1792
    %1794 = vrot.lane.b32.xlu0 %v1788, 96
    %v1795 = vpop.permute.xlu0 %1794
    %1796 = vrot.lane.b32.xlu0 %v1789, 96
    %v1797 = vpop.permute.xlu0 %1796
    %v1799 = vsel %vm1578, %v1786, 0
    %v1802 = vsel %vm1578, %v1787, 0
    %v1805 = vsel %vm1578, %v1788, 0
    %v1808 = vsel %vm1578, %v1789, 0
    %v1811 = vsel %vm1578, %v1791, 0
    %v1814 = vsel %vm1578, %v1793, 0
    %v1817 = vsel %vm1578, %v1795, 0
    %v1820 = vsel %vm1578, %v1797, 0
    %1822 = vmatpush.bf16.xpose.msra.mxu0 0
    %1823 = vmatpush.bf16.xpose.msra.mxu0 0
    %1824 = vmatpush.bf16.xpose.msra.mxu0 0
    %1825 = vmatpush.bf16.xpose.msra.mxu0 0
    %1826 = vmatpush.bf16.xpose.msra.mxu0 %v1820
    %1827 = vmatpush.bf16.xpose.msra.mxu0 %v1817
    %1828 = vmatpush.bf16.xpose.msra.mxu0 %v1814
    %1829 = vmatpush.bf16.xpose.msra.mxu0 %v1811
    %1830 = vmatmul.bf16.gmra.mxu0 %v1799
    %v1831 = vpop.f32.mrf.mxu0
    %v1832 = vadd.f32 %v1421, %v1831
    %v1833 = vpop.f32.mrf.mxu0
    %v1834 = vadd.f32 %v1422, %v1833
    %1835 = vmatmul.bf16.gmra.mxu0 %v1802
    %v1836 = vpop.f32.mrf.mxu0
    %v1837 = vadd.f32 %v1423, %v1836
    %v1838 = vpop.f32.mrf.mxu0
    %v1839 = vadd.f32 %v1424, %v1838
    %1840 = vmatmul.bf16.gmra.mxu0 %v1805
    %v1841 = vpop.f32.mrf.mxu0
    %v1842 = vadd.f32 %v1425, %v1841
    %v1843 = vpop.f32.mrf.mxu0
    %v1844 = vadd.f32 %v1426, %v1843
    %1845 = vmatmul.bf16.gmra.mxu0 %v1808
    %v1846 = vpop.f32.mrf.mxu0
    %v1847 = vadd.f32 %v1427, %v1846
    %v1848 = vpop.f32.mrf.mxu0
    %v1849 = vadd.f32 %v1428, %v1848
    %1850 = vdwg.mxu0
    %v1851 = vsel %vm649, %v1613, -inf
    %1852 = vmax.xlane.f32.xlu0 %v1851
    %v1853 = vpop.xlane.xlu0 %1852
    %v1854 = vsel %vm649, %v1615, -inf
    %1855 = vmax.xlane.f32.xlu0 %v1854
    %v1856 = vpop.xlane.xlu0 %1855
    %v1857 = vsel %vm649, %v1618, -inf
    %1858 = vmax.xlane.f32.xlu0 %v1857
    %v1859 = vpop.xlane.xlu0 %1858
    %v1860 = vsel %vm649, %v1620, -inf
    %1861 = vmax.xlane.f32.xlu0 %v1860
    %v1862 = vpop.xlane.xlu0 %1861
    %v1863 = vsel %vm649, %v1623, -inf
    %1864 = vmax.xlane.f32.xlu0 %v1863
    %v1865 = vpop.xlane.xlu0 %1864
    %v1866 = vsel %vm649, %v1625, -inf
    %1867 = vmax.xlane.f32.xlu0 %v1866
    %v1868 = vpop.xlane.xlu0 %1867
    %v1869 = vsel %vm649, %v1628, -inf
    %1870 = vmax.xlane.f32.xlu0 %v1869
    %v1871 = vpop.xlane.xlu0 %1870
    %v1872 = vsel %vm649, %v1630, -inf
    %1873 = vmax.xlane.f32.xlu0 %v1872
    %v1874 = vpop.xlane.xlu0 %1873
    %v1875 = vsel %vm649, %v1686, -inf
    %1876 = vmax.xlane.f32.xlu0 %v1875
    %v1877 = vpop.xlane.xlu0 %1876
    %v1878 = vsel %vm649, %v1688, -inf
    %1879 = vmax.xlane.f32.xlu0 %v1878
    %v1880 = vpop.xlane.xlu0 %1879
    %v1881 = vsel %vm649, %v1691, -inf
    %1882 = vmax.xlane.f32.xlu0 %v1881
    %v1883 = vpop.xlane.xlu0 %1882
    %v1884 = vsel %vm649, %v1693, -inf
    %1885 = vmax.xlane.f32.xlu0 %v1884
    %v1886 = vpop.xlane.xlu0 %1885
    %v1887 = vsel %vm649, %v1696, -inf
    %1888 = vmax.xlane.f32.xlu0 %v1887
    %v1889 = vpop.xlane.xlu0 %1888
    %v1890 = vsel %vm649, %v1698, -inf
    %1891 = vmax.xlane.f32.xlu0 %v1890
    %v1892 = vpop.xlane.xlu0 %1891
    %v1893 = vsel %vm649, %v1701, -inf
    %1894 = vmax.xlane.f32.xlu0 %v1893
    %v1895 = vpop.xlane.xlu0 %1894
    %v1896 = vsel %vm649, %v1703, -inf
    %1897 = vmax.xlane.f32.xlu0 %v1896
    %v1898 = vpop.xlane.xlu0 %1897
    %v1899 = vsel %vm649, %v1759, -inf
    %1900 = vmax.xlane.f32.xlu0 %v1899
    %v1901 = vpop.xlane.xlu0 %1900
    %v1902 = vsel %vm649, %v1761, -inf
    %1903 = vmax.xlane.f32.xlu0 %v1902
    %v1904 = vpop.xlane.xlu0 %1903
    %v1905 = vsel %vm649, %v1764, -inf
    %1906 = vmax.xlane.f32.xlu0 %v1905
    %v1907 = vpop.xlane.xlu0 %1906
    %v1908 = vsel %vm649, %v1766, -inf
    %1909 = vmax.xlane.f32.xlu0 %v1908
    %v1910 = vpop.xlane.xlu0 %1909
    %v1911 = vsel %vm649, %v1769, -inf
    %1912 = vmax.xlane.f32.xlu0 %v1911
    %v1913 = vpop.xlane.xlu0 %1912
    %v1914 = vsel %vm649, %v1771, -inf
    %1915 = vmax.xlane.f32.xlu0 %v1914
    %v1916 = vpop.xlane.xlu0 %1915
    %v1917 = vsel %vm649, %v1774, -inf
    %1918 = vmax.xlane.f32.xlu0 %v1917
    %v1919 = vpop.xlane.xlu0 %1918
    %v1920 = vsel %vm649, %v1776, -inf
    %1921 = vmax.xlane.f32.xlu0 %v1920
    %v1922 = vpop.xlane.xlu0 %1921
    %v1923 = vsel %vm649, %v1832, -inf
    %1924 = vmax.xlane.f32.xlu0 %v1923
    %v1925 = vpop.xlane.xlu0 %1924
    %v1926 = vsel %vm649, %v1834, -inf
    %1927 = vmax.xlane.f32.xlu0 %v1926
    %v1928 = vpop.xlane.xlu0 %1927
    %v1929 = vsel %vm649, %v1837, -inf
    %1930 = vmax.xlane.f32.xlu0 %v1929
    %v1931 = vpop.xlane.xlu0 %1930
    %v1932 = vsel %vm649, %v1839, -inf
    %1933 = vmax.xlane.f32.xlu0 %v1932
    %v1934 = vpop.xlane.xlu0 %1933
    %v1935 = vsel %vm649, %v1842, -inf
    %1936 = vmax.xlane.f32.xlu0 %v1935
    %v1937 = vpop.xlane.xlu0 %1936
    %v1938 = vsel %vm649, %v1844, -inf
    %1939 = vmax.xlane.f32.xlu0 %v1938
    %v1940 = vpop.xlane.xlu0 %1939
    %v1941 = vsel %vm649, %v1847, -inf
    %1942 = vmax.xlane.f32.xlu0 %v1941
    %v1943 = vpop.xlane.xlu0 %1942
    %v1944 = vsel %vm649, %v1849, -inf
    %1945 = vmax.xlane.f32.xlu0 %v1944
    %v1946 = vpop.xlane.xlu0 %1945
    %v1947 = vsub.f32 %v1613, %v1853
    %v1948 = vsub.f32 %v1615, %v1856
    %v1949 = vsub.f32 %v1618, %v1859
    %v1950 = vsub.f32 %v1620, %v1862
    %v1951 = vsub.f32 %v1623, %v1865
    %v1952 = vsub.f32 %v1625, %v1868
    %v1953 = vsub.f32 %v1628, %v1871
    %v1954 = vsub.f32 %v1630, %v1874
    %v1955 = vsub.f32 %v1686, %v1877
    %v1956 = vsub.f32 %v1688, %v1880
    %v1957 = vsub.f32 %v1691, %v1883
    %v1958 = vsub.f32 %v1693, %v1886
    %v1959 = vsub.f32 %v1696, %v1889
    %v1960 = vsub.f32 %v1698, %v1892
    %v1961 = vsub.f32 %v1701, %v1895
    %v1962 = vsub.f32 %v1703, %v1898
    %v1963 = vsub.f32 %v1759, %v1901
    %v1964 = vsub.f32 %v1761, %v1904
    %v1965 = vsub.f32 %v1764, %v1907
    %v1966 = vsub.f32 %v1766, %v1910
    %v1967 = vsub.f32 %v1769, %v1913
    %v1968 = vsub.f32 %v1771, %v1916
    %v1969 = vsub.f32 %v1774, %v1919
    %v1970 = vsub.f32 %v1776, %v1922
    %v1971 = vsub.f32 %v1832, %v1925
    %v1972 = vsub.f32 %v1834, %v1928
    %v1973 = vsub.f32 %v1837, %v1931
    %v1974 = vsub.f32 %v1839, %v1934
    %v1975 = vsub.f32 %v1842, %v1937
    %v1976 = vsub.f32 %v1844, %v1940
    %v1977 = vsub.f32 %v1847, %v1943
    %v1978 = vsub.f32 %v1849, %v1946
    %v1979 = vmul.f32 %v1947, 1.442695
    %v1980 = vpow.pop %v1979
    %v1981 = vmul.f32 %v1948, 1.442695
    %v1982 = vpow.pop %v1981
    %v1983 = vmul.f32 %v1949, 1.442695
    %v1984 = vpow.pop %v1983
    %v1985 = vmul.f32 %v1950, 1.442695
    %v1986 = vpow.pop %v1985
    %v1987 = vmul.f32 %v1951, 1.442695
    %v1988 = vpow.pop %v1987
    %v1989 = vmul.f32 %v1952, 1.442695
    %v1990 = vpow.pop %v1989
    %v1991 = vmul.f32 %v1953, 1.442695
    %v1992 = vpow.pop %v1991
    %v1993 = vmul.f32 %v1954, 1.442695
    %v1994 = vpow.pop %v1993
    %v1995 = vmul.f32 %v1955, 1.442695
    %v1996 = vpow.pop %v1995
    %v1997 = vmul.f32 %v1956, 1.442695
    %v1998 = vpow.pop %v1997
    %v1999 = vmul.f32 %v1957, 1.442695
    %v2000 = vpow.pop %v1999
    %v2001 = vmul.f32 %v1958, 1.442695
    %v2002 = vpow.pop %v2001
    %v2003 = vmul.f32 %v1959, 1.442695
    %v2004 = vpow.pop %v2003
    %v2005 = vmul.f32 %v1960, 1.442695
    %v2006 = vpow.pop %v2005
    %v2007 = vmul.f32 %v1961, 1.442695
    %v2008 = vpow.pop %v2007
    %v2009 = vmul.f32 %v1962, 1.442695
    %v2010 = vpow.pop %v2009
    %v2011 = vmul.f32 %v1963, 1.442695
    %v2012 = vpow.pop %v2011
    %v2013 = vmul.f32 %v1964, 1.442695
    %v2014 = vpow.pop %v2013
    %v2015 = vmul.f32 %v1965, 1.442695
    %v2016 = vpow.pop %v2015
    %v2017 = vmul.f32 %v1966, 1.442695
    %v2018 = vpow.pop %v2017
    %v2019 = vmul.f32 %v1967, 1.442695
    %v2020 = vpow.pop %v2019
    %v2021 = vmul.f32 %v1968, 1.442695
    %v2022 = vpow.pop %v2021
    %v2023 = vmul.f32 %v1969, 1.442695
    %v2024 = vpow.pop %v2023
    %v2025 = vmul.f32 %v1970, 1.442695
    %v2026 = vpow.pop %v2025
    %v2027 = vmul.f32 %v1971, 1.442695
    %v2028 = vpow.pop %v2027
    %v2029 = vmul.f32 %v1972, 1.442695
    %v2030 = vpow.pop %v2029
    %v2031 = vmul.f32 %v1973, 1.442695
    %v2032 = vpow.pop %v2031
    %v2033 = vmul.f32 %v1974, 1.442695
    %v2034 = vpow.pop %v2033
    %v2035 = vmul.f32 %v1975, 1.442695
    %v2036 = vpow.pop %v2035
    %v2037 = vmul.f32 %v1976, 1.442695
    %v2038 = vpow.pop %v2037
    %v2039 = vmul.f32 %v1977, 1.442695
    %v2040 = vpow.pop %v2039
    %v2041 = vmul.f32 %v1978, 1.442695
    %v2042 = vpow.pop %v2041
    %v2043 = vsel %vm649, %v1980, 0.0
    %2044 = vadd.xlane.f32.xlu0 %v2043
    %v2045 = vpop.xlane.xlu0 %2044
    %v2046 = vsel %vm649, %v1982, 0.0
    %2047 = vadd.xlane.f32.xlu0 %v2046
    %v2048 = vpop.xlane.xlu0 %2047
    %v2049 = vsel %vm649, %v1984, 0.0
    %2050 = vadd.xlane.f32.xlu0 %v2049
    %v2051 = vpop.xlane.xlu0 %2050
    %v2052 = vsel %vm649, %v1986, 0.0
    %2053 = vadd.xlane.f32.xlu0 %v2052
    %v2054 = vpop.xlane.xlu0 %2053
    %v2055 = vsel %vm649, %v1988, 0.0
    %2056 = vadd.xlane.f32.xlu0 %v2055
    %v2057 = vpop.xlane.xlu0 %2056
    %v2058 = vsel %vm649, %v1990, 0.0
    %2059 = vadd.xlane.f32.xlu0 %v2058
    %v2060 = vpop.xlane.xlu0 %2059
    %v2061 = vsel %vm649, %v1992, 0.0
    %2062 = vadd.xlane.f32.xlu0 %v2061
    %v2063 = vpop.xlane.xlu0 %2062
    %v2064 = vsel %vm649, %v1994, 0.0
    %2065 = vadd.xlane.f32.xlu0 %v2064
    %v2066 = vpop.xlane.xlu0 %2065
    %v2067 = vsel %vm649, %v1996, 0.0
    %2068 = vadd.xlane.f32.xlu0 %v2067
    %v2069 = vpop.xlane.xlu0 %2068
    %v2070 = vsel %vm649, %v1998, 0.0
    %2071 = vadd.xlane.f32.xlu0 %v2070
    %v2072 = vpop.xlane.xlu0 %2071
    %v2073 = vsel %vm649, %v2000, 0.0
    %2074 = vadd.xlane.f32.xlu0 %v2073
    %v2075 = vpop.xlane.xlu0 %2074
    %v2076 = vsel %vm649, %v2002, 0.0
    %2077 = vadd.xlane.f32.xlu0 %v2076
    %v2078 = vpop.xlane.xlu0 %2077
    %v2079 = vsel %vm649, %v2004, 0.0
    %2080 = vadd.xlane.f32.xlu0 %v2079
    %v2081 = vpop.xlane.xlu0 %2080
    %v2082 = vsel %vm649, %v2006, 0.0
    %2083 = vadd.xlane.f32.xlu0 %v2082
    %v2084 = vpop.xlane.xlu0 %2083
    %v2085 = vsel %vm649, %v2008, 0.0
    %2086 = vadd.xlane.f32.xlu0 %v2085
    %v2087 = vpop.xlane.xlu0 %2086
    %v2088 = vsel %vm649, %v2010, 0.0
    %2089 = vadd.xlane.f32.xlu0 %v2088
    %v2090 = vpop.xlane.xlu0 %2089
    %v2091 = vsel %vm649, %v2012, 0.0
    %2092 = vadd.xlane.f32.xlu0 %v2091
    %v2093 = vpop.xlane.xlu0 %2092
    %v2094 = vsel %vm649, %v2014, 0.0
    %2095 = vadd.xlane.f32.xlu0 %v2094
    %v2096 = vpop.xlane.xlu0 %2095
    %v2097 = vsel %vm649, %v2016, 0.0
    %2098 = vadd.xlane.f32.xlu0 %v2097
    %v2099 = vpop.xlane.xlu0 %2098
    %v2100 = vsel %vm649, %v2018, 0.0
    %2101 = vadd.xlane.f32.xlu0 %v2100
    %v2102 = vpop.xlane.xlu0 %2101
    %v2103 = vsel %vm649, %v2020, 0.0
    %2104 = vadd.xlane.f32.xlu0 %v2103
    %v2105 = vpop.xlane.xlu0 %2104
    %v2106 = vsel %vm649, %v2022, 0.0
    %2107 = vadd.xlane.f32.xlu0 %v2106
    %v2108 = vpop.xlane.xlu0 %2107
    %v2109 = vsel %vm649, %v2024, 0.0
    %2110 = vadd.xlane.f32.xlu0 %v2109
    %v2111 = vpop.xlane.xlu0 %2110
    %v2112 = vsel %vm649, %v2026, 0.0
    %2113 = vadd.xlane.f32.xlu0 %v2112
    %v2114 = vpop.xlane.xlu0 %2113
    %v2115 = vsel %vm649, %v2028, 0.0
    %2116 = vadd.xlane.f32.xlu0 %v2115
    %v2117 = vpop.xlane.xlu0 %2116
    %v2118 = vsel %vm649, %v2030, 0.0
    %2119 = vadd.xlane.f32.xlu0 %v2118
    %v2120 = vpop.xlane.xlu0 %2119
    %v2121 = vsel %vm649, %v2032, 0.0
    %2122 = vadd.xlane.f32.xlu0 %v2121
    %v2123 = vpop.xlane.xlu0 %2122
    %v2124 = vsel %vm649, %v2034, 0.0
    %2125 = vadd.xlane.f32.xlu0 %v2124
    %v2126 = vpop.xlane.xlu0 %2125
    %v2127 = vsel %vm649, %v2036, 0.0
    %2128 = vadd.xlane.f32.xlu0 %v2127
    %v2129 = vpop.xlane.xlu0 %2128
    %v2130 = vsel %vm649, %v2038, 0.0
    %2131 = vadd.xlane.f32.xlu0 %v2130
    %v2132 = vpop.xlane.xlu0 %2131
    %v2133 = vsel %vm649, %v2040, 0.0
    %2134 = vadd.xlane.f32.xlu0 %v2133
    %v2135 = vpop.xlane.xlu0 %2134
    %v2136 = vsel %vm649, %v2042, 0.0
    %2137 = vadd.xlane.f32.xlu0 %v2136
    %v2138 = vpop.xlane.xlu0 %2137
    %v2139 = vrcp.pop %v2045
    %v2140 = vrcp.pop %v2048
    %v2141 = vrcp.pop %v2051
    %v2142 = vrcp.pop %v2054
    %v2143 = vrcp.pop %v2057
    %v2144 = vrcp.pop %v2060
    %v2145 = vrcp.pop %v2063
    %v2146 = vrcp.pop %v2066
    %v2147 = vrcp.pop %v2069
    %v2148 = vrcp.pop %v2072
    %v2149 = vrcp.pop %v2075
    %v2150 = vrcp.pop %v2078
    %v2151 = vrcp.pop %v2081
    %v2152 = vrcp.pop %v2084
    %v2153 = vrcp.pop %v2087
    %v2154 = vrcp.pop %v2090
    %v2155 = vrcp.pop %v2093
    %v2156 = vrcp.pop %v2096
    %v2157 = vrcp.pop %v2099
    %v2158 = vrcp.pop %v2102
    %v2159 = vrcp.pop %v2105
    %v2160 = vrcp.pop %v2108
    %v2161 = vrcp.pop %v2111
    %v2162 = vrcp.pop %v2114
    %v2163 = vrcp.pop %v2117
    %v2164 = vrcp.pop %v2120
    %v2165 = vrcp.pop %v2123
    %v2166 = vrcp.pop %v2126
    %v2167 = vrcp.pop %v2129
    %v2168 = vrcp.pop %v2132
    %v2169 = vrcp.pop %v2135
    %v2170 = vrcp.pop %v2138
    %v2171 = vmul.f32 %v1980, %v2139
    %v2172 = vmul.f32 %v1982, %v2140
    %v2173 = vmul.f32 %v1984, %v2141
    %v2174 = vmul.f32 %v1986, %v2142
    %v2175 = vmul.f32 %v1988, %v2143
    %v2176 = vmul.f32 %v1990, %v2144
    %v2177 = vmul.f32 %v1992, %v2145
    %v2178 = vmul.f32 %v1994, %v2146
    %v2179 = vmul.f32 %v1996, %v2147
    %v2180 = vmul.f32 %v1998, %v2148
    %v2181 = vmul.f32 %v2000, %v2149
    %v2182 = vmul.f32 %v2002, %v2150
    %v2183 = vmul.f32 %v2004, %v2151
    %v2184 = vmul.f32 %v2006, %v2152
    %v2185 = vmul.f32 %v2008, %v2153
    %v2186 = vmul.f32 %v2010, %v2154
    %v2187 = vmul.f32 %v2012, %v2155
    %v2188 = vmul.f32 %v2014, %v2156
    %v2189 = vmul.f32 %v2016, %v2157
    %v2190 = vmul.f32 %v2018, %v2158
    %v2191 = vmul.f32 %v2020, %v2159
    %v2192 = vmul.f32 %v2022, %v2160
    %v2193 = vmul.f32 %v2024, %v2161
    %v2194 = vmul.f32 %v2026, %v2162
    %v2195 = vmul.f32 %v2028, %v2163
    %v2196 = vmul.f32 %v2030, %v2164
    %v2197 = vmul.f32 %v2032, %v2165
    %v2198 = vmul.f32 %v2034, %v2166
    %v2199 = vmul.f32 %v2036, %v2167
    %v2200 = vmul.f32 %v2038, %v2168
    %v2201 = vmul.f32 %v2040, %v2169
    %v2202 = vmul.f32 %v2042, %v2170
    %v2203 = vpack.c.bf16 %v2171, %v2171
    %v2204 = vpack.c.bf16 %v2172, %v2172
    %v2205 = vpack.c.bf16 %v2173, %v2173
    %v2206 = vpack.c.bf16 %v2174, %v2174
    %v2207 = vpack.c.bf16 %v2175, %v2175
    %v2208 = vpack.c.bf16 %v2176, %v2176
    %v2209 = vpack.c.bf16 %v2177, %v2177
    %v2210 = vpack.c.bf16 %v2178, %v2178
    %v2211 = vpack.c.bf16 %v2179, %v2179
    %v2212 = vpack.c.bf16 %v2180, %v2180
    %v2213 = vpack.c.bf16 %v2181, %v2181
    %v2214 = vpack.c.bf16 %v2182, %v2182
    %v2215 = vpack.c.bf16 %v2183, %v2183
    %v2216 = vpack.c.bf16 %v2184, %v2184
    %v2217 = vpack.c.bf16 %v2185, %v2185
    %v2218 = vpack.c.bf16 %v2186, %v2186
    %v2219 = vpack.c.bf16 %v2187, %v2187
    %v2220 = vpack.c.bf16 %v2188, %v2188
    %v2221 = vpack.c.bf16 %v2189, %v2189
    %v2222 = vpack.c.bf16 %v2190, %v2190
    %v2223 = vpack.c.bf16 %v2191, %v2191
    %v2224 = vpack.c.bf16 %v2192, %v2192
    %v2225 = vpack.c.bf16 %v2193, %v2193
    %v2226 = vpack.c.bf16 %v2194, %v2194
    %v2227 = vpack.c.bf16 %v2195, %v2195
    %v2228 = vpack.c.bf16 %v2196, %v2196
    %v2229 = vpack.c.bf16 %v2197, %v2197
    %v2230 = vpack.c.bf16 %v2198, %v2198
    %v2231 = vpack.c.bf16 %v2199, %v2199
    %v2232 = vpack.c.bf16 %v2200, %v2200
    %v2233 = vpack.c.bf16 %v2201, %v2201
    %v2234 = vpack.c.bf16 %v2202, %v2202
    %v2243 = vunpack.c.l.b16 %v2203
    %v2244 = vunpack.c.l.b16 %v2204
    %v2245 = vunpack.c.l.b16 %v2205
    %v2246 = vunpack.c.l.b16 %v2206
    %v2247 = vunpack.c.l.b16 %v2207
    %v2248 = vunpack.c.l.b16 %v2208
    %v2249 = vunpack.c.l.b16 %v2209
    %v2250 = vunpack.c.l.b16 %v2210
    %v2251 = vpack.c.b16 %v2244, %v2243
    %v2252 = vpack.c.b16 %v2246, %v2245
    %v2253 = vpack.c.b16 %v2248, %v2247
    %v2254 = vpack.c.b16 %v2250, %v2249
    %2255 = vrot.lane.b32.xlu0 %v1566, 64
    %v2256 = vpop.permute.xlu0 %2255
    %2257 = vrot.lane.b32.xlu0 %v1567, 64
    %v2258 = vpop.permute.xlu0 %2257
    %2259 = vrot.lane.b32.xlu0 %v1568, 64
    %v2260 = vpop.permute.xlu0 %2259
    %2261 = vrot.lane.b32.xlu0 %v1569, 64
    %v2262 = vpop.permute.xlu0 %2261
    %v2268 = vsel %vm649, %v2251, 0
    %v2271 = vsel %vm649, %v2252, 0
    %v2274 = vsel %vm649, %v2253, 0
    %v2277 = vsel %vm649, %v2254, 0
    %2279 = vmatpush.bf16.msra.mxu0 0
    %2280 = vmatpush.bf16.msra.mxu0 0
    %2281 = vmatpush.bf16.msra.mxu0 0
    %2282 = vmatpush.bf16.msra.mxu0 0
    %2283 = vmatpush.bf16.msra.mxu0 %v2262
    %2284 = vmatpush.bf16.msra.mxu0 %v2260
    %2285 = vmatpush.bf16.msra.mxu0 %v2258
    %2286 = vmatpush.bf16.msra.mxu0 %v2256
    %2287 = vmatmul.bf16.gmra.mxu0 %v2268
    %v2288 = vpop.f32.mrf.mxu0
    %v2289 = vadd.f32 0.0, %v2288
    %v2290 = vpop.f32.mrf.mxu0
    %v2291 = vadd.f32 0.0, %v2290
    %2292 = vmatmul.bf16.gmra.mxu0 %v2271
    %v2293 = vpop.f32.mrf.mxu0
    %v2294 = vadd.f32 0.0, %v2293
    %v2295 = vpop.f32.mrf.mxu0
    %v2296 = vadd.f32 0.0, %v2295
    %2297 = vmatmul.bf16.gmra.mxu0 %v2274
    %v2298 = vpop.f32.mrf.mxu0
    %v2299 = vadd.f32 0.0, %v2298
    %v2300 = vpop.f32.mrf.mxu0
    %v2301 = vadd.f32 0.0, %v2300
    %2302 = vmatmul.bf16.gmra.mxu0 %v2277
    %v2303 = vpop.f32.mrf.mxu0
    %v2304 = vadd.f32 0.0, %v2303
    %v2305 = vpop.f32.mrf.mxu0
    %v2306 = vadd.f32 0.0, %v2305
    %2307 = vdwg.mxu0
    %v2316 = vunpack.c.l.b16 %v2211
    %v2317 = vunpack.c.l.b16 %v2212
    %v2318 = vunpack.c.l.b16 %v2213
    %v2319 = vunpack.c.l.b16 %v2214
    %v2320 = vunpack.c.l.b16 %v2215
    %v2321 = vunpack.c.l.b16 %v2216
    %v2322 = vunpack.c.l.b16 %v2217
    %v2323 = vunpack.c.l.b16 %v2218
    %v2324 = vpack.c.b16 %v2317, %v2316
    %v2325 = vpack.c.b16 %v2319, %v2318
    %v2326 = vpack.c.b16 %v2321, %v2320
    %v2327 = vpack.c.b16 %v2323, %v2322
    %2328 = vrot.lane.b32.xlu0 %v1640, 64
    %v2329 = vpop.permute.xlu0 %2328
    %2330 = vrot.lane.b32.xlu0 %v1641, 64
    %v2331 = vpop.permute.xlu0 %2330
    %2332 = vrot.lane.b32.xlu0 %v1642, 64
    %v2333 = vpop.permute.xlu0 %2332
    %2334 = vrot.lane.b32.xlu0 %v1643, 64
    %v2335 = vpop.permute.xlu0 %2334
    %v2341 = vsel %vm649, %v2324, 0
    %v2344 = vsel %vm649, %v2325, 0
    %v2347 = vsel %vm649, %v2326, 0
    %v2350 = vsel %vm649, %v2327, 0
    %2352 = vmatpush.bf16.msra.mxu0 0
    %2353 = vmatpush.bf16.msra.mxu0 0
    %2354 = vmatpush.bf16.msra.mxu0 0
    %2355 = vmatpush.bf16.msra.mxu0 0
    %2356 = vmatpush.bf16.msra.mxu0 %v2335
    %2357 = vmatpush.bf16.msra.mxu0 %v2333
    %2358 = vmatpush.bf16.msra.mxu0 %v2331
    %2359 = vmatpush.bf16.msra.mxu0 %v2329
    %2360 = vmatmul.bf16.gmra.mxu0 %v2341
    %v2361 = vpop.f32.mrf.mxu0
    %v2362 = vadd.f32 0.0, %v2361
    %v2363 = vpop.f32.mrf.mxu0
    %v2364 = vadd.f32 0.0, %v2363
    %2365 = vmatmul.bf16.gmra.mxu0 %v2344
    %v2366 = vpop.f32.mrf.mxu0
    %v2367 = vadd.f32 0.0, %v2366
    %v2368 = vpop.f32.mrf.mxu0
    %v2369 = vadd.f32 0.0, %v2368
    %2370 = vmatmul.bf16.gmra.mxu0 %v2347
    %v2371 = vpop.f32.mrf.mxu0
    %v2372 = vadd.f32 0.0, %v2371
    %v2373 = vpop.f32.mrf.mxu0
    %v2374 = vadd.f32 0.0, %v2373
    %2375 = vmatmul.bf16.gmra.mxu0 %v2350
    %v2376 = vpop.f32.mrf.mxu0
    %v2377 = vadd.f32 0.0, %v2376
    %v2378 = vpop.f32.mrf.mxu0
    %v2379 = vadd.f32 0.0, %v2378
    %2380 = vdwg.mxu0
    %v2389 = vunpack.c.l.b16 %v2219
    %v2390 = vunpack.c.l.b16 %v2220
    %v2391 = vunpack.c.l.b16 %v2221
    %v2392 = vunpack.c.l.b16 %v2222
    %v2393 = vunpack.c.l.b16 %v2223
    %v2394 = vunpack.c.l.b16 %v2224
    %v2395 = vunpack.c.l.b16 %v2225
    %v2396 = vunpack.c.l.b16 %v2226
    %v2397 = vpack.c.b16 %v2390, %v2389
    %v2398 = vpack.c.b16 %v2392, %v2391
    %v2399 = vpack.c.b16 %v2394, %v2393
    %v2400 = vpack.c.b16 %v2396, %v2395
    %2401 = vrot.lane.b32.xlu0 %v1713, 64
    %v2402 = vpop.permute.xlu0 %2401
    %2403 = vrot.lane.b32.xlu0 %v1714, 64
    %v2404 = vpop.permute.xlu0 %2403
    %2405 = vrot.lane.b32.xlu0 %v1715, 64
    %v2406 = vpop.permute.xlu0 %2405
    %2407 = vrot.lane.b32.xlu0 %v1716, 64
    %v2408 = vpop.permute.xlu0 %2407
    %v2414 = vsel %vm649, %v2397, 0
    %v2417 = vsel %vm649, %v2398, 0
    %v2420 = vsel %vm649, %v2399, 0
    %v2423 = vsel %vm649, %v2400, 0
    %2425 = vmatpush.bf16.msra.mxu0 0
    %2426 = vmatpush.bf16.msra.mxu0 0
    %2427 = vmatpush.bf16.msra.mxu0 0
    %2428 = vmatpush.bf16.msra.mxu0 0
    %2429 = vmatpush.bf16.msra.mxu0 %v2408
    %2430 = vmatpush.bf16.msra.mxu0 %v2406
    %2431 = vmatpush.bf16.msra.mxu0 %v2404
    %2432 = vmatpush.bf16.msra.mxu0 %v2402
    %2433 = vmatmul.bf16.gmra.mxu0 %v2414
    %v2434 = vpop.f32.mrf.mxu0
    %v2435 = vadd.f32 0.0, %v2434
    %v2436 = vpop.f32.mrf.mxu0
    %v2437 = vadd.f32 0.0, %v2436
    %2438 = vmatmul.bf16.gmra.mxu0 %v2417
    %v2439 = vpop.f32.mrf.mxu0
    %v2440 = vadd.f32 0.0, %v2439
    %v2441 = vpop.f32.mrf.mxu0
    %v2442 = vadd.f32 0.0, %v2441
    %2443 = vmatmul.bf16.gmra.mxu0 %v2420
    %v2444 = vpop.f32.mrf.mxu0
    %v2445 = vadd.f32 0.0, %v2444
    %v2446 = vpop.f32.mrf.mxu0
    %v2447 = vadd.f32 0.0, %v2446
    %2448 = vmatmul.bf16.gmra.mxu0 %v2423
    %v2449 = vpop.f32.mrf.mxu0
    %v2450 = vadd.f32 0.0, %v2449
    %v2451 = vpop.f32.mrf.mxu0
    %v2452 = vadd.f32 0.0, %v2451
    %2453 = vdwg.mxu0
    %v2462 = vunpack.c.l.b16 %v2227
    %v2463 = vunpack.c.l.b16 %v2228
    %v2464 = vunpack.c.l.b16 %v2229
    %v2465 = vunpack.c.l.b16 %v2230
    %v2466 = vunpack.c.l.b16 %v2231
    %v2467 = vunpack.c.l.b16 %v2232
    %v2468 = vunpack.c.l.b16 %v2233
    %v2469 = vunpack.c.l.b16 %v2234
    %v2470 = vpack.c.b16 %v2463, %v2462
    %v2471 = vpack.c.b16 %v2465, %v2464
    %v2472 = vpack.c.b16 %v2467, %v2466
    %v2473 = vpack.c.b16 %v2469, %v2468
    %2474 = vrot.lane.b32.xlu0 %v1786, 64
    %v2475 = vpop.permute.xlu0 %2474
    %2476 = vrot.lane.b32.xlu0 %v1787, 64
    %v2477 = vpop.permute.xlu0 %2476
    %2478 = vrot.lane.b32.xlu0 %v1788, 64
    %v2479 = vpop.permute.xlu0 %2478
    %2480 = vrot.lane.b32.xlu0 %v1789, 64
    %v2481 = vpop.permute.xlu0 %2480
    %v2487 = vsel %vm649, %v2470, 0
    %v2490 = vsel %vm649, %v2471, 0
    %v2493 = vsel %vm649, %v2472, 0
    %v2496 = vsel %vm649, %v2473, 0
    %2498 = vmatpush.bf16.msra.mxu0 0
    %2499 = vmatpush.bf16.msra.mxu0 0
    %2500 = vmatpush.bf16.msra.mxu0 0
    %2501 = vmatpush.bf16.msra.mxu0 0
    %2502 = vmatpush.bf16.msra.mxu0 %v2481
    %2503 = vmatpush.bf16.msra.mxu0 %v2479
    %2504 = vmatpush.bf16.msra.mxu0 %v2477
    %2505 = vmatpush.bf16.msra.mxu0 %v2475
    %2506 = vmatmul.bf16.gmra.mxu0 %v2487
    %v2507 = vpop.f32.mrf.mxu0
    %v2508 = vadd.f32 0.0, %v2507
    %v2509 = vpop.f32.mrf.mxu0
    %v2510 = vadd.f32 0.0, %v2509
    %2511 = vmatmul.bf16.gmra.mxu0 %v2490
    %v2512 = vpop.f32.mrf.mxu0
    %v2513 = vadd.f32 0.0, %v2512
    %v2514 = vpop.f32.mrf.mxu0
    %v2515 = vadd.f32 0.0, %v2514
    %2516 = vmatmul.bf16.gmra.mxu0 %v2493
    %v2517 = vpop.f32.mrf.mxu0
    %v2518 = vadd.f32 0.0, %v2517
    %v2519 = vpop.f32.mrf.mxu0
    %v2520 = vadd.f32 0.0, %v2519
    %2521 = vmatmul.bf16.gmra.mxu0 %v2496
    %v2522 = vpop.f32.mrf.mxu0
    %v2523 = vadd.f32 0.0, %v2522
    %v2524 = vpop.f32.mrf.mxu0
    %v2525 = vadd.f32 0.0, %v2524
    %2526 = vdwg.mxu0
    %v2527 = vpack.c.bf16 %v2289, %v2289
    %v2528 = vpack.c.bf16 %v2291, %v2291
    %v2529 = vpack.c.bf16 %v2294, %v2294
    %v2530 = vpack.c.bf16 %v2296, %v2296
    %v2531 = vpack.c.bf16 %v2299, %v2299
    %v2532 = vpack.c.bf16 %v2301, %v2301
    %v2533 = vpack.c.bf16 %v2304, %v2304
    %v2534 = vpack.c.bf16 %v2306, %v2306
    %v2535 = vpack.c.bf16 %v2362, %v2362
    %v2536 = vpack.c.bf16 %v2364, %v2364
    %v2537 = vpack.c.bf16 %v2367, %v2367
    %v2538 = vpack.c.bf16 %v2369, %v2369
    %v2539 = vpack.c.bf16 %v2372, %v2372
    %v2540 = vpack.c.bf16 %v2374, %v2374
    %v2541 = vpack.c.bf16 %v2377, %v2377
    %v2542 = vpack.c.bf16 %v2379, %v2379
    %v2543 = vpack.c.bf16 %v2435, %v2435
    %v2544 = vpack.c.bf16 %v2437, %v2437
    %v2545 = vpack.c.bf16 %v2440, %v2440
    %v2546 = vpack.c.bf16 %v2442, %v2442
    %v2547 = vpack.c.bf16 %v2445, %v2445
    %v2548 = vpack.c.bf16 %v2447, %v2447
    %v2549 = vpack.c.bf16 %v2450, %v2450
    %v2550 = vpack.c.bf16 %v2452, %v2452
    %v2551 = vpack.c.bf16 %v2508, %v2508
    %v2552 = vpack.c.bf16 %v2510, %v2510
    %v2553 = vpack.c.bf16 %v2513, %v2513
    %v2554 = vpack.c.bf16 %v2515, %v2515
    %v2555 = vpack.c.bf16 %v2518, %v2518
    %v2556 = vpack.c.bf16 %v2520, %v2520
    %v2557 = vpack.c.bf16 %v2523, %v2523
    %v2558 = vpack.c.bf16 %v2525, %v2525
    %v2559 = vld [vmem:[%s15] sm:$0xf]
    %v2560 = vld [vmem:[%s15 + $0x4] sm:$0xf]
    %v2561 = vld [vmem:[%s15 + $0x8] sm:$0xf]
    %v2562 = vld [vmem:[%s15 + $0xc] sm:$0xf]
    %v2571 = vunpack.c.l.b16 %v2527
    %v2572 = vunpack.c.l.b16 %v2528
    %v2573 = vunpack.c.l.b16 %v2529
    %v2574 = vunpack.c.l.b16 %v2530
    %v2575 = vunpack.c.l.b16 %v2531
    %v2576 = vunpack.c.l.b16 %v2532
    %v2577 = vunpack.c.l.b16 %v2533
    %v2578 = vunpack.c.l.b16 %v2534
    %v2579 = vpack.c.b16 %v2572, %v2571
    %v2580 = vpack.c.b16 %v2574, %v2573
    %v2581 = vpack.c.b16 %v2576, %v2575
    %v2582 = vpack.c.b16 %v2578, %v2577
    %v2584 = vsel %vm1578, %v2579, 0
    %v2587 = vsel %vm1578, %v2580, 0
    %v2590 = vsel %vm1578, %v2581, 0
    %v2593 = vsel %vm1578, %v2582, 0
    %vm2595 = vcmask 1043456
    %v2597 = vsel %vm2595, %v2559, 0
    %2599 = vmatpush.bf16.msra.mxu0 0
    %2600 = vmatpush.bf16.msra.mxu0 0
    %2601 = vmatpush.bf16.msra.mxu0 0
    %2602 = vmatpush.bf16.msra.mxu0 0
    %2603 = vmatpush.bf16.msra.mxu0 0
    %2604 = vmatpush.bf16.msra.mxu0 0
    %2605 = vmatpush.bf16.msra.mxu0 0
    %2606 = vmatpush.bf16.msra.mxu0 %v2597
    %2607 = vmatmul.bf16.gmra.mxu0 %v2584
    %v2608 = vpop.f32.mrf.mxu0
    %v2609 = vadd.f32 0.0, %v2608
    %v2610 = vpop.f32.mrf.mxu0
    %v2611 = vadd.f32 0.0, %v2610
    %2612 = vmatmul.bf16.gmra.mxu0 %v2587
    %v2613 = vpop.f32.mrf.mxu0
    %v2614 = vadd.f32 0.0, %v2613
    %v2615 = vpop.f32.mrf.mxu0
    %v2616 = vadd.f32 0.0, %v2615
    %2617 = vmatmul.bf16.gmra.mxu0 %v2590
    %v2618 = vpop.f32.mrf.mxu0
    %v2619 = vadd.f32 0.0, %v2618
    %v2620 = vpop.f32.mrf.mxu0
    %v2621 = vadd.f32 0.0, %v2620
    %2622 = vmatmul.bf16.gmra.mxu0 %v2593
    %v2623 = vpop.f32.mrf.mxu0
    %v2624 = vadd.f32 0.0, %v2623
    %v2625 = vpop.f32.mrf.mxu0
    %v2626 = vadd.f32 0.0, %v2625
    %2627 = vdwg.mxu0
    %v2636 = vunpack.c.l.b16 %v2535
    %v2637 = vunpack.c.l.b16 %v2536
    %v2638 = vunpack.c.l.b16 %v2537
    %v2639 = vunpack.c.l.b16 %v2538
    %v2640 = vunpack.c.l.b16 %v2539
    %v2641 = vunpack.c.l.b16 %v2540
    %v2642 = vunpack.c.l.b16 %v2541
    %v2643 = vunpack.c.l.b16 %v2542
    %v2644 = vpack.c.b16 %v2637, %v2636
    %v2645 = vpack.c.b16 %v2639, %v2638
    %v2646 = vpack.c.b16 %v2641, %v2640
    %v2647 = vpack.c.b16 %v2643, %v2642
    %v2649 = vsel %vm1578, %v2644, 0
    %v2652 = vsel %vm1578, %v2645, 0
    %v2655 = vsel %vm1578, %v2646, 0
    %v2658 = vsel %vm1578, %v2647, 0
    %v2661 = vsel %vm2595, %v2560, 0
    %2663 = vmatpush.bf16.msra.mxu0 0
    %2664 = vmatpush.bf16.msra.mxu0 0
    %2665 = vmatpush.bf16.msra.mxu0 0
    %2666 = vmatpush.bf16.msra.mxu0 0
    %2667 = vmatpush.bf16.msra.mxu0 0
    %2668 = vmatpush.bf16.msra.mxu0 0
    %2669 = vmatpush.bf16.msra.mxu0 0
    %2670 = vmatpush.bf16.msra.mxu0 %v2661
    %2671 = vmatmul.bf16.gmra.mxu0 %v2649
    %v2672 = vpop.f32.mrf.mxu0
    %v2673 = vadd.f32 0.0, %v2672
    %v2674 = vpop.f32.mrf.mxu0
    %v2675 = vadd.f32 0.0, %v2674
    %2676 = vmatmul.bf16.gmra.mxu0 %v2652
    %v2677 = vpop.f32.mrf.mxu0
    %v2678 = vadd.f32 0.0, %v2677
    %v2679 = vpop.f32.mrf.mxu0
    %v2680 = vadd.f32 0.0, %v2679
    %2681 = vmatmul.bf16.gmra.mxu0 %v2655
    %v2682 = vpop.f32.mrf.mxu0
    %v2683 = vadd.f32 0.0, %v2682
    %v2684 = vpop.f32.mrf.mxu0
    %v2685 = vadd.f32 0.0, %v2684
    %2686 = vmatmul.bf16.gmra.mxu0 %v2658
    %v2687 = vpop.f32.mrf.mxu0
    %v2688 = vadd.f32 0.0, %v2687
    %v2689 = vpop.f32.mrf.mxu0
    %v2690 = vadd.f32 0.0, %v2689
    %2691 = vdwg.mxu0
    %v2700 = vunpack.c.l.b16 %v2543
    %v2701 = vunpack.c.l.b16 %v2544
    %v2702 = vunpack.c.l.b16 %v2545
    %v2703 = vunpack.c.l.b16 %v2546
    %v2704 = vunpack.c.l.b16 %v2547
    %v2705 = vunpack.c.l.b16 %v2548
    %v2706 = vunpack.c.l.b16 %v2549
    %v2707 = vunpack.c.l.b16 %v2550
    %v2708 = vpack.c.b16 %v2701, %v2700
    %v2709 = vpack.c.b16 %v2703, %v2702
    %v2710 = vpack.c.b16 %v2705, %v2704
    %v2711 = vpack.c.b16 %v2707, %v2706
    %v2713 = vsel %vm1578, %v2708, 0
    %v2716 = vsel %vm1578, %v2709, 0
    %v2719 = vsel %vm1578, %v2710, 0
    %v2722 = vsel %vm1578, %v2711, 0
    %v2725 = vsel %vm2595, %v2561, 0
    %2727 = vmatpush.bf16.msra.mxu0 0
    %2728 = vmatpush.bf16.msra.mxu0 0
    %2729 = vmatpush.bf16.msra.mxu0 0
    %2730 = vmatpush.bf16.msra.mxu0 0
    %2731 = vmatpush.bf16.msra.mxu0 0
    %2732 = vmatpush.bf16.msra.mxu0 0
    %2733 = vmatpush.bf16.msra.mxu0 0
    %2734 = vmatpush.bf16.msra.mxu0 %v2725
    %2735 = vmatmul.bf16.gmra.mxu0 %v2713
    %v2736 = vpop.f32.mrf.mxu0
    %v2737 = vadd.f32 0.0, %v2736
    %v2738 = vpop.f32.mrf.mxu0
    %v2739 = vadd.f32 0.0, %v2738
    %2740 = vmatmul.bf16.gmra.mxu0 %v2716
    %v2741 = vpop.f32.mrf.mxu0
    %v2742 = vadd.f32 0.0, %v2741
    %v2743 = vpop.f32.mrf.mxu0
    %v2744 = vadd.f32 0.0, %v2743
    %2745 = vmatmul.bf16.gmra.mxu0 %v2719
    %v2746 = vpop.f32.mrf.mxu0
    %v2747 = vadd.f32 0.0, %v2746
    %v2748 = vpop.f32.mrf.mxu0
    %v2749 = vadd.f32 0.0, %v2748
    %2750 = vmatmul.bf16.gmra.mxu0 %v2722
    %v2751 = vpop.f32.mrf.mxu0
    %v2752 = vadd.f32 0.0, %v2751
    %v2753 = vpop.f32.mrf.mxu0
    %v2754 = vadd.f32 0.0, %v2753
    %2755 = vdwg.mxu0
    %v2764 = vunpack.c.l.b16 %v2551
    %v2765 = vunpack.c.l.b16 %v2552
    %v2766 = vunpack.c.l.b16 %v2553
    %v2767 = vunpack.c.l.b16 %v2554
    %v2768 = vunpack.c.l.b16 %v2555
    %v2769 = vunpack.c.l.b16 %v2556
    %v2770 = vunpack.c.l.b16 %v2557
    %v2771 = vunpack.c.l.b16 %v2558
    %v2772 = vpack.c.b16 %v2765, %v2764
    %v2773 = vpack.c.b16 %v2767, %v2766
    %v2774 = vpack.c.b16 %v2769, %v2768
    %v2775 = vpack.c.b16 %v2771, %v2770
    %v2777 = vsel %vm1578, %v2772, 0
    %v2780 = vsel %vm1578, %v2773, 0
    %v2783 = vsel %vm1578, %v2774, 0
    %v2786 = vsel %vm1578, %v2775, 0
    %v2789 = vsel %vm2595, %v2562, 0
    %2791 = vmatpush.bf16.msra.mxu0 0
    %2792 = vmatpush.bf16.msra.mxu0 0
    %2793 = vmatpush.bf16.msra.mxu0 0
    %2794 = vmatpush.bf16.msra.mxu0 0
    %2795 = vmatpush.bf16.msra.mxu0 0
    %2796 = vmatpush.bf16.msra.mxu0 0
    %2797 = vmatpush.bf16.msra.mxu0 0
    %2798 = vmatpush.bf16.msra.mxu0 %v2789
    %2799 = vmatmul.bf16.gmra.mxu0 %v2777
    %v2800 = vpop.f32.mrf.mxu0
    %v2801 = vadd.f32 0.0, %v2800
    %v2802 = vpop.f32.mrf.mxu0
    %v2803 = vadd.f32 0.0, %v2802
    %2804 = vmatmul.bf16.gmra.mxu0 %v2780
    %v2805 = vpop.f32.mrf.mxu0
    %v2806 = vadd.f32 0.0, %v2805
    %v2807 = vpop.f32.mrf.mxu0
    %v2808 = vadd.f32 0.0, %v2807
    %2809 = vmatmul.bf16.gmra.mxu0 %v2783
    %v2810 = vpop.f32.mrf.mxu0
    %v2811 = vadd.f32 0.0, %v2810
    %v2812 = vpop.f32.mrf.mxu0
    %v2813 = vadd.f32 0.0, %v2812
    %2814 = vmatmul.bf16.gmra.mxu0 %v2786
    %v2815 = vpop.f32.mrf.mxu0
    %v2816 = vadd.f32 0.0, %v2815
    %v2817 = vpop.f32.mrf.mxu0
    %v2818 = vadd.f32 0.0, %v2817
    %2819 = vdwg.mxu0
    %v2820 = vsel %vm447, %v2609, 0.0
    %v2821 = vsel %vm447, %v2673, 0.0
    %v2822 = vadd.f32 %v2820, %v2821
    %v2823 = vsel %vm447, %v2737, 0.0
    %v2824 = vadd.f32 %v2822, %v2823
    %v2825 = vsel %vm447, %v2801, 0.0
    %v2826 = vadd.f32 %v2824, %v2825
    %v2827 = vsel %vm447, %v2611, 0.0
    %v2828 = vsel %vm447, %v2675, 0.0
    %v2829 = vadd.f32 %v2827, %v2828
    %v2830 = vsel %vm447, %v2739, 0.0
    %v2831 = vadd.f32 %v2829, %v2830
    %v2832 = vsel %vm447, %v2803, 0.0
    %v2833 = vadd.f32 %v2831, %v2832
    %v2834 = vsel %vm447, %v2614, 0.0
    %v2835 = vsel %vm447, %v2678, 0.0
    %v2836 = vadd.f32 %v2834, %v2835
    %v2837 = vsel %vm447, %v2742, 0.0
    %v2838 = vadd.f32 %v2836, %v2837
    %v2839 = vsel %vm447, %v2806, 0.0
    %v2840 = vadd.f32 %v2838, %v2839
    %v2841 = vsel %vm447, %v2616, 0.0
    %v2842 = vsel %vm447, %v2680, 0.0
    %v2843 = vadd.f32 %v2841, %v2842
    %v2844 = vsel %vm447, %v2744, 0.0
    %v2845 = vadd.f32 %v2843, %v2844
    %v2846 = vsel %vm447, %v2808, 0.0
    %v2847 = vadd.f32 %v2845, %v2846
    %v2848 = vsel %vm447, %v2619, 0.0
    %v2849 = vsel %vm447, %v2683, 0.0
    %v2850 = vadd.f32 %v2848, %v2849
    %v2851 = vsel %vm447, %v2747, 0.0
    %v2852 = vadd.f32 %v2850, %v2851
    %v2853 = vsel %vm447, %v2811, 0.0
    %v2854 = vadd.f32 %v2852, %v2853
    %v2855 = vsel %vm447, %v2621, 0.0
    %v2856 = vsel %vm447, %v2685, 0.0
    %v2857 = vadd.f32 %v2855, %v2856
    %v2858 = vsel %vm447, %v2749, 0.0
    %v2859 = vadd.f32 %v2857, %v2858
    %v2860 = vsel %vm447, %v2813, 0.0
    %v2861 = vadd.f32 %v2859, %v2860
    %v2862 = vsel %vm447, %v2624, 0.0
    %v2863 = vsel %vm447, %v2688, 0.0
    %v2864 = vadd.f32 %v2862, %v2863
    %v2865 = vsel %vm447, %v2752, 0.0
    %v2866 = vadd.f32 %v2864, %v2865
    %v2867 = vsel %vm447, %v2816, 0.0
    %v2868 = vadd.f32 %v2866, %v2867
    %v2869 = vsel %vm447, %v2626, 0.0
    %v2870 = vsel %vm447, %v2690, 0.0
    %v2871 = vadd.f32 %v2869, %v2870
    %v2872 = vsel %vm447, %v2754, 0.0
    %v2873 = vadd.f32 %v2871, %v2872
    %v2874 = vsel %vm447, %v2818, 0.0
    %v2875 = vadd.f32 %v2873, %v2874
    %v2876 = vld [vmem:[%s16] sm:$0x1]
    %v2878 = vperm.slane %v2876, 0
    %v2880 = vadd.f32 %v2826, %v2878
    %v2881 = vadd.f32 %v2833, %v2878
    %v2882 = vadd.f32 %v2840, %v2878
    %v2883 = vadd.f32 %v2847, %v2878
    %v2884 = vadd.f32 %v2854, %v2878
    %v2885 = vadd.f32 %v2861, %v2878
    %v2886 = vadd.f32 %v2868, %v2878
    %v2887 = vadd.f32 %v2875, %v2878
    %v2888 = vadd.f32 %v1402, %v2880
    %v2889 = vadd.f32 %v1404, %v2881
    %v2890 = vadd.f32 %v1407, %v2882
    %v2891 = vadd.f32 %v1409, %v2883
    %v2892 = vadd.f32 %v1412, %v2884
    %v2893 = vadd.f32 %v1414, %v2885
    %v2894 = vadd.f32 %v1417, %v2886
    %v2895 = vadd.f32 %v1419, %v2887
    %v2896 = vsel %vm447, %v2888, 0.0
    %2897 = vadd.xlane.f32.xlu0 %v2896
    %v2898 = vpop.xlane.xlu0 %2897
    %v2899 = vsel %vm447, %v2889, 0.0
    %2900 = vadd.xlane.f32.xlu0 %v2899
    %v2901 = vpop.xlane.xlu0 %2900
    %v2902 = vsel %vm447, %v2890, 0.0
    %2903 = vadd.xlane.f32.xlu0 %v2902
    %v2904 = vpop.xlane.xlu0 %2903
    %v2905 = vsel %vm447, %v2891, 0.0
    %2906 = vadd.xlane.f32.xlu0 %v2905
    %v2907 = vpop.xlane.xlu0 %2906
    %v2908 = vsel %vm447, %v2892, 0.0
    %2909 = vadd.xlane.f32.xlu0 %v2908
    %v2910 = vpop.xlane.xlu0 %2909
    %v2911 = vsel %vm447, %v2893, 0.0
    %2912 = vadd.xlane.f32.xlu0 %v2911
    %v2913 = vpop.xlane.xlu0 %2912
    %v2914 = vsel %vm447, %v2894, 0.0
    %2915 = vadd.xlane.f32.xlu0 %v2914
    %v2916 = vpop.xlane.xlu0 %2915
    %v2917 = vsel %vm447, %v2895, 0.0
    %2918 = vadd.xlane.f32.xlu0 %v2917
    %v2919 = vpop.xlane.xlu0 %2918
    %v2920 = vrcp.pop 32.0
    %v2921 = vmul.f32 32.0, %v2920
    %v2922 = vsub.f32 1.0, %v2921
    %v2923 = vmul.f32 %v2920, %v2922
    %v2924 = vadd.f32 %v2920, %v2923
    %vm2925 = vweird.f32 %v2920
    %v2926 = vsel %vm2925, %v2920, %v2924
    %v2927 = vmul.f32 %v2898, %v2926
    %v2928 = vmul.f32 %v2901, %v2926
    %v2929 = vmul.f32 %v2904, %v2926
    %v2930 = vmul.f32 %v2907, %v2926
    %v2931 = vmul.f32 %v2910, %v2926
    %v2932 = vmul.f32 %v2913, %v2926
    %v2933 = vmul.f32 %v2916, %v2926
    %v2934 = vmul.f32 %v2919, %v2926
    %v2935 = vsub.f32 %v2888, %v2927
    %v2936 = vsub.f32 %v2889, %v2928
    %v2937 = vsub.f32 %v2890, %v2929
    %v2938 = vsub.f32 %v2891, %v2930
    %v2939 = vsub.f32 %v2892, %v2931
    %v2940 = vsub.f32 %v2893, %v2932
    %v2941 = vsub.f32 %v2894, %v2933
    %v2942 = vsub.f32 %v2895, %v2934
    %v2943 = vmul.f32 %v2935, %v2935
    %v2944 = vmul.f32 %v2936, %v2936
    %v2945 = vmul.f32 %v2937, %v2937
    %v2946 = vmul.f32 %v2938, %v2938
    %v2947 = vmul.f32 %v2939, %v2939
    %v2948 = vmul.f32 %v2940, %v2940
    %v2949 = vmul.f32 %v2941, %v2941
    %v2950 = vmul.f32 %v2942, %v2942
    %v2951 = vsel %vm447, %v2943, 0.0
    %2952 = vadd.xlane.f32.xlu0 %v2951
    %v2953 = vpop.xlane.xlu0 %2952
    %v2954 = vsel %vm447, %v2944, 0.0
    %2955 = vadd.xlane.f32.xlu0 %v2954
    %v2956 = vpop.xlane.xlu0 %2955
    %v2957 = vsel %vm447, %v2945, 0.0
    %2958 = vadd.xlane.f32.xlu0 %v2957
    %v2959 = vpop.xlane.xlu0 %2958
    %v2960 = vsel %vm447, %v2946, 0.0
    %2961 = vadd.xlane.f32.xlu0 %v2960
    %v2962 = vpop.xlane.xlu0 %2961
    %v2963 = vsel %vm447, %v2947, 0.0
    %2964 = vadd.xlane.f32.xlu0 %v2963
    %v2965 = vpop.xlane.xlu0 %2964
    %v2966 = vsel %vm447, %v2948, 0.0
    %2967 = vadd.xlane.f32.xlu0 %v2966
    %v2968 = vpop.xlane.xlu0 %2967
    %v2969 = vsel %vm447, %v2949, 0.0
    %2970 = vadd.xlane.f32.xlu0 %v2969
    %v2971 = vpop.xlane.xlu0 %2970
    %v2972 = vsel %vm447, %v2950, 0.0
    %2973 = vadd.xlane.f32.xlu0 %v2972
    %v2974 = vpop.xlane.xlu0 %2973
    %v2975 = vmul.f32 %v2953, %v2926
    %v2976 = vmul.f32 %v2956, %v2926
    %v2977 = vmul.f32 %v2959, %v2926
    %v2978 = vmul.f32 %v2962, %v2926
    %v2979 = vmul.f32 %v2965, %v2926
    %v2980 = vmul.f32 %v2968, %v2926
    %v2981 = vmul.f32 %v2971, %v2926
    %v2982 = vmul.f32 %v2974, %v2926
    %v2983 = vadd.f32 %v2975, 1e-05
    %v2984 = vadd.f32 %v2976, 1e-05
    %v2985 = vadd.f32 %v2977, 1e-05
    %v2986 = vadd.f32 %v2978, 1e-05
    %v2987 = vadd.f32 %v2979, 1e-05
    %v2988 = vadd.f32 %v2980, 1e-05
    %v2989 = vadd.f32 %v2981, 1e-05
    %v2990 = vadd.f32 %v2982, 1e-05
    %v2991 = vrsqrt.pop %v2983
    %v2992 = vmul.f32 %v2991, %v2983
    %v2993 = vmul.f32 %v2992, %v2991
    %v2994 = vmul.f32 0.5, %v2993
    %v2995 = vsub.f32 1.5, %v2994
    %v2996 = vmul.f32 %v2991, %v2995
    %vm2997 = vweird.f32 %v2983
    %vm2998 = vweird.f32 %v2991
    %vm2999 = vmor %vm2997, %vm2998
    %v3000 = vsel %vm2999, %v2991, %v2996
    %v3001 = vrsqrt.pop %v2984
    %v3002 = vmul.f32 %v3001, %v2984
    %v3003 = vmul.f32 %v3002, %v3001
    %v3004 = vmul.f32 0.5, %v3003
    %v3005 = vsub.f32 1.5, %v3004
    %v3006 = vmul.f32 %v3001, %v3005
    %vm3007 = vweird.f32 %v2984
    %vm3008 = vweird.f32 %v3001
    %vm3009 = vmor %vm3007, %vm3008
    %v3010 = vsel %vm3009, %v3001, %v3006
    %v3011 = vrsqrt.pop %v2985
    %v3012 = vmul.f32 %v3011, %v2985
    %v3013 = vmul.f32 %v3012, %v3011
    %v3014 = vmul.f32 0.5, %v3013
    %v3015 = vsub.f32 1.5, %v3014
    %v3016 = vmul.f32 %v3011, %v3015
    %vm3017 = vweird.f32 %v2985
    %vm3018 = vweird.f32 %v3011
    %vm3019 = vmor %vm3017, %vm3018
    %v3020 = vsel %vm3019, %v3011, %v3016
    %v3021 = vrsqrt.pop %v2986
    %v3022 = vmul.f32 %v3021, %v2986
    %v3023 = vmul.f32 %v3022, %v3021
    %v3024 = vmul.f32 0.5, %v3023
    %v3025 = vsub.f32 1.5, %v3024
    %v3026 = vmul.f32 %v3021, %v3025
    %vm3027 = vweird.f32 %v2986
    %vm3028 = vweird.f32 %v3021
    %vm3029 = vmor %vm3027, %vm3028
    %v3030 = vsel %vm3029, %v3021, %v3026
    %v3031 = vrsqrt.pop %v2987
    %v3032 = vmul.f32 %v3031, %v2987
    %v3033 = vmul.f32 %v3032, %v3031
    %v3034 = vmul.f32 0.5, %v3033
    %v3035 = vsub.f32 1.5, %v3034
    %v3036 = vmul.f32 %v3031, %v3035
    %vm3037 = vweird.f32 %v2987
    %vm3038 = vweird.f32 %v3031
    %vm3039 = vmor %vm3037, %vm3038
    %v3040 = vsel %vm3039, %v3031, %v3036
    %v3041 = vrsqrt.pop %v2988
    %v3042 = vmul.f32 %v3041, %v2988
    %v3043 = vmul.f32 %v3042, %v3041
    %v3044 = vmul.f32 0.5, %v3043
    %v3045 = vsub.f32 1.5, %v3044
    %v3046 = vmul.f32 %v3041, %v3045
    %vm3047 = vweird.f32 %v2988
    %vm3048 = vweird.f32 %v3041
    %vm3049 = vmor %vm3047, %vm3048
    %v3050 = vsel %vm3049, %v3041, %v3046
    %v3051 = vrsqrt.pop %v2989
    %v3052 = vmul.f32 %v3051, %v2989
    %v3053 = vmul.f32 %v3052, %v3051
    %v3054 = vmul.f32 0.5, %v3053
    %v3055 = vsub.f32 1.5, %v3054
    %v3056 = vmul.f32 %v3051, %v3055
    %vm3057 = vweird.f32 %v2989
    %vm3058 = vweird.f32 %v3051
    %vm3059 = vmor %vm3057, %vm3058
    %v3060 = vsel %vm3059, %v3051, %v3056
    %v3061 = vrsqrt.pop %v2990
    %v3062 = vmul.f32 %v3061, %v2990
    %v3063 = vmul.f32 %v3062, %v3061
    %v3064 = vmul.f32 0.5, %v3063
    %v3065 = vsub.f32 1.5, %v3064
    %v3066 = vmul.f32 %v3061, %v3065
    %vm3067 = vweird.f32 %v2990
    %vm3068 = vweird.f32 %v3061
    %vm3069 = vmor %vm3067, %vm3068
    %v3070 = vsel %vm3069, %v3061, %v3066
    %v3071 = vmul.f32 %v2935, %v3000
    %v3072 = vmul.f32 %v2936, %v3010
    %v3073 = vmul.f32 %v2937, %v3020
    %v3074 = vmul.f32 %v2938, %v3030
    %v3075 = vmul.f32 %v2939, %v3040
    %v3076 = vmul.f32 %v2940, %v3050
    %v3077 = vmul.f32 %v2941, %v3060
    %v3078 = vmul.f32 %v2942, %v3070
    %v3079 = vld [vmem:[%s17] sm:$0x1]
    %v3081 = vperm.slane %v3079, 0
    %v3083 = vmul.f32 %v3071, %v3081
    %v3084 = vmul.f32 %v3072, %v3081
    %v3085 = vmul.f32 %v3073, %v3081
    %v3086 = vmul.f32 %v3074, %v3081
    %v3087 = vmul.f32 %v3075, %v3081
    %v3088 = vmul.f32 %v3076, %v3081
    %v3089 = vmul.f32 %v3077, %v3081
    %v3090 = vmul.f32 %v3078, %v3081
    %v3091 = vld [vmem:[%s18] sm:$0x1]
    %v3093 = vperm.slane %v3091, 0
    %v3095 = vadd.f32 %v3083, %v3093
    %v3096 = vadd.f32 %v3084, %v3093
    %v3097 = vadd.f32 %v3085, %v3093
    %v3098 = vadd.f32 %v3086, %v3093
    %v3099 = vadd.f32 %v3087, %v3093
    %v3100 = vadd.f32 %v3088, %v3093
    %v3101 = vadd.f32 %v3089, %v3093
    %v3102 = vadd.f32 %v3090, %v3093
    %v3103 = vpack.c.bf16 %v3096, %v3095
    %v3104 = vpack.c.bf16 %v3098, %v3097
    %v3105 = vpack.c.bf16 %v3100, %v3099
    %v3106 = vpack.c.bf16 %v3102, %v3101
    %v3107 = vld [vmem:[%s19] sm:$0xf]
    %v3108 = vld [vmem:[%s19 + $0x4] sm:$0xf]
    %v3109 = vld [vmem:[%s19 + $0x8] sm:$0xf]
    %v3110 = vld [vmem:[%s19 + $0xc] sm:$0xf]
    %v3111 = vld [vmem:[%s20] sm:$0x1]
    %v3113 = vperm.slane %v3111, 0
    %v3119 = vunpack.c.l.b16 %v3107
    %v3120 = vunpack.c.l.b16 %v3108
    %v3121 = vunpack.c.l.b16 %v3109
    %v3122 = vunpack.c.l.b16 %v3110
    %v3123 = vpack.c.b16 %v3120, %v3119
    %v3124 = vpack.c.b16 %v3122, %v3121
    %v3128 = vsel %vm447, %v3103, 0
    %v3131 = vsel %vm447, %v3104, 0
    %v3134 = vsel %vm447, %v3105, 0
    %v3137 = vsel %vm447, %v3106, 0
    %3139 = vmatpush.bf16.msra.mxu0 0
    %3140 = vmatpush.bf16.msra.mxu0 0
    %3141 = vmatpush.bf16.msra.mxu0 0
    %3142 = vmatpush.bf16.msra.mxu0 0
    %3143 = vmatpush.bf16.msra.mxu0 0
    %3144 = vmatpush.bf16.msra.mxu0 0
    %3145 = vmatpush.bf16.msra.mxu0 %v3124
    %3146 = vmatpush.bf16.msra.mxu0 %v3123
    %3147 = vmatmul.bf16.gmra.mxu0 %v3128
    %v3148 = vpop.f32.mrf.mxu0
    %v3149 = vadd.f32 %v3113, %v3148
    %v3150 = vpop.f32.mrf.mxu0
    %v3151 = vadd.f32 %v3113, %v3150
    %3152 = vmatmul.bf16.gmra.mxu0 %v3131
    %v3153 = vpop.f32.mrf.mxu0
    %v3154 = vadd.f32 %v3113, %v3153
    %v3155 = vpop.f32.mrf.mxu0
    %v3156 = vadd.f32 %v3113, %v3155
    %3157 = vmatmul.bf16.gmra.mxu0 %v3134
    %v3158 = vpop.f32.mrf.mxu0
    %v3159 = vadd.f32 %v3113, %v3158
    %v3160 = vpop.f32.mrf.mxu0
    %v3161 = vadd.f32 %v3113, %v3160
    %3162 = vmatmul.bf16.gmra.mxu0 %v3137
    %v3163 = vpop.f32.mrf.mxu0
    %v3164 = vadd.f32 %v3113, %v3163
    %v3165 = vpop.f32.mrf.mxu0
    %v3166 = vadd.f32 %v3113, %v3165
    %3167 = vdwg.mxu0
    %v3168 = vmax.f32 %v3149, 0.0
    %v3169 = vmax.f32 %v3151, 0.0
    %v3170 = vmax.f32 %v3154, 0.0
    %v3171 = vmax.f32 %v3156, 0.0
    %v3172 = vmax.f32 %v3159, 0.0
    %v3173 = vmax.f32 %v3161, 0.0
    %v3174 = vmax.f32 %v3164, 0.0
    %v3175 = vmax.f32 %v3166, 0.0
    %v3176 = vpack.c.bf16 %v3169, %v3168
    %v3177 = vpack.c.bf16 %v3171, %v3170
    %v3178 = vpack.c.bf16 %v3173, %v3172
    %v3179 = vpack.c.bf16 %v3175, %v3174
    %v3180 = vld [vmem:[%s21] sm:$0xf]
    %v3181 = vld [vmem:[%s21 + $0x4] sm:$0xf]
    %v3182 = vld [vmem:[%s21 + $0x8] sm:$0xf]
    %v3183 = vld [vmem:[%s21 + $0xc] sm:$0xf]
    %v3184 = vld [vmem:[%s21 + $0x10] sm:$0xf]
    %v3185 = vld [vmem:[%s21 + $0x14] sm:$0xf]
    %v3186 = vld [vmem:[%s21 + $0x18] sm:$0xf]
    %v3187 = vld [vmem:[%s21 + $0x1c] sm:$0xf]
    %v3188 = vld [vmem:[%s21 + $0x20] sm:$0xf]
    %v3189 = vld [vmem:[%s21 + $0x24] sm:$0xf]
    %v3190 = vld [vmem:[%s21 + $0x28] sm:$0xf]
    %v3191 = vld [vmem:[%s21 + $0x2c] sm:$0xf]
    %v3192 = vld [vmem:[%s21 + $0x30] sm:$0xf]
    %v3193 = vld [vmem:[%s21 + $0x34] sm:$0xf]
    %v3194 = vld [vmem:[%s21 + $0x38] sm:$0xf]
    %v3195 = vld [vmem:[%s21 + $0x3c] sm:$0xf]
    %v3196 = vld [vmem:[%s22] sm:$0x1]
    %v3198 = vperm.slane %v3196, 0
    %v3216 = vunpack.c.l.b16 %v3180
    %v3217 = vunpack.c.l.b16 %v3181
    %v3218 = vunpack.c.l.b16 %v3182
    %v3219 = vunpack.c.l.b16 %v3183
    %v3220 = vunpack.c.l.b16 %v3184
    %v3221 = vunpack.c.l.b16 %v3185
    %v3222 = vunpack.c.l.b16 %v3186
    %v3223 = vunpack.c.l.b16 %v3187
    %v3224 = vunpack.c.l.b16 %v3188
    %v3225 = vunpack.c.l.b16 %v3189
    %v3226 = vunpack.c.l.b16 %v3190
    %v3227 = vunpack.c.l.b16 %v3191
    %v3228 = vunpack.c.l.b16 %v3192
    %v3229 = vunpack.c.l.b16 %v3193
    %v3230 = vunpack.c.l.b16 %v3194
    %v3231 = vunpack.c.l.b16 %v3195
    %v3232 = vpack.c.b16 %v3217, %v3216
    %v3233 = vpack.c.b16 %v3219, %v3218
    %v3234 = vpack.c.b16 %v3221, %v3220
    %v3235 = vpack.c.b16 %v3223, %v3222
    %v3236 = vpack.c.b16 %v3225, %v3224
    %v3237 = vpack.c.b16 %v3227, %v3226
    %v3238 = vpack.c.b16 %v3229, %v3228
    %v3239 = vpack.c.b16 %v3231, %v3230
    %3248 = vmatpush.bf16.msra.mxu0 %v3239
    %3249 = vmatpush.bf16.msra.mxu0 %v3238
    %3250 = vmatpush.bf16.msra.mxu0 %v3237
    %3251 = vmatpush.bf16.msra.mxu0 %v3236
    %3252 = vmatpush.bf16.msra.mxu0 %v3235
    %3253 = vmatpush.bf16.msra.mxu0 %v3234
    %3254 = vmatpush.bf16.msra.mxu0 %v3233
    %3255 = vmatpush.bf16.msra.mxu0 %v3232
    %3256 = vmatmul.bf16.gmra.mxu0 %v3176
    %v3257 = vpop.f32.mrf.mxu0
    %v3258 = vadd.f32 %v3198, %v3257
    %v3259 = vpop.f32.mrf.mxu0
    %v3260 = vadd.f32 %v3198, %v3259
    %3261 = vmatmul.bf16.gmra.mxu0 %v3177
    %v3262 = vpop.f32.mrf.mxu0
    %v3263 = vadd.f32 %v3198, %v3262
    %v3264 = vpop.f32.mrf.mxu0
    %v3265 = vadd.f32 %v3198, %v3264
    %3266 = vmatmul.bf16.gmra.mxu0 %v3178
    %v3267 = vpop.f32.mrf.mxu0
    %v3268 = vadd.f32 %v3198, %v3267
    %v3269 = vpop.f32.mrf.mxu0
    %v3270 = vadd.f32 %v3198, %v3269
    %3271 = vmatmul.bf16.gmra.mxu0 %v3179
    %v3272 = vpop.f32.mrf.mxu0
    %v3273 = vadd.f32 %v3198, %v3272
    %v3274 = vpop.f32.mrf.mxu0
    %v3275 = vadd.f32 %v3198, %v3274
    %3276 = vdwg.mxu0
    %v3277 = vadd.f32 %v3095, %v3258
    %v3278 = vadd.f32 %v3096, %v3260
    %v3279 = vadd.f32 %v3097, %v3263
    %v3280 = vadd.f32 %v3098, %v3265
    %v3281 = vadd.f32 %v3099, %v3268
    %v3282 = vadd.f32 %v3100, %v3270
    %v3283 = vadd.f32 %v3101, %v3273
    %v3284 = vadd.f32 %v3102, %v3275
    %v3285 = vsel %vm447, %v3277, 0.0
    %3286 = vadd.xlane.f32.xlu0 %v3285
    %v3287 = vpop.xlane.xlu0 %3286
    %v3288 = vsel %vm447, %v3278, 0.0
    %3289 = vadd.xlane.f32.xlu0 %v3288
    %v3290 = vpop.xlane.xlu0 %3289
    %v3291 = vsel %vm447, %v3279, 0.0
    %3292 = vadd.xlane.f32.xlu0 %v3291
    %v3293 = vpop.xlane.xlu0 %3292
    %v3294 = vsel %vm447, %v3280, 0.0
    %3295 = vadd.xlane.f32.xlu0 %v3294
    %v3296 = vpop.xlane.xlu0 %3295
    %v3297 = vsel %vm447, %v3281, 0.0
    %3298 = vadd.xlane.f32.xlu0 %v3297
    %v3299 = vpop.xlane.xlu0 %3298
    %v3300 = vsel %vm447, %v3282, 0.0
    %3301 = vadd.xlane.f32.xlu0 %v3300
    %v3302 = vpop.xlane.xlu0 %3301
    %v3303 = vsel %vm447, %v3283, 0.0
    %3304 = vadd.xlane.f32.xlu0 %v3303
    %v3305 = vpop.xlane.xlu0 %3304
    %v3306 = vsel %vm447, %v3284, 0.0
    %3307 = vadd.xlane.f32.xlu0 %v3306
    %v3308 = vpop.xlane.xlu0 %3307
    %v3309 = vmul.f32 %v3287, %v2926
    %v3310 = vmul.f32 %v3290, %v2926
    %v3311 = vmul.f32 %v3293, %v2926
    %v3312 = vmul.f32 %v3296, %v2926
    %v3313 = vmul.f32 %v3299, %v2926
    %v3314 = vmul.f32 %v3302, %v2926
    %v3315 = vmul.f32 %v3305, %v2926
    %v3316 = vmul.f32 %v3308, %v2926
    %v3317 = vsub.f32 %v3277, %v3309
    %v3318 = vsub.f32 %v3278, %v3310
    %v3319 = vsub.f32 %v3279, %v3311
    %v3320 = vsub.f32 %v3280, %v3312
    %v3321 = vsub.f32 %v3281, %v3313
    %v3322 = vsub.f32 %v3282, %v3314
    %v3323 = vsub.f32 %v3283, %v3315
    %v3324 = vsub.f32 %v3284, %v3316
    %v3325 = vmul.f32 %v3317, %v3317
    %v3326 = vmul.f32 %v3318, %v3318
    %v3327 = vmul.f32 %v3319, %v3319
    %v3328 = vmul.f32 %v3320, %v3320
    %v3329 = vmul.f32 %v3321, %v3321
    %v3330 = vmul.f32 %v3322, %v3322
    %v3331 = vmul.f32 %v3323, %v3323
    %v3332 = vmul.f32 %v3324, %v3324
    %v3333 = vsel %vm447, %v3325, 0.0
    %3334 = vadd.xlane.f32.xlu0 %v3333
    %v3335 = vpop.xlane.xlu0 %3334
    %v3336 = vsel %vm447, %v3326, 0.0
    %3337 = vadd.xlane.f32.xlu0 %v3336
    %v3338 = vpop.xlane.xlu0 %3337
    %v3339 = vsel %vm447, %v3327, 0.0
    %3340 = vadd.xlane.f32.xlu0 %v3339
    %v3341 = vpop.xlane.xlu0 %3340
    %v3342 = vsel %vm447, %v3328, 0.0
    %3343 = vadd.xlane.f32.xlu0 %v3342
    %v3344 = vpop.xlane.xlu0 %3343
    %v3345 = vsel %vm447, %v3329, 0.0
    %3346 = vadd.xlane.f32.xlu0 %v3345
    %v3347 = vpop.xlane.xlu0 %3346
    %v3348 = vsel %vm447, %v3330, 0.0
    %3349 = vadd.xlane.f32.xlu0 %v3348
    %v3350 = vpop.xlane.xlu0 %3349
    %v3351 = vsel %vm447, %v3331, 0.0
    %3352 = vadd.xlane.f32.xlu0 %v3351
    %v3353 = vpop.xlane.xlu0 %3352
    %v3354 = vsel %vm447, %v3332, 0.0
    %3355 = vadd.xlane.f32.xlu0 %v3354
    %v3356 = vpop.xlane.xlu0 %3355
    %v3357 = vmul.f32 %v3335, %v2926
    %v3358 = vmul.f32 %v3338, %v2926
    %v3359 = vmul.f32 %v3341, %v2926
    %v3360 = vmul.f32 %v3344, %v2926
    %v3361 = vmul.f32 %v3347, %v2926
    %v3362 = vmul.f32 %v3350, %v2926
    %v3363 = vmul.f32 %v3353, %v2926
    %v3364 = vmul.f32 %v3356, %v2926
    %v3365 = vadd.f32 %v3357, 1e-05
    %v3366 = vadd.f32 %v3358, 1e-05
    %v3367 = vadd.f32 %v3359, 1e-05
    %v3368 = vadd.f32 %v3360, 1e-05
    %v3369 = vadd.f32 %v3361, 1e-05
    %v3370 = vadd.f32 %v3362, 1e-05
    %v3371 = vadd.f32 %v3363, 1e-05
    %v3372 = vadd.f32 %v3364, 1e-05
    %v3373 = vrsqrt.pop %v3365
    %v3374 = vmul.f32 %v3373, %v3365
    %v3375 = vmul.f32 %v3374, %v3373
    %v3376 = vmul.f32 0.5, %v3375
    %v3377 = vsub.f32 1.5, %v3376
    %v3378 = vmul.f32 %v3373, %v3377
    %vm3379 = vweird.f32 %v3365
    %vm3380 = vweird.f32 %v3373
    %vm3381 = vmor %vm3379, %vm3380
    %v3382 = vsel %vm3381, %v3373, %v3378
    %v3383 = vrsqrt.pop %v3366
    %v3384 = vmul.f32 %v3383, %v3366
    %v3385 = vmul.f32 %v3384, %v3383
    %v3386 = vmul.f32 0.5, %v3385
    %v3387 = vsub.f32 1.5, %v3386
    %v3388 = vmul.f32 %v3383, %v3387
    %vm3389 = vweird.f32 %v3366
    %vm3390 = vweird.f32 %v3383
    %vm3391 = vmor %vm3389, %vm3390
    %v3392 = vsel %vm3391, %v3383, %v3388
    %v3393 = vrsqrt.pop %v3367
    %v3394 = vmul.f32 %v3393, %v3367
    %v3395 = vmul.f32 %v3394, %v3393
    %v3396 = vmul.f32 0.5, %v3395
    %v3397 = vsub.f32 1.5, %v3396
    %v3398 = vmul.f32 %v3393, %v3397
    %vm3399 = vweird.f32 %v3367
    %vm3400 = vweird.f32 %v3393
    %vm3401 = vmor %vm3399, %vm3400
    %v3402 = vsel %vm3401, %v3393, %v3398
    %v3403 = vrsqrt.pop %v3368
    %v3404 = vmul.f32 %v3403, %v3368
    %v3405 = vmul.f32 %v3404, %v3403
    %v3406 = vmul.f32 0.5, %v3405
    %v3407 = vsub.f32 1.5, %v3406
    %v3408 = vmul.f32 %v3403, %v3407
    %vm3409 = vweird.f32 %v3368
    %vm3410 = vweird.f32 %v3403
    %vm3411 = vmor %vm3409, %vm3410
    %v3412 = vsel %vm3411, %v3403, %v3408
    %v3413 = vrsqrt.pop %v3369
    %v3414 = vmul.f32 %v3413, %v3369
    %v3415 = vmul.f32 %v3414, %v3413
    %v3416 = vmul.f32 0.5, %v3415
    %v3417 = vsub.f32 1.5, %v3416
    %v3418 = vmul.f32 %v3413, %v3417
    %vm3419 = vweird.f32 %v3369
    %vm3420 = vweird.f32 %v3413
    %vm3421 = vmor %vm3419, %vm3420
    %v3422 = vsel %vm3421, %v3413, %v3418
    %v3423 = vrsqrt.pop %v3370
    %v3424 = vmul.f32 %v3423, %v3370
    %v3425 = vmul.f32 %v3424, %v3423
    %v3426 = vmul.f32 0.5, %v3425
    %v3427 = vsub.f32 1.5, %v3426
    %v3428 = vmul.f32 %v3423, %v3427
    %vm3429 = vweird.f32 %v3370
    %vm3430 = vweird.f32 %v3423
    %vm3431 = vmor %vm3429, %vm3430
    %v3432 = vsel %vm3431, %v3423, %v3428
    %v3433 = vrsqrt.pop %v3371
    %v3434 = vmul.f32 %v3433, %v3371
    %v3435 = vmul.f32 %v3434, %v3433
    %v3436 = vmul.f32 0.5, %v3435
    %v3437 = vsub.f32 1.5, %v3436
    %v3438 = vmul.f32 %v3433, %v3437
    %vm3439 = vweird.f32 %v3371
    %vm3440 = vweird.f32 %v3433
    %vm3441 = vmor %vm3439, %vm3440
    %v3442 = vsel %vm3441, %v3433, %v3438
    %v3443 = vrsqrt.pop %v3372
    %v3444 = vmul.f32 %v3443, %v3372
    %v3445 = vmul.f32 %v3444, %v3443
    %v3446 = vmul.f32 0.5, %v3445
    %v3447 = vsub.f32 1.5, %v3446
    %v3448 = vmul.f32 %v3443, %v3447
    %vm3449 = vweird.f32 %v3372
    %vm3450 = vweird.f32 %v3443
    %vm3451 = vmor %vm3449, %vm3450
    %v3452 = vsel %vm3451, %v3443, %v3448
    %v3453 = vmul.f32 %v3317, %v3382
    %v3454 = vmul.f32 %v3318, %v3392
    %v3455 = vmul.f32 %v3319, %v3402
    %v3456 = vmul.f32 %v3320, %v3412
    %v3457 = vmul.f32 %v3321, %v3422
    %v3458 = vmul.f32 %v3322, %v3432
    %v3459 = vmul.f32 %v3323, %v3442
    %v3460 = vmul.f32 %v3324, %v3452
    %v3461 = vld [vmem:[%s23] sm:$0x1]
    %v3463 = vperm.slane %v3461, 0
    %v3465 = vmul.f32 %v3453, %v3463
    %v3466 = vmul.f32 %v3454, %v3463
    %v3467 = vmul.f32 %v3455, %v3463
    %v3468 = vmul.f32 %v3456, %v3463
    %v3469 = vmul.f32 %v3457, %v3463
    %v3470 = vmul.f32 %v3458, %v3463
    %v3471 = vmul.f32 %v3459, %v3463
    %v3472 = vmul.f32 %v3460, %v3463
    %v3473 = vld [vmem:[%s24] sm:$0x1]
    %v3475 = vperm.slane %v3473, 0
    %v3477 = vadd.f32 %v3465, %v3475
    %v3478 = vadd.f32 %v3466, %v3475
    %v3479 = vadd.f32 %v3467, %v3475
    %v3480 = vadd.f32 %v3468, %v3475
    %v3481 = vadd.f32 %v3469, %v3475
    %v3482 = vadd.f32 %v3470, %v3475
    %v3483 = vadd.f32 %v3471, %v3475
    %v3484 = vadd.f32 %v3472, %v3475
    %v3485 = vpack.c.bf16 %v3478, %v3477
    %v3486 = vpack.c.bf16 %v3480, %v3479
    %v3487 = vpack.c.bf16 %v3482, %v3481
    %v3488 = vpack.c.bf16 %v3484, %v3483
    %s3489 = scalar_lea.vmem %s13, 16
    %v3490 = vld [vmem:[%s3489] sm:$0xf]
    %v3491 = vld [vmem:[%s3489 + $0x4] sm:$0xf]
    %v3492 = vld [vmem:[%s3489 + $0x8] sm:$0xf]
    %v3493 = vld [vmem:[%s3489 + $0xc] sm:$0xf]
    %s3494 = scalar_lea.vmem %s14, 1
    %v3495 = vld [vmem:[%s3494] sm:$0x1]
    %v3497 = vperm.slane %v3495, 0
    %v3503 = vunpack.c.l.b16 %v3490
    %v3504 = vunpack.c.l.b16 %v3491
    %v3505 = vunpack.c.l.b16 %v3492
    %v3506 = vunpack.c.l.b16 %v3493
    %v3507 = vpack.c.b16 %v3504, %v3503
    %v3508 = vpack.c.b16 %v3506, %v3505
    %v3512 = vsel %vm447, %v3485, 0
    %v3515 = vsel %vm447, %v3486, 0
    %v3518 = vsel %vm447, %v3487, 0
    %v3521 = vsel %vm447, %v3488, 0
    %3523 = vmatpush.bf16.msra.mxu0 0
    %3524 = vmatpush.bf16.msra.mxu0 0
    %3525 = vmatpush.bf16.msra.mxu0 0
    %3526 = vmatpush.bf16.msra.mxu0 0
    %3527 = vmatpush.bf16.msra.mxu0 0
    %3528 = vmatpush.bf16.msra.mxu0 0
    %3529 = vmatpush.bf16.msra.mxu0 %v3508
    %3530 = vmatpush.bf16.msra.mxu0 %v3507
    %3531 = vmatmul.bf16.gmra.mxu0 %v3512
    %v3532 = vpop.f32.mrf.mxu0
    %v3533 = vadd.f32 %v3497, %v3532
    %v3534 = vpop.f32.mrf.mxu0
    %v3535 = vadd.f32 %v3497, %v3534
    %3536 = vmatmul.bf16.gmra.mxu0 %v3515
    %v3537 = vpop.f32.mrf.mxu0
    %v3538 = vadd.f32 %v3497, %v3537
    %v3539 = vpop.f32.mrf.mxu0
    %v3540 = vadd.f32 %v3497, %v3539
    %3541 = vmatmul.bf16.gmra.mxu0 %v3518
    %v3542 = vpop.f32.mrf.mxu0
    %v3543 = vadd.f32 %v3497, %v3542
    %v3544 = vpop.f32.mrf.mxu0
    %v3545 = vadd.f32 %v3497, %v3544
    %3546 = vmatmul.bf16.gmra.mxu0 %v3521
    %v3547 = vpop.f32.mrf.mxu0
    %v3548 = vadd.f32 %v3497, %v3547
    %v3549 = vpop.f32.mrf.mxu0
    %v3550 = vadd.f32 %v3497, %v3549
    %3551 = vdwg.mxu0
    %v3552 = vpack.c.bf16 %v3533, %v3533
    %v3553 = vpack.c.bf16 %v3535, %v3535
    %v3554 = vpack.c.bf16 %v3538, %v3538
    %v3555 = vpack.c.bf16 %v3540, %v3540
    %v3556 = vpack.c.bf16 %v3543, %v3543
    %v3557 = vpack.c.bf16 %v3545, %v3545
    %v3558 = vpack.c.bf16 %v3548, %v3548
    %v3559 = vpack.c.bf16 %v3550, %v3550
    %3568 = vrot.lane.b32.xlu0 %v3552, 120
    %v3569 = vpop.permute.xlu0 %3568
    %3570 = vrot.lane.b32.xlu0 %v3553, 120
    %v3571 = vpop.permute.xlu0 %3570
    %3572 = vrot.lane.b32.xlu0 %v3554, 120
    %v3573 = vpop.permute.xlu0 %3572
    %3574 = vrot.lane.b32.xlu0 %v3555, 120
    %v3575 = vpop.permute.xlu0 %3574
    %3576 = vrot.lane.b32.xlu0 %v3556, 120
    %v3577 = vpop.permute.xlu0 %3576
    %3578 = vrot.lane.b32.xlu0 %v3557, 120
    %v3579 = vpop.permute.xlu0 %3578
    %3580 = vrot.lane.b32.xlu0 %v3558, 120
    %v3581 = vpop.permute.xlu0 %3580
    %3582 = vrot.lane.b32.xlu0 %v3559, 120
    %v3583 = vpop.permute.xlu0 %3582
    %3584 = vrot.lane.b32.xlu0 %v3552, 112
    %v3585 = vpop.permute.xlu0 %3584
    %3586 = vrot.lane.b32.xlu0 %v3553, 112
    %v3587 = vpop.permute.xlu0 %3586
    %3588 = vrot.lane.b32.xlu0 %v3554, 112
    %v3589 = vpop.permute.xlu0 %3588
    %3590 = vrot.lane.b32.xlu0 %v3555, 112
    %v3591 = vpop.permute.xlu0 %3590
    %3592 = vrot.lane.b32.xlu0 %v3556, 112
    %v3593 = vpop.permute.xlu0 %3592
    %3594 = vrot.lane.b32.xlu0 %v3557, 112
    %v3595 = vpop.permute.xlu0 %3594
    %3596 = vrot.lane.b32.xlu0 %v3558, 112
    %v3597 = vpop.permute.xlu0 %3596
    %3598 = vrot.lane.b32.xlu0 %v3559, 112
    %v3599 = vpop.permute.xlu0 %3598
    %3600 = vrot.lane.b32.xlu0 %v3552, 104
    %v3601 = vpop.permute.xlu0 %3600
    %3602 = vrot.lane.b32.xlu0 %v3553, 104
    %v3603 = vpop.permute.xlu0 %3602
    %3604 = vrot.lane.b32.xlu0 %v3554, 104
    %v3605 = vpop.permute.xlu0 %3604
    %3606 = vrot.lane.b32.xlu0 %v3555, 104
    %v3607 = vpop.permute.xlu0 %3606
    %3608 = vrot.lane.b32.xlu0 %v3556, 104
    %v3609 = vpop.permute.xlu0 %3608
    %3610 = vrot.lane.b32.xlu0 %v3557, 104
    %v3611 = vpop.permute.xlu0 %3610
    %3612 = vrot.lane.b32.xlu0 %v3558, 104
    %v3613 = vpop.permute.xlu0 %3612
    %3614 = vrot.lane.b32.xlu0 %v3559, 104
    %v3615 = vpop.permute.xlu0 %3614
    %v3616 = vunpack.c.l.b16 %v3552
    %v3617 = vunpack.c.l.b16 %v3553
    %v3618 = vunpack.c.l.b16 %v3554
    %v3619 = vunpack.c.l.b16 %v3555
    %v3620 = vunpack.c.l.b16 %v3556
    %v3621 = vunpack.c.l.b16 %v3557
    %v3622 = vunpack.c.l.b16 %v3558
    %v3623 = vunpack.c.l.b16 %v3559
    %v3624 = vpack.c.b16 %v3617, %v3616
    %v3625 = vpack.c.b16 %v3619, %v3618
    %v3626 = vpack.c.b16 %v3621, %v3620
    %v3627 = vpack.c.b16 %v3623, %v3622
    %3628 = vrot.lane.b32.xlu0 %v3624, 96
    %v3629 = vpop.permute.xlu0 %3628
    %3630 = vrot.lane.b32.xlu0 %v3625, 96
    %v3631 = vpop.permute.xlu0 %3630
    %3632 = vrot.lane.b32.xlu0 %v3626, 96
    %v3633 = vpop.permute.xlu0 %3632
    %3634 = vrot.lane.b32.xlu0 %v3627, 96
    %v3635 = vpop.permute.xlu0 %3634
    %v3637 = vsel %vm1578, %v3624, 0
    %v3640 = vsel %vm1578, %v3625, 0
    %v3643 = vsel %vm1578, %v3626, 0
    %v3646 = vsel %vm1578, %v3627, 0
    %v3649 = vsel %vm1578, %v3629, 0
    %v3652 = vsel %vm1578, %v3631, 0
    %v3655 = vsel %vm1578, %v3633, 0
    %v3658 = vsel %vm1578, %v3635, 0
    %3660 = vmatpush.bf16.xpose.msra.mxu0 0
    %3661 = vmatpush.bf16.xpose.msra.mxu0 0
    %3662 = vmatpush.bf16.xpose.msra.mxu0 0
    %3663 = vmatpush.bf16.xpose.msra.mxu0 0
    %3664 = vmatpush.bf16.xpose.msra.mxu0 %v3658
    %3665 = vmatpush.bf16.xpose.msra.mxu0 %v3655
    %3666 = vmatpush.bf16.xpose.msra.mxu0 %v3652
    %3667 = vmatpush.bf16.xpose.msra.mxu0 %v3649
    %3668 = vmatmul.bf16.gmra.mxu0 %v3637
    %v3669 = vpop.f32.mrf.mxu0
    %v3670 = vadd.f32 %v1421, %v3669
    %v3671 = vpop.f32.mrf.mxu0
    %v3672 = vadd.f32 %v1422, %v3671
    %3673 = vmatmul.bf16.gmra.mxu0 %v3640
    %v3674 = vpop.f32.mrf.mxu0
    %v3675 = vadd.f32 %v1423, %v3674
    %v3676 = vpop.f32.mrf.mxu0
    %v3677 = vadd.f32 %v1424, %v3676
    %3678 = vmatmul.bf16.gmra.mxu0 %v3643
    %v3679 = vpop.f32.mrf.mxu0
    %v3680 = vadd.f32 %v1425, %v3679
    %v3681 = vpop.f32.mrf.mxu0
    %v3682 = vadd.f32 %v1426, %v3681
    %3683 = vmatmul.bf16.gmra.mxu0 %v3646
    %v3684 = vpop.f32.mrf.mxu0
    %v3685 = vadd.f32 %v1427, %v3684
    %v3686 = vpop.f32.mrf.mxu0
    %v3687 = vadd.f32 %v1428, %v3686
    %3688 = vdwg.mxu0
    %v3689 = vunpack.c.l.b16 %v3569
    %v3690 = vunpack.c.l.b16 %v3571
    %v3691 = vunpack.c.l.b16 %v3573
    %v3692 = vunpack.c.l.b16 %v3575
    %v3693 = vunpack.c.l.b16 %v3577
    %v3694 = vunpack.c.l.b16 %v3579
    %v3695 = vunpack.c.l.b16 %v3581
    %v3696 = vunpack.c.l.b16 %v3583
    %v3697 = vpack.c.b16 %v3690, %v3689
    %v3698 = vpack.c.b16 %v3692, %v3691
    %v3699 = vpack.c.b16 %v3694, %v3693
    %v3700 = vpack.c.b16 %v3696, %v3695
    %3701 = vrot.lane.b32.xlu0 %v3697, 96
    %v3702 = vpop.permute.xlu0 %3701
    %3703 = vrot.lane.b32.xlu0 %v3698, 96
    %v3704 = vpop.permute.xlu0 %3703
    %3705 = vrot.lane.b32.xlu0 %v3699, 96
    %v3706 = vpop.permute.xlu0 %3705
    %3707 = vrot.lane.b32.xlu0 %v3700, 96
    %v3708 = vpop.permute.xlu0 %3707
    %v3710 = vsel %vm1578, %v3697, 0
    %v3713 = vsel %vm1578, %v3698, 0
    %v3716 = vsel %vm1578, %v3699, 0
    %v3719 = vsel %vm1578, %v3700, 0
    %v3722 = vsel %vm1578, %v3702, 0
    %v3725 = vsel %vm1578, %v3704, 0
    %v3728 = vsel %vm1578, %v3706, 0
    %v3731 = vsel %vm1578, %v3708, 0
    %3733 = vmatpush.bf16.xpose.msra.mxu0 0
    %3734 = vmatpush.bf16.xpose.msra.mxu0 0
    %3735 = vmatpush.bf16.xpose.msra.mxu0 0
    %3736 = vmatpush.bf16.xpose.msra.mxu0 0
    %3737 = vmatpush.bf16.xpose.msra.mxu0 %v3731
    %3738 = vmatpush.bf16.xpose.msra.mxu0 %v3728
    %3739 = vmatpush.bf16.xpose.msra.mxu0 %v3725
    %3740 = vmatpush.bf16.xpose.msra.mxu0 %v3722
    %3741 = vmatmul.bf16.gmra.mxu0 %v3710
    %v3742 = vpop.f32.mrf.mxu0
    %v3743 = vadd.f32 %v1421, %v3742
    %v3744 = vpop.f32.mrf.mxu0
    %v3745 = vadd.f32 %v1422, %v3744
    %3746 = vmatmul.bf16.gmra.mxu0 %v3713
    %v3747 = vpop.f32.mrf.mxu0
    %v3748 = vadd.f32 %v1423, %v3747
    %v3749 = vpop.f32.mrf.mxu0
    %v3750 = vadd.f32 %v1424, %v3749
    %3751 = vmatmul.bf16.gmra.mxu0 %v3716
    %v3752 = vpop.f32.mrf.mxu0
    %v3753 = vadd.f32 %v1425, %v3752
    %v3754 = vpop.f32.mrf.mxu0
    %v3755 = vadd.f32 %v1426, %v3754
    %3756 = vmatmul.bf16.gmra.mxu0 %v3719
    %v3757 = vpop.f32.mrf.mxu0
    %v3758 = vadd.f32 %v1427, %v3757
    %v3759 = vpop.f32.mrf.mxu0
    %v3760 = vadd.f32 %v1428, %v3759
    %3761 = vdwg.mxu0
    %v3762 = vunpack.c.l.b16 %v3585
    %v3763 = vunpack.c.l.b16 %v3587
    %v3764 = vunpack.c.l.b16 %v3589
    %v3765 = vunpack.c.l.b16 %v3591
    %v3766 = vunpack.c.l.b16 %v3593
    %v3767 = vunpack.c.l.b16 %v3595
    %v3768 = vunpack.c.l.b16 %v3597
    %v3769 = vunpack.c.l.b16 %v3599
    %v3770 = vpack.c.b16 %v3763, %v3762
    %v3771 = vpack.c.b16 %v3765, %v3764
    %v3772 = vpack.c.b16 %v3767, %v3766
    %v3773 = vpack.c.b16 %v3769, %v3768
    %3774 = vrot.lane.b32.xlu0 %v3770, 96
    %v3775 = vpop.permute.xlu0 %3774
    %3776 = vrot.lane.b32.xlu0 %v3771, 96
    %v3777 = vpop.permute.xlu0 %3776
    %3778 = vrot.lane.b32.xlu0 %v3772, 96
    %v3779 = vpop.permute.xlu0 %3778
    %3780 = vrot.lane.b32.xlu0 %v3773, 96
    %v3781 = vpop.permute.xlu0 %3780
    %v3783 = vsel %vm1578, %v3770, 0
    %v3786 = vsel %vm1578, %v3771, 0
    %v3789 = vsel %vm1578, %v3772, 0
    %v3792 = vsel %vm1578, %v3773, 0
    %v3795 = vsel %vm1578, %v3775, 0
    %v3798 = vsel %vm1578, %v3777, 0
    %v3801 = vsel %vm1578, %v3779, 0
    %v3804 = vsel %vm1578, %v3781, 0
    %3806 = vmatpush.bf16.xpose.msra.mxu0 0
    %3807 = vmatpush.bf16.xpose.msra.mxu0 0
    %3808 = vmatpush.bf16.xpose.msra.mxu0 0
    %3809 = vmatpush.bf16.xpose.msra.mxu0 0
    %3810 = vmatpush.bf16.xpose.msra.mxu0 %v3804
    %3811 = vmatpush.bf16.xpose.msra.mxu0 %v3801
    %3812 = vmatpush.bf16.xpose.msra.mxu0 %v3798
    %3813 = vmatpush.bf16.xpose.msra.mxu0 %v3795
    %3814 = vmatmul.bf16.gmra.mxu0 %v3783
    %v3815 = vpop.f32.mrf.mxu0
    %v3816 = vadd.f32 %v1421, %v3815
    %v3817 = vpop.f32.mrf.mxu0
    %v3818 = vadd.f32 %v1422, %v3817
    %3819 = vmatmul.bf16.gmra.mxu0 %v3786
    %v3820 = vpop.f32.mrf.mxu0
    %v3821 = vadd.f32 %v1423, %v3820
    %v3822 = vpop.f32.mrf.mxu0
    %v3823 = vadd.f32 %v1424, %v3822
    %3824 = vmatmul.bf16.gmra.mxu0 %v3789
    %v3825 = vpop.f32.mrf.mxu0
    %v3826 = vadd.f32 %v1425, %v3825
    %v3827 = vpop.f32.mrf.mxu0
    %v3828 = vadd.f32 %v1426, %v3827
    %3829 = vmatmul.bf16.gmra.mxu0 %v3792
    %v3830 = vpop.f32.mrf.mxu0
    %v3831 = vadd.f32 %v1427, %v3830
    %v3832 = vpop.f32.mrf.mxu0
    %v3833 = vadd.f32 %v1428, %v3832
    %3834 = vdwg.mxu0
    %v3835 = vunpack.c.l.b16 %v3601
    %v3836 = vunpack.c.l.b16 %v3603
    %v3837 = vunpack.c.l.b16 %v3605
    %v3838 = vunpack.c.l.b16 %v3607
    %v3839 = vunpack.c.l.b16 %v3609
    %v3840 = vunpack.c.l.b16 %v3611
    %v3841 = vunpack.c.l.b16 %v3613
    %v3842 = vunpack.c.l.b16 %v3615
    %v3843 = vpack.c.b16 %v3836, %v3835
    %v3844 = vpack.c.b16 %v3838, %v3837
    %v3845 = vpack.c.b16 %v3840, %v3839
    %v3846 = vpack.c.b16 %v3842, %v3841
    %3847 = vrot.lane.b32.xlu0 %v3843, 96
    %v3848 = vpop.permute.xlu0 %3847
    %3849 = vrot.lane.b32.xlu0 %v3844, 96
    %v3850 = vpop.permute.xlu0 %3849
    %3851 = vrot.lane.b32.xlu0 %v3845, 96
    %v3852 = vpop.permute.xlu0 %3851
    %3853 = vrot.lane.b32.xlu0 %v3846, 96
    %v3854 = vpop.permute.xlu0 %3853
    %v3856 = vsel %vm1578, %v3843, 0
    %v3859 = vsel %vm1578, %v3844, 0
    %v3862 = vsel %vm1578, %v3845, 0
    %v3865 = vsel %vm1578, %v3846, 0
    %v3868 = vsel %vm1578, %v3848, 0
    %v3871 = vsel %vm1578, %v3850, 0
    %v3874 = vsel %vm1578, %v3852, 0
    %v3877 = vsel %vm1578, %v3854, 0
    %3879 = vmatpush.bf16.xpose.msra.mxu0 0
    %3880 = vmatpush.bf16.xpose.msra.mxu0 0
    %3881 = vmatpush.bf16.xpose.msra.mxu0 0
    %3882 = vmatpush.bf16.xpose.msra.mxu0 0
    %3883 = vmatpush.bf16.xpose.msra.mxu0 %v3877
    %3884 = vmatpush.bf16.xpose.msra.mxu0 %v3874
    %3885 = vmatpush.bf16.xpose.msra.mxu0 %v3871
    %3886 = vmatpush.bf16.xpose.msra.mxu0 %v3868
    %3887 = vmatmul.bf16.gmra.mxu0 %v3856
    %v3888 = vpop.f32.mrf.mxu0
    %v3889 = vadd.f32 %v1421, %v3888
    %v3890 = vpop.f32.mrf.mxu0
    %v3891 = vadd.f32 %v1422, %v3890
    %3892 = vmatmul.bf16.gmra.mxu0 %v3859
    %v3893 = vpop.f32.mrf.mxu0
    %v3894 = vadd.f32 %v1423, %v3893
    %v3895 = vpop.f32.mrf.mxu0
    %v3896 = vadd.f32 %v1424, %v3895
    %3897 = vmatmul.bf16.gmra.mxu0 %v3862
    %v3898 = vpop.f32.mrf.mxu0
    %v3899 = vadd.f32 %v1425, %v3898
    %v3900 = vpop.f32.mrf.mxu0
    %v3901 = vadd.f32 %v1426, %v3900
    %3902 = vmatmul.bf16.gmra.mxu0 %v3865
    %v3903 = vpop.f32.mrf.mxu0
    %v3904 = vadd.f32 %v1427, %v3903
    %v3905 = vpop.f32.mrf.mxu0
    %v3906 = vadd.f32 %v1428, %v3905
    %3907 = vdwg.mxu0
    %v3908 = vsel %vm649, %v3670, -inf
    %3909 = vmax.xlane.f32.xlu0 %v3908
    %v3910 = vpop.xlane.xlu0 %3909
    %v3911 = vsel %vm649, %v3672, -inf
    %3912 = vmax.xlane.f32.xlu0 %v3911
    %v3913 = vpop.xlane.xlu0 %3912
    %v3914 = vsel %vm649, %v3675, -inf
    %3915 = vmax.xlane.f32.xlu0 %v3914
    %v3916 = vpop.xlane.xlu0 %3915
    %v3917 = vsel %vm649, %v3677, -inf
    %3918 = vmax.xlane.f32.xlu0 %v3917
    %v3919 = vpop.xlane.xlu0 %3918
    %v3920 = vsel %vm649, %v3680, -inf
    %3921 = vmax.xlane.f32.xlu0 %v3920
    %v3922 = vpop.xlane.xlu0 %3921
    %v3923 = vsel %vm649, %v3682, -inf
    %3924 = vmax.xlane.f32.xlu0 %v3923
    %v3925 = vpop.xlane.xlu0 %3924
    %v3926 = vsel %vm649, %v3685, -inf
    %3927 = vmax.xlane.f32.xlu0 %v3926
    %v3928 = vpop.xlane.xlu0 %3927
    %v3929 = vsel %vm649, %v3687, -inf
    %3930 = vmax.xlane.f32.xlu0 %v3929
    %v3931 = vpop.xlane.xlu0 %3930
    %v3932 = vsel %vm649, %v3743, -inf
    %3933 = vmax.xlane.f32.xlu0 %v3932
    %v3934 = vpop.xlane.xlu0 %3933
    %v3935 = vsel %vm649, %v3745, -inf
    %3936 = vmax.xlane.f32.xlu0 %v3935
    %v3937 = vpop.xlane.xlu0 %3936
    %v3938 = vsel %vm649, %v3748, -inf
    %3939 = vmax.xlane.f32.xlu0 %v3938
    %v3940 = vpop.xlane.xlu0 %3939
    %v3941 = vsel %vm649, %v3750, -inf
    %3942 = vmax.xlane.f32.xlu0 %v3941
    %v3943 = vpop.xlane.xlu0 %3942
    %v3944 = vsel %vm649, %v3753, -inf
    %3945 = vmax.xlane.f32.xlu0 %v3944
    %v3946 = vpop.xlane.xlu0 %3945
    %v3947 = vsel %vm649, %v3755, -inf
    %3948 = vmax.xlane.f32.xlu0 %v3947
    %v3949 = vpop.xlane.xlu0 %3948
    %v3950 = vsel %vm649, %v3758, -inf
    %3951 = vmax.xlane.f32.xlu0 %v3950
    %v3952 = vpop.xlane.xlu0 %3951
    %v3953 = vsel %vm649, %v3760, -inf
    %3954 = vmax.xlane.f32.xlu0 %v3953
    %v3955 = vpop.xlane.xlu0 %3954
    %v3956 = vsel %vm649, %v3816, -inf
    %3957 = vmax.xlane.f32.xlu0 %v3956
    %v3958 = vpop.xlane.xlu0 %3957
    %v3959 = vsel %vm649, %v3818, -inf
    %3960 = vmax.xlane.f32.xlu0 %v3959
    %v3961 = vpop.xlane.xlu0 %3960
    %v3962 = vsel %vm649, %v3821, -inf
    %3963 = vmax.xlane.f32.xlu0 %v3962
    %v3964 = vpop.xlane.xlu0 %3963
    %v3965 = vsel %vm649, %v3823, -inf
    %3966 = vmax.xlane.f32.xlu0 %v3965
    %v3967 = vpop.xlane.xlu0 %3966
    %v3968 = vsel %vm649, %v3826, -inf
    %3969 = vmax.xlane.f32.xlu0 %v3968
    %v3970 = vpop.xlane.xlu0 %3969
    %v3971 = vsel %vm649, %v3828, -inf
    %3972 = vmax.xlane.f32.xlu0 %v3971
    %v3973 = vpop.xlane.xlu0 %3972
    %v3974 = vsel %vm649, %v3831, -inf
    %3975 = vmax.xlane.f32.xlu0 %v3974
    %v3976 = vpop.xlane.xlu0 %3975
    %v3977 = vsel %vm649, %v3833, -inf
    %3978 = vmax.xlane.f32.xlu0 %v3977
    %v3979 = vpop.xlane.xlu0 %3978
    %v3980 = vsel %vm649, %v3889, -inf
    %3981 = vmax.xlane.f32.xlu0 %v3980
    %v3982 = vpop.xlane.xlu0 %3981
    %v3983 = vsel %vm649, %v3891, -inf
    %3984 = vmax.xlane.f32.xlu0 %v3983
    %v3985 = vpop.xlane.xlu0 %3984
    %v3986 = vsel %vm649, %v3894, -inf
    %3987 = vmax.xlane.f32.xlu0 %v3986
    %v3988 = vpop.xlane.xlu0 %3987
    %v3989 = vsel %vm649, %v3896, -inf
    %3990 = vmax.xlane.f32.xlu0 %v3989
    %v3991 = vpop.xlane.xlu0 %3990
    %v3992 = vsel %vm649, %v3899, -inf
    %3993 = vmax.xlane.f32.xlu0 %v3992
    %v3994 = vpop.xlane.xlu0 %3993
    %v3995 = vsel %vm649, %v3901, -inf
    %3996 = vmax.xlane.f32.xlu0 %v3995
    %v3997 = vpop.xlane.xlu0 %3996
    %v3998 = vsel %vm649, %v3904, -inf
    %3999 = vmax.xlane.f32.xlu0 %v3998
    %v4000 = vpop.xlane.xlu0 %3999
    %v4001 = vsel %vm649, %v3906, -inf
    %4002 = vmax.xlane.f32.xlu0 %v4001
    %v4003 = vpop.xlane.xlu0 %4002
    %v4004 = vsub.f32 %v3670, %v3910
    %v4005 = vsub.f32 %v3672, %v3913
    %v4006 = vsub.f32 %v3675, %v3916
    %v4007 = vsub.f32 %v3677, %v3919
    %v4008 = vsub.f32 %v3680, %v3922
    %v4009 = vsub.f32 %v3682, %v3925
    %v4010 = vsub.f32 %v3685, %v3928
    %v4011 = vsub.f32 %v3687, %v3931
    %v4012 = vsub.f32 %v3743, %v3934
    %v4013 = vsub.f32 %v3745, %v3937
    %v4014 = vsub.f32 %v3748, %v3940
    %v4015 = vsub.f32 %v3750, %v3943
    %v4016 = vsub.f32 %v3753, %v3946
    %v4017 = vsub.f32 %v3755, %v3949
    %v4018 = vsub.f32 %v3758, %v3952
    %v4019 = vsub.f32 %v3760, %v3955
    %v4020 = vsub.f32 %v3816, %v3958
    %v4021 = vsub.f32 %v3818, %v3961
    %v4022 = vsub.f32 %v3821, %v3964
    %v4023 = vsub.f32 %v3823, %v3967
    %v4024 = vsub.f32 %v3826, %v3970
    %v4025 = vsub.f32 %v3828, %v3973
    %v4026 = vsub.f32 %v3831, %v3976
    %v4027 = vsub.f32 %v3833, %v3979
    %v4028 = vsub.f32 %v3889, %v3982
    %v4029 = vsub.f32 %v3891, %v3985
    %v4030 = vsub.f32 %v3894, %v3988
    %v4031 = vsub.f32 %v3896, %v3991
    %v4032 = vsub.f32 %v3899, %v3994
    %v4033 = vsub.f32 %v3901, %v3997
    %v4034 = vsub.f32 %v3904, %v4000
    %v4035 = vsub.f32 %v3906, %v4003
    %v4036 = vmul.f32 %v4004, 1.442695
    %v4037 = vpow.pop %v4036
    %v4038 = vmul.f32 %v4005, 1.442695
    %v4039 = vpow.pop %v4038
    %v4040 = vmul.f32 %v4006, 1.442695
    %v4041 = vpow.pop %v4040
    %v4042 = vmul.f32 %v4007, 1.442695
    %v4043 = vpow.pop %v4042
    %v4044 = vmul.f32 %v4008, 1.442695
    %v4045 = vpow.pop %v4044
    %v4046 = vmul.f32 %v4009, 1.442695
    %v4047 = vpow.pop %v4046
    %v4048 = vmul.f32 %v4010, 1.442695
    %v4049 = vpow.pop %v4048
    %v4050 = vmul.f32 %v4011, 1.442695
    %v4051 = vpow.pop %v4050
    %v4052 = vmul.f32 %v4012, 1.442695
    %v4053 = vpow.pop %v4052
    %v4054 = vmul.f32 %v4013, 1.442695
    %v4055 = vpow.pop %v4054
    %v4056 = vmul.f32 %v4014, 1.442695
    %v4057 = vpow.pop %v4056
    %v4058 = vmul.f32 %v4015, 1.442695
    %v4059 = vpow.pop %v4058
    %v4060 = vmul.f32 %v4016, 1.442695
    %v4061 = vpow.pop %v4060
    %v4062 = vmul.f32 %v4017, 1.442695
    %v4063 = vpow.pop %v4062
    %v4064 = vmul.f32 %v4018, 1.442695
    %v4065 = vpow.pop %v4064
    %v4066 = vmul.f32 %v4019, 1.442695
    %v4067 = vpow.pop %v4066
    %v4068 = vmul.f32 %v4020, 1.442695
    %v4069 = vpow.pop %v4068
    %v4070 = vmul.f32 %v4021, 1.442695
    %v4071 = vpow.pop %v4070
    %v4072 = vmul.f32 %v4022, 1.442695
    %v4073 = vpow.pop %v4072
    %v4074 = vmul.f32 %v4023, 1.442695
    %v4075 = vpow.pop %v4074
    %v4076 = vmul.f32 %v4024, 1.442695
    %v4077 = vpow.pop %v4076
    %v4078 = vmul.f32 %v4025, 1.442695
    %v4079 = vpow.pop %v4078
    %v4080 = vmul.f32 %v4026, 1.442695
    %v4081 = vpow.pop %v4080
    %v4082 = vmul.f32 %v4027, 1.442695
    %v4083 = vpow.pop %v4082
    %v4084 = vmul.f32 %v4028, 1.442695
    %v4085 = vpow.pop %v4084
    %v4086 = vmul.f32 %v4029, 1.442695
    %v4087 = vpow.pop %v4086
    %v4088 = vmul.f32 %v4030, 1.442695
    %v4089 = vpow.pop %v4088
    %v4090 = vmul.f32 %v4031, 1.442695
    %v4091 = vpow.pop %v4090
    %v4092 = vmul.f32 %v4032, 1.442695
    %v4093 = vpow.pop %v4092
    %v4094 = vmul.f32 %v4033, 1.442695
    %v4095 = vpow.pop %v4094
    %v4096 = vmul.f32 %v4034, 1.442695
    %v4097 = vpow.pop %v4096
    %v4098 = vmul.f32 %v4035, 1.442695
    %v4099 = vpow.pop %v4098
    %v4100 = vsel %vm649, %v4037, 0.0
    %4101 = vadd.xlane.f32.xlu0 %v4100
    %v4102 = vpop.xlane.xlu0 %4101
    %v4103 = vsel %vm649, %v4039, 0.0
    %4104 = vadd.xlane.f32.xlu0 %v4103
    %v4105 = vpop.xlane.xlu0 %4104
    %v4106 = vsel %vm649, %v4041, 0.0
    %4107 = vadd.xlane.f32.xlu0 %v4106
    %v4108 = vpop.xlane.xlu0 %4107
    %v4109 = vsel %vm649, %v4043, 0.0
    %4110 = vadd.xlane.f32.xlu0 %v4109
    %v4111 = vpop.xlane.xlu0 %4110
    %v4112 = vsel %vm649, %v4045, 0.0
    %4113 = vadd.xlane.f32.xlu0 %v4112
    %v4114 = vpop.xlane.xlu0 %4113
    %v4115 = vsel %vm649, %v4047, 0.0
    %4116 = vadd.xlane.f32.xlu0 %v4115
    %v4117 = vpop.xlane.xlu0 %4116
    %v4118 = vsel %vm649, %v4049, 0.0
    %4119 = vadd.xlane.f32.xlu0 %v4118
    %v4120 = vpop.xlane.xlu0 %4119
    %v4121 = vsel %vm649, %v4051, 0.0
    %4122 = vadd.xlane.f32.xlu0 %v4121
    %v4123 = vpop.xlane.xlu0 %4122
    %v4124 = vsel %vm649, %v4053, 0.0
    %4125 = vadd.xlane.f32.xlu0 %v4124
    %v4126 = vpop.xlane.xlu0 %4125
    %v4127 = vsel %vm649, %v4055, 0.0
    %4128 = vadd.xlane.f32.xlu0 %v4127
    %v4129 = vpop.xlane.xlu0 %4128
    %v4130 = vsel %vm649, %v4057, 0.0
    %4131 = vadd.xlane.f32.xlu0 %v4130
    %v4132 = vpop.xlane.xlu0 %4131
    %v4133 = vsel %vm649, %v4059, 0.0
    %4134 = vadd.xlane.f32.xlu0 %v4133
    %v4135 = vpop.xlane.xlu0 %4134
    %v4136 = vsel %vm649, %v4061, 0.0
    %4137 = vadd.xlane.f32.xlu0 %v4136
    %v4138 = vpop.xlane.xlu0 %4137
    %v4139 = vsel %vm649, %v4063, 0.0
    %4140 = vadd.xlane.f32.xlu0 %v4139
    %v4141 = vpop.xlane.xlu0 %4140
    %v4142 = vsel %vm649, %v4065, 0.0
    %4143 = vadd.xlane.f32.xlu0 %v4142
    %v4144 = vpop.xlane.xlu0 %4143
    %v4145 = vsel %vm649, %v4067, 0.0
    %4146 = vadd.xlane.f32.xlu0 %v4145
    %v4147 = vpop.xlane.xlu0 %4146
    %v4148 = vsel %vm649, %v4069, 0.0
    %4149 = vadd.xlane.f32.xlu0 %v4148
    %v4150 = vpop.xlane.xlu0 %4149
    %v4151 = vsel %vm649, %v4071, 0.0
    %4152 = vadd.xlane.f32.xlu0 %v4151
    %v4153 = vpop.xlane.xlu0 %4152
    %v4154 = vsel %vm649, %v4073, 0.0
    %4155 = vadd.xlane.f32.xlu0 %v4154
    %v4156 = vpop.xlane.xlu0 %4155
    %v4157 = vsel %vm649, %v4075, 0.0
    %4158 = vadd.xlane.f32.xlu0 %v4157
    %v4159 = vpop.xlane.xlu0 %4158
    %v4160 = vsel %vm649, %v4077, 0.0
    %4161 = vadd.xlane.f32.xlu0 %v4160
    %v4162 = vpop.xlane.xlu0 %4161
    %v4163 = vsel %vm649, %v4079, 0.0
    %4164 = vadd.xlane.f32.xlu0 %v4163
    %v4165 = vpop.xlane.xlu0 %4164
    %v4166 = vsel %vm649, %v4081, 0.0
    %4167 = vadd.xlane.f32.xlu0 %v4166
    %v4168 = vpop.xlane.xlu0 %4167
    %v4169 = vsel %vm649, %v4083, 0.0
    %4170 = vadd.xlane.f32.xlu0 %v4169
    %v4171 = vpop.xlane.xlu0 %4170
    %v4172 = vsel %vm649, %v4085, 0.0
    %4173 = vadd.xlane.f32.xlu0 %v4172
    %v4174 = vpop.xlane.xlu0 %4173
    %v4175 = vsel %vm649, %v4087, 0.0
    %4176 = vadd.xlane.f32.xlu0 %v4175
    %v4177 = vpop.xlane.xlu0 %4176
    %v4178 = vsel %vm649, %v4089, 0.0
    %4179 = vadd.xlane.f32.xlu0 %v4178
    %v4180 = vpop.xlane.xlu0 %4179
    %v4181 = vsel %vm649, %v4091, 0.0
    %4182 = vadd.xlane.f32.xlu0 %v4181
    %v4183 = vpop.xlane.xlu0 %4182
    %v4184 = vsel %vm649, %v4093, 0.0
    %4185 = vadd.xlane.f32.xlu0 %v4184
    %v4186 = vpop.xlane.xlu0 %4185
    %v4187 = vsel %vm649, %v4095, 0.0
    %4188 = vadd.xlane.f32.xlu0 %v4187
    %v4189 = vpop.xlane.xlu0 %4188
    %v4190 = vsel %vm649, %v4097, 0.0
    %4191 = vadd.xlane.f32.xlu0 %v4190
    %v4192 = vpop.xlane.xlu0 %4191
    %v4193 = vsel %vm649, %v4099, 0.0
    %4194 = vadd.xlane.f32.xlu0 %v4193
    %v4195 = vpop.xlane.xlu0 %4194
    %v4196 = vrcp.pop %v4102
    %v4197 = vrcp.pop %v4105
    %v4198 = vrcp.pop %v4108
    %v4199 = vrcp.pop %v4111
    %v4200 = vrcp.pop %v4114
    %v4201 = vrcp.pop %v4117
    %v4202 = vrcp.pop %v4120
    %v4203 = vrcp.pop %v4123
    %v4204 = vrcp.pop %v4126
    %v4205 = vrcp.pop %v4129
    %v4206 = vrcp.pop %v4132
    %v4207 = vrcp.pop %v4135
    %v4208 = vrcp.pop %v4138
    %v4209 = vrcp.pop %v4141
    %v4210 = vrcp.pop %v4144
    %v4211 = vrcp.pop %v4147
    %v4212 = vrcp.pop %v4150
    %v4213 = vrcp.pop %v4153
    %v4214 = vrcp.pop %v4156
    %v4215 = vrcp.pop %v4159
    %v4216 = vrcp.pop %v4162
    %v4217 = vrcp.pop %v4165
    %v4218 = vrcp.pop %v4168
    %v4219 = vrcp.pop %v4171
    %v4220 = vrcp.pop %v4174
    %v4221 = vrcp.pop %v4177
    %v4222 = vrcp.pop %v4180
    %v4223 = vrcp.pop %v4183
    %v4224 = vrcp.pop %v4186
    %v4225 = vrcp.pop %v4189
    %v4226 = vrcp.pop %v4192
    %v4227 = vrcp.pop %v4195
    %v4228 = vmul.f32 %v4037, %v4196
    %v4229 = vmul.f32 %v4039, %v4197
    %v4230 = vmul.f32 %v4041, %v4198
    %v4231 = vmul.f32 %v4043, %v4199
    %v4232 = vmul.f32 %v4045, %v4200
    %v4233 = vmul.f32 %v4047, %v4201
    %v4234 = vmul.f32 %v4049, %v4202
    %v4235 = vmul.f32 %v4051, %v4203
    %v4236 = vmul.f32 %v4053, %v4204
    %v4237 = vmul.f32 %v4055, %v4205
    %v4238 = vmul.f32 %v4057, %v4206
    %v4239 = vmul.f32 %v4059, %v4207
    %v4240 = vmul.f32 %v4061, %v4208
    %v4241 = vmul.f32 %v4063, %v4209
    %v4242 = vmul.f32 %v4065, %v4210
    %v4243 = vmul.f32 %v4067, %v4211
    %v4244 = vmul.f32 %v4069, %v4212
    %v4245 = vmul.f32 %v4071, %v4213
    %v4246 = vmul.f32 %v4073, %v4214
    %v4247 = vmul.f32 %v4075, %v4215
    %v4248 = vmul.f32 %v4077, %v4216
    %v4249 = vmul.f32 %v4079, %v4217
    %v4250 = vmul.f32 %v4081, %v4218
    %v4251 = vmul.f32 %v4083, %v4219
    %v4252 = vmul.f32 %v4085, %v4220
    %v4253 = vmul.f32 %v4087, %v4221
    %v4254 = vmul.f32 %v4089, %v4222
    %v4255 = vmul.f32 %v4091, %v4223
    %v4256 = vmul.f32 %v4093, %v4224
    %v4257 = vmul.f32 %v4095, %v4225
    %v4258 = vmul.f32 %v4097, %v4226
    %v4259 = vmul.f32 %v4099, %v4227
    %v4260 = vpack.c.bf16 %v4228, %v4228
    %v4261 = vpack.c.bf16 %v4229, %v4229
    %v4262 = vpack.c.bf16 %v4230, %v4230
    %v4263 = vpack.c.bf16 %v4231, %v4231
    %v4264 = vpack.c.bf16 %v4232, %v4232
    %v4265 = vpack.c.bf16 %v4233, %v4233
    %v4266 = vpack.c.bf16 %v4234, %v4234
    %v4267 = vpack.c.bf16 %v4235, %v4235
    %v4268 = vpack.c.bf16 %v4236, %v4236
    %v4269 = vpack.c.bf16 %v4237, %v4237
    %v4270 = vpack.c.bf16 %v4238, %v4238
    %v4271 = vpack.c.bf16 %v4239, %v4239
    %v4272 = vpack.c.bf16 %v4240, %v4240
    %v4273 = vpack.c.bf16 %v4241, %v4241
    %v4274 = vpack.c.bf16 %v4242, %v4242
    %v4275 = vpack.c.bf16 %v4243, %v4243
    %v4276 = vpack.c.bf16 %v4244, %v4244
    %v4277 = vpack.c.bf16 %v4245, %v4245
    %v4278 = vpack.c.bf16 %v4246, %v4246
    %v4279 = vpack.c.bf16 %v4247, %v4247
    %v4280 = vpack.c.bf16 %v4248, %v4248
    %v4281 = vpack.c.bf16 %v4249, %v4249
    %v4282 = vpack.c.bf16 %v4250, %v4250
    %v4283 = vpack.c.bf16 %v4251, %v4251
    %v4284 = vpack.c.bf16 %v4252, %v4252
    %v4285 = vpack.c.bf16 %v4253, %v4253
    %v4286 = vpack.c.bf16 %v4254, %v4254
    %v4287 = vpack.c.bf16 %v4255, %v4255
    %v4288 = vpack.c.bf16 %v4256, %v4256
    %v4289 = vpack.c.bf16 %v4257, %v4257
    %v4290 = vpack.c.bf16 %v4258, %v4258
    %v4291 = vpack.c.bf16 %v4259, %v4259
    %v4300 = vunpack.c.l.b16 %v4260
    %v4301 = vunpack.c.l.b16 %v4261
    %v4302 = vunpack.c.l.b16 %v4262
    %v4303 = vunpack.c.l.b16 %v4263
    %v4304 = vunpack.c.l.b16 %v4264
    %v4305 = vunpack.c.l.b16 %v4265
    %v4306 = vunpack.c.l.b16 %v4266
    %v4307 = vunpack.c.l.b16 %v4267
    %v4308 = vpack.c.b16 %v4301, %v4300
    %v4309 = vpack.c.b16 %v4303, %v4302
    %v4310 = vpack.c.b16 %v4305, %v4304
    %v4311 = vpack.c.b16 %v4307, %v4306
    %4312 = vrot.lane.b32.xlu0 %v3624, 64
    %v4313 = vpop.permute.xlu0 %4312
    %4314 = vrot.lane.b32.xlu0 %v3625, 64
    %v4315 = vpop.permute.xlu0 %4314
    %4316 = vrot.lane.b32.xlu0 %v3626, 64
    %v4317 = vpop.permute.xlu0 %4316
    %4318 = vrot.lane.b32.xlu0 %v3627, 64
    %v4319 = vpop.permute.xlu0 %4318
    %v4325 = vsel %vm649, %v4308, 0
    %v4328 = vsel %vm649, %v4309, 0
    %v4331 = vsel %vm649, %v4310, 0
    %v4334 = vsel %vm649, %v4311, 0
    %4336 = vmatpush.bf16.msra.mxu0 0
    %4337 = vmatpush.bf16.msra.mxu0 0
    %4338 = vmatpush.bf16.msra.mxu0 0
    %4339 = vmatpush.bf16.msra.mxu0 0
    %4340 = vmatpush.bf16.msra.mxu0 %v4319
    %4341 = vmatpush.bf16.msra.mxu0 %v4317
    %4342 = vmatpush.bf16.msra.mxu0 %v4315
    %4343 = vmatpush.bf16.msra.mxu0 %v4313
    %4344 = vmatmul.bf16.gmra.mxu0 %v4325
    %v4345 = vpop.f32.mrf.mxu0
    %v4346 = vadd.f32 0.0, %v4345
    %v4347 = vpop.f32.mrf.mxu0
    %v4348 = vadd.f32 0.0, %v4347
    %4349 = vmatmul.bf16.gmra.mxu0 %v4328
    %v4350 = vpop.f32.mrf.mxu0
    %v4351 = vadd.f32 0.0, %v4350
    %v4352 = vpop.f32.mrf.mxu0
    %v4353 = vadd.f32 0.0, %v4352
    %4354 = vmatmul.bf16.gmra.mxu0 %v4331
    %v4355 = vpop.f32.mrf.mxu0
    %v4356 = vadd.f32 0.0, %v4355
    %v4357 = vpop.f32.mrf.mxu0
    %v4358 = vadd.f32 0.0, %v4357
    %4359 = vmatmul.bf16.gmra.mxu0 %v4334
    %v4360 = vpop.f32.mrf.mxu0
    %v4361 = vadd.f32 0.0, %v4360
    %v4362 = vpop.f32.mrf.mxu0
    %v4363 = vadd.f32 0.0, %v4362
    %4364 = vdwg.mxu0
    %v4373 = vunpack.c.l.b16 %v4268
    %v4374 = vunpack.c.l.b16 %v4269
    %v4375 = vunpack.c.l.b16 %v4270
    %v4376 = vunpack.c.l.b16 %v4271
    %v4377 = vunpack.c.l.b16 %v4272
    %v4378 = vunpack.c.l.b16 %v4273
    %v4379 = vunpack.c.l.b16 %v4274
    %v4380 = vunpack.c.l.b16 %v4275
    %v4381 = vpack.c.b16 %v4374, %v4373
    %v4382 = vpack.c.b16 %v4376, %v4375
    %v4383 = vpack.c.b16 %v4378, %v4377
    %v4384 = vpack.c.b16 %v4380, %v4379
    %4385 = vrot.lane.b32.xlu0 %v3697, 64
    %v4386 = vpop.permute.xlu0 %4385
    %4387 = vrot.lane.b32.xlu0 %v3698, 64
    %v4388 = vpop.permute.xlu0 %4387
    %4389 = vrot.lane.b32.xlu0 %v3699, 64
    %v4390 = vpop.permute.xlu0 %4389
    %4391 = vrot.lane.b32.xlu0 %v3700, 64
    %v4392 = vpop.permute.xlu0 %4391
    %v4398 = vsel %vm649, %v4381, 0
    %v4401 = vsel %vm649, %v4382, 0
    %v4404 = vsel %vm649, %v4383, 0
    %v4407 = vsel %vm649, %v4384, 0
    %4409 = vmatpush.bf16.msra.mxu0 0
    %4410 = vmatpush.bf16.msra.mxu0 0
    %4411 = vmatpush.bf16.msra.mxu0 0
    %4412 = vmatpush.bf16.msra.mxu0 0
    %4413 = vmatpush.bf16.msra.mxu0 %v4392
    %4414 = vmatpush.bf16.msra.mxu0 %v4390
    %4415 = vmatpush.bf16.msra.mxu0 %v4388
    %4416 = vmatpush.bf16.msra.mxu0 %v4386
    %4417 = vmatmul.bf16.gmra.mxu0 %v4398
    %v4418 = vpop.f32.mrf.mxu0
    %v4419 = vadd.f32 0.0, %v4418
    %v4420 = vpop.f32.mrf.mxu0
    %v4421 = vadd.f32 0.0, %v4420
    %4422 = vmatmul.bf16.gmra.mxu0 %v4401
    %v4423 = vpop.f32.mrf.mxu0
    %v4424 = vadd.f32 0.0, %v4423
    %v4425 = vpop.f32.mrf.mxu0
    %v4426 = vadd.f32 0.0, %v4425
    %4427 = vmatmul.bf16.gmra.mxu0 %v4404
    %v4428 = vpop.f32.mrf.mxu0
    %v4429 = vadd.f32 0.0, %v4428
    %v4430 = vpop.f32.mrf.mxu0
    %v4431 = vadd.f32 0.0, %v4430
    %4432 = vmatmul.bf16.gmra.mxu0 %v4407
    %v4433 = vpop.f32.mrf.mxu0
    %v4434 = vadd.f32 0.0, %v4433
    %v4435 = vpop.f32.mrf.mxu0
    %v4436 = vadd.f32 0.0, %v4435
    %4437 = vdwg.mxu0
    %v4446 = vunpack.c.l.b16 %v4276
    %v4447 = vunpack.c.l.b16 %v4277
    %v4448 = vunpack.c.l.b16 %v4278
    %v4449 = vunpack.c.l.b16 %v4279
    %v4450 = vunpack.c.l.b16 %v4280
    %v4451 = vunpack.c.l.b16 %v4281
    %v4452 = vunpack.c.l.b16 %v4282
    %v4453 = vunpack.c.l.b16 %v4283
    %v4454 = vpack.c.b16 %v4447, %v4446
    %v4455 = vpack.c.b16 %v4449, %v4448
    %v4456 = vpack.c.b16 %v4451, %v4450
    %v4457 = vpack.c.b16 %v4453, %v4452
    %4458 = vrot.lane.b32.xlu0 %v3770, 64
    %v4459 = vpop.permute.xlu0 %4458
    %4460 = vrot.lane.b32.xlu0 %v3771, 64
    %v4461 = vpop.permute.xlu0 %4460
    %4462 = vrot.lane.b32.xlu0 %v3772, 64
    %v4463 = vpop.permute.xlu0 %4462
    %4464 = vrot.lane.b32.xlu0 %v3773, 64
    %v4465 = vpop.permute.xlu0 %4464
    %v4471 = vsel %vm649, %v4454, 0
    %v4474 = vsel %vm649, %v4455, 0
    %v4477 = vsel %vm649, %v4456, 0
    %v4480 = vsel %vm649, %v4457, 0
    %4482 = vmatpush.bf16.msra.mxu0 0
    %4483 = vmatpush.bf16.msra.mxu0 0
    %4484 = vmatpush.bf16.msra.mxu0 0
    %4485 = vmatpush.bf16.msra.mxu0 0
    %4486 = vmatpush.bf16.msra.mxu0 %v4465
    %4487 = vmatpush.bf16.msra.mxu0 %v4463
    %4488 = vmatpush.bf16.msra.mxu0 %v4461
    %4489 = vmatpush.bf16.msra.mxu0 %v4459
    %4490 = vmatmul.bf16.gmra.mxu0 %v4471
    %v4491 = vpop.f32.mrf.mxu0
    %v4492 = vadd.f32 0.0, %v4491
    %v4493 = vpop.f32.mrf.mxu0
    %v4494 = vadd.f32 0.0, %v4493
    %4495 = vmatmul.bf16.gmra.mxu0 %v4474
    %v4496 = vpop.f32.mrf.mxu0
    %v4497 = vadd.f32 0.0, %v4496
    %v4498 = vpop.f32.mrf.mxu0
    %v4499 = vadd.f32 0.0, %v4498
    %4500 = vmatmul.bf16.gmra.mxu0 %v4477
    %v4501 = vpop.f32.mrf.mxu0
    %v4502 = vadd.f32 0.0, %v4501
    %v4503 = vpop.f32.mrf.mxu0
    %v4504 = vadd.f32 0.0, %v4503
    %4505 = vmatmul.bf16.gmra.mxu0 %v4480
    %v4506 = vpop.f32.mrf.mxu0
    %v4507 = vadd.f32 0.0, %v4506
    %v4508 = vpop.f32.mrf.mxu0
    %v4509 = vadd.f32 0.0, %v4508
    %4510 = vdwg.mxu0
    %v4519 = vunpack.c.l.b16 %v4284
    %v4520 = vunpack.c.l.b16 %v4285
    %v4521 = vunpack.c.l.b16 %v4286
    %v4522 = vunpack.c.l.b16 %v4287
    %v4523 = vunpack.c.l.b16 %v4288
    %v4524 = vunpack.c.l.b16 %v4289
    %v4525 = vunpack.c.l.b16 %v4290
    %v4526 = vunpack.c.l.b16 %v4291
    %v4527 = vpack.c.b16 %v4520, %v4519
    %v4528 = vpack.c.b16 %v4522, %v4521
    %v4529 = vpack.c.b16 %v4524, %v4523
    %v4530 = vpack.c.b16 %v4526, %v4525
    %4531 = vrot.lane.b32.xlu0 %v3843, 64
    %v4532 = vpop.permute.xlu0 %4531
    %4533 = vrot.lane.b32.xlu0 %v3844, 64
    %v4534 = vpop.permute.xlu0 %4533
    %4535 = vrot.lane.b32.xlu0 %v3845, 64
    %v4536 = vpop.permute.xlu0 %4535
    %4537 = vrot.lane.b32.xlu0 %v3846, 64
    %v4538 = vpop.permute.xlu0 %4537
    %v4544 = vsel %vm649, %v4527, 0
    %v4547 = vsel %vm649, %v4528, 0
    %v4550 = vsel %vm649, %v4529, 0
    %v4553 = vsel %vm649, %v4530, 0
    %4555 = vmatpush.bf16.msra.mxu0 0
    %4556 = vmatpush.bf16.msra.mxu0 0
    %4557 = vmatpush.bf16.msra.mxu0 0
    %4558 = vmatpush.bf16.msra.mxu0 0
    %4559 = vmatpush.bf16.msra.mxu0 %v4538
    %4560 = vmatpush.bf16.msra.mxu0 %v4536
    %4561 = vmatpush.bf16.msra.mxu0 %v4534
    %4562 = vmatpush.bf16.msra.mxu0 %v4532
    %4563 = vmatmul.bf16.gmra.mxu0 %v4544
    %v4564 = vpop.f32.mrf.mxu0
    %v4565 = vadd.f32 0.0, %v4564
    %v4566 = vpop.f32.mrf.mxu0
    %v4567 = vadd.f32 0.0, %v4566
    %4568 = vmatmul.bf16.gmra.mxu0 %v4547
    %v4569 = vpop.f32.mrf.mxu0
    %v4570 = vadd.f32 0.0, %v4569
    %v4571 = vpop.f32.mrf.mxu0
    %v4572 = vadd.f32 0.0, %v4571
    %4573 = vmatmul.bf16.gmra.mxu0 %v4550
    %v4574 = vpop.f32.mrf.mxu0
    %v4575 = vadd.f32 0.0, %v4574
    %v4576 = vpop.f32.mrf.mxu0
    %v4577 = vadd.f32 0.0, %v4576
    %4578 = vmatmul.bf16.gmra.mxu0 %v4553
    %v4579 = vpop.f32.mrf.mxu0
    %v4580 = vadd.f32 0.0, %v4579
    %v4581 = vpop.f32.mrf.mxu0
    %v4582 = vadd.f32 0.0, %v4581
    %4583 = vdwg.mxu0
    %v4584 = vpack.c.bf16 %v4346, %v4346
    %v4585 = vpack.c.bf16 %v4348, %v4348
    %v4586 = vpack.c.bf16 %v4351, %v4351
    %v4587 = vpack.c.bf16 %v4353, %v4353
    %v4588 = vpack.c.bf16 %v4356, %v4356
    %v4589 = vpack.c.bf16 %v4358, %v4358
    %v4590 = vpack.c.bf16 %v4361, %v4361
    %v4591 = vpack.c.bf16 %v4363, %v4363
    %v4592 = vpack.c.bf16 %v4419, %v4419
    %v4593 = vpack.c.bf16 %v4421, %v4421
    %v4594 = vpack.c.bf16 %v4424, %v4424
    %v4595 = vpack.c.bf16 %v4426, %v4426
    %v4596 = vpack.c.bf16 %v4429, %v4429
    %v4597 = vpack.c.bf16 %v4431, %v4431
    %v4598 = vpack.c.bf16 %v4434, %v4434
    %v4599 = vpack.c.bf16 %v4436, %v4436
    %v4600 = vpack.c.bf16 %v4492, %v4492
    %v4601 = vpack.c.bf16 %v4494, %v4494
    %v4602 = vpack.c.bf16 %v4497, %v4497
    %v4603 = vpack.c.bf16 %v4499, %v4499
    %v4604 = vpack.c.bf16 %v4502, %v4502
    %v4605 = vpack.c.bf16 %v4504, %v4504
    %v4606 = vpack.c.bf16 %v4507, %v4507
    %v4607 = vpack.c.bf16 %v4509, %v4509
    %v4608 = vpack.c.bf16 %v4565, %v4565
    %v4609 = vpack.c.bf16 %v4567, %v4567
    %v4610 = vpack.c.bf16 %v4570, %v4570
    %v4611 = vpack.c.bf16 %v4572, %v4572
    %v4612 = vpack.c.bf16 %v4575, %v4575
    %v4613 = vpack.c.bf16 %v4577, %v4577
    %v4614 = vpack.c.bf16 %v4580, %v4580
    %v4615 = vpack.c.bf16 %v4582, %v4582
    %s4616 = scalar_lea.vmem %s15, 16
    %v4617 = vld [vmem:[%s4616] sm:$0xf]
    %v4618 = vld [vmem:[%s4616 + $0x4] sm:$0xf]
    %v4619 = vld [vmem:[%s4616 + $0x8] sm:$0xf]
    %v4620 = vld [vmem:[%s4616 + $0xc] sm:$0xf]
    %v4629 = vunpack.c.l.b16 %v4584
    %v4630 = vunpack.c.l.b16 %v4585
    %v4631 = vunpack.c.l.b16 %v4586
    %v4632 = vunpack.c.l.b16 %v4587
    %v4633 = vunpack.c.l.b16 %v4588
    %v4634 = vunpack.c.l.b16 %v4589
    %v4635 = vunpack.c.l.b16 %v4590
    %v4636 = vunpack.c.l.b16 %v4591
    %v4637 = vpack.c.b16 %v4630, %v4629
    %v4638 = vpack.c.b16 %v4632, %v4631
    %v4639 = vpack.c.b16 %v4634, %v4633
    %v4640 = vpack.c.b16 %v4636, %v4635
    %v4642 = vsel %vm1578, %v4637, 0
    %v4645 = vsel %vm1578, %v4638, 0
    %v4648 = vsel %vm1578, %v4639, 0
    %v4651 = vsel %vm1578, %v4640, 0
    %v4654 = vsel %vm2595, %v4617, 0
    %4656 = vmatpush.bf16.msra.mxu0 0
    %4657 = vmatpush.bf16.msra.mxu0 0
    %4658 = vmatpush.bf16.msra.mxu0 0
    %4659 = vmatpush.bf16.msra.mxu0 0
    %4660 = vmatpush.bf16.msra.mxu0 0
    %4661 = vmatpush.bf16.msra.mxu0 0
    %4662 = vmatpush.bf16.msra.mxu0 0
    %4663 = vmatpush.bf16.msra.mxu0 %v4654
    %4664 = vmatmul.bf16.gmra.mxu0 %v4642
    %v4665 = vpop.f32.mrf.mxu0
    %v4666 = vadd.f32 0.0, %v4665
    %v4667 = vpop.f32.mrf.mxu0
    %v4668 = vadd.f32 0.0, %v4667
    %4669 = vmatmul.bf16.gmra.mxu0 %v4645
    %v4670 = vpop.f32.mrf.mxu0
    %v4671 = vadd.f32 0.0, %v4670
    %v4672 = vpop.f32.mrf.mxu0
    %v4673 = vadd.f32 0.0, %v4672
    %4674 = vmatmul.bf16.gmra.mxu0 %v4648
    %v4675 = vpop.f32.mrf.mxu0
    %v4676 = vadd.f32 0.0, %v4675
    %v4677 = vpop.f32.mrf.mxu0
    %v4678 = vadd.f32 0.0, %v4677
    %4679 = vmatmul.bf16.gmra.mxu0 %v4651
    %v4680 = vpop.f32.mrf.mxu0
    %v4681 = vadd.f32 0.0, %v4680
    %v4682 = vpop.f32.mrf.mxu0
    %v4683 = vadd.f32 0.0, %v4682
    %4684 = vdwg.mxu0
    %v4693 = vunpack.c.l.b16 %v4592
    %v4694 = vunpack.c.l.b16 %v4593
    %v4695 = vunpack.c.l.b16 %v4594
    %v4696 = vunpack.c.l.b16 %v4595
    %v4697 = vunpack.c.l.b16 %v4596
    %v4698 = vunpack.c.l.b16 %v4597
    %v4699 = vunpack.c.l.b16 %v4598
    %v4700 = vunpack.c.l.b16 %v4599
    %v4701 = vpack.c.b16 %v4694, %v4693
    %v4702 = vpack.c.b16 %v4696, %v4695
    %v4703 = vpack.c.b16 %v4698, %v4697
    %v4704 = vpack.c.b16 %v4700, %v4699
    %v4706 = vsel %vm1578, %v4701, 0
    %v4709 = vsel %vm1578, %v4702, 0
    %v4712 = vsel %vm1578, %v4703, 0
    %v4715 = vsel %vm1578, %v4704, 0
    %v4718 = vsel %vm2595, %v4618, 0
    %4720 = vmatpush.bf16.msra.mxu0 0
    %4721 = vmatpush.bf16.msra.mxu0 0
    %4722 = vmatpush.bf16.msra.mxu0 0
    %4723 = vmatpush.bf16.msra.mxu0 0
    %4724 = vmatpush.bf16.msra.mxu0 0
    %4725 = vmatpush.bf16.msra.mxu0 0
    %4726 = vmatpush.bf16.msra.mxu0 0
    %4727 = vmatpush.bf16.msra.mxu0 %v4718
    %4728 = vmatmul.bf16.gmra.mxu0 %v4706
    %v4729 = vpop.f32.mrf.mxu0
    %v4730 = vadd.f32 0.0, %v4729
    %v4731 = vpop.f32.mrf.mxu0
    %v4732 = vadd.f32 0.0, %v4731
    %4733 = vmatmul.bf16.gmra.mxu0 %v4709
    %v4734 = vpop.f32.mrf.mxu0
    %v4735 = vadd.f32 0.0, %v4734
    %v4736 = vpop.f32.mrf.mxu0
    %v4737 = vadd.f32 0.0, %v4736
    %4738 = vmatmul.bf16.gmra.mxu0 %v4712
    %v4739 = vpop.f32.mrf.mxu0
    %v4740 = vadd.f32 0.0, %v4739
    %v4741 = vpop.f32.mrf.mxu0
    %v4742 = vadd.f32 0.0, %v4741
    %4743 = vmatmul.bf16.gmra.mxu0 %v4715
    %v4744 = vpop.f32.mrf.mxu0
    %v4745 = vadd.f32 0.0, %v4744
    %v4746 = vpop.f32.mrf.mxu0
    %v4747 = vadd.f32 0.0, %v4746
    %4748 = vdwg.mxu0
    %v4757 = vunpack.c.l.b16 %v4600
    %v4758 = vunpack.c.l.b16 %v4601
    %v4759 = vunpack.c.l.b16 %v4602
    %v4760 = vunpack.c.l.b16 %v4603
    %v4761 = vunpack.c.l.b16 %v4604
    %v4762 = vunpack.c.l.b16 %v4605
    %v4763 = vunpack.c.l.b16 %v4606
    %v4764 = vunpack.c.l.b16 %v4607
    %v4765 = vpack.c.b16 %v4758, %v4757
    %v4766 = vpack.c.b16 %v4760, %v4759
    %v4767 = vpack.c.b16 %v4762, %v4761
    %v4768 = vpack.c.b16 %v4764, %v4763
    %v4770 = vsel %vm1578, %v4765, 0
    %v4773 = vsel %vm1578, %v4766, 0
    %v4776 = vsel %vm1578, %v4767, 0
    %v4779 = vsel %vm1578, %v4768, 0
    %v4782 = vsel %vm2595, %v4619, 0
    %4784 = vmatpush.bf16.msra.mxu0 0
    %4785 = vmatpush.bf16.msra.mxu0 0
    %4786 = vmatpush.bf16.msra.mxu0 0
    %4787 = vmatpush.bf16.msra.mxu0 0
    %4788 = vmatpush.bf16.msra.mxu0 0
    %4789 = vmatpush.bf16.msra.mxu0 0
    %4790 = vmatpush.bf16.msra.mxu0 0
    %4791 = vmatpush.bf16.msra.mxu0 %v4782
    %4792 = vmatmul.bf16.gmra.mxu0 %v4770
    %v4793 = vpop.f32.mrf.mxu0
    %v4794 = vadd.f32 0.0, %v4793
    %v4795 = vpop.f32.mrf.mxu0
    %v4796 = vadd.f32 0.0, %v4795
    %4797 = vmatmul.bf16.gmra.mxu0 %v4773
    %v4798 = vpop.f32.mrf.mxu0
    %v4799 = vadd.f32 0.0, %v4798
    %v4800 = vpop.f32.mrf.mxu0
    %v4801 = vadd.f32 0.0, %v4800
    %4802 = vmatmul.bf16.gmra.mxu0 %v4776
    %v4803 = vpop.f32.mrf.mxu0
    %v4804 = vadd.f32 0.0, %v4803
    %v4805 = vpop.f32.mrf.mxu0
    %v4806 = vadd.f32 0.0, %v4805
    %4807 = vmatmul.bf16.gmra.mxu0 %v4779
    %v4808 = vpop.f32.mrf.mxu0
    %v4809 = vadd.f32 0.0, %v4808
    %v4810 = vpop.f32.mrf.mxu0
    %v4811 = vadd.f32 0.0, %v4810
    %4812 = vdwg.mxu0
    %v4821 = vunpack.c.l.b16 %v4608
    %v4822 = vunpack.c.l.b16 %v4609
    %v4823 = vunpack.c.l.b16 %v4610
    %v4824 = vunpack.c.l.b16 %v4611
    %v4825 = vunpack.c.l.b16 %v4612
    %v4826 = vunpack.c.l.b16 %v4613
    %v4827 = vunpack.c.l.b16 %v4614
    %v4828 = vunpack.c.l.b16 %v4615
    %v4829 = vpack.c.b16 %v4822, %v4821
    %v4830 = vpack.c.b16 %v4824, %v4823
    %v4831 = vpack.c.b16 %v4826, %v4825
    %v4832 = vpack.c.b16 %v4828, %v4827
    %v4834 = vsel %vm1578, %v4829, 0
    %v4837 = vsel %vm1578, %v4830, 0
    %v4840 = vsel %vm1578, %v4831, 0
    %v4843 = vsel %vm1578, %v4832, 0
    %v4846 = vsel %vm2595, %v4620, 0
    %4848 = vmatpush.bf16.msra.mxu0 0
    %4849 = vmatpush.bf16.msra.mxu0 0
    %4850 = vmatpush.bf16.msra.mxu0 0
    %4851 = vmatpush.bf16.msra.mxu0 0
    %4852 = vmatpush.bf16.msra.mxu0 0
    %4853 = vmatpush.bf16.msra.mxu0 0
    %4854 = vmatpush.bf16.msra.mxu0 0
    %4855 = vmatpush.bf16.msra.mxu0 %v4846
    %4856 = vmatmul.bf16.gmra.mxu0 %v4834
    %v4857 = vpop.f32.mrf.mxu0
    %v4858 = vadd.f32 0.0, %v4857
    %v4859 = vpop.f32.mrf.mxu0
    %v4860 = vadd.f32 0.0, %v4859
    %4861 = vmatmul.bf16.gmra.mxu0 %v4837
    %v4862 = vpop.f32.mrf.mxu0
    %v4863 = vadd.f32 0.0, %v4862
    %v4864 = vpop.f32.mrf.mxu0
    %v4865 = vadd.f32 0.0, %v4864
    %4866 = vmatmul.bf16.gmra.mxu0 %v4840
    %v4867 = vpop.f32.mrf.mxu0
    %v4868 = vadd.f32 0.0, %v4867
    %v4869 = vpop.f32.mrf.mxu0
    %v4870 = vadd.f32 0.0, %v4869
    %4871 = vmatmul.bf16.gmra.mxu0 %v4843
    %v4872 = vpop.f32.mrf.mxu0
    %v4873 = vadd.f32 0.0, %v4872
    %v4874 = vpop.f32.mrf.mxu0
    %v4875 = vadd.f32 0.0, %v4874
    %4876 = vdwg.mxu0
    %v4877 = vsel %vm447, %v4666, 0.0
    %v4878 = vsel %vm447, %v4730, 0.0
    %v4879 = vadd.f32 %v4877, %v4878
    %v4880 = vsel %vm447, %v4794, 0.0
    %v4881 = vadd.f32 %v4879, %v4880
    %v4882 = vsel %vm447, %v4858, 0.0
    %v4883 = vadd.f32 %v4881, %v4882
    %v4884 = vsel %vm447, %v4668, 0.0
    %v4885 = vsel %vm447, %v4732, 0.0
    %v4886 = vadd.f32 %v4884, %v4885
    %v4887 = vsel %vm447, %v4796, 0.0
    %v4888 = vadd.f32 %v4886, %v4887
    %v4889 = vsel %vm447, %v4860, 0.0
    %v4890 = vadd.f32 %v4888, %v4889
    %v4891 = vsel %vm447, %v4671, 0.0
    %v4892 = vsel %vm447, %v4735, 0.0
    %v4893 = vadd.f32 %v4891, %v4892
    %v4894 = vsel %vm447, %v4799, 0.0
    %v4895 = vadd.f32 %v4893, %v4894
    %v4896 = vsel %vm447, %v4863, 0.0
    %v4897 = vadd.f32 %v4895, %v4896
    %v4898 = vsel %vm447, %v4673, 0.0
    %v4899 = vsel %vm447, %v4737, 0.0
    %v4900 = vadd.f32 %v4898, %v4899
    %v4901 = vsel %vm447, %v4801, 0.0
    %v4902 = vadd.f32 %v4900, %v4901
    %v4903 = vsel %vm447, %v4865, 0.0
    %v4904 = vadd.f32 %v4902, %v4903
    %v4905 = vsel %vm447, %v4676, 0.0
    %v4906 = vsel %vm447, %v4740, 0.0
    %v4907 = vadd.f32 %v4905, %v4906
    %v4908 = vsel %vm447, %v4804, 0.0
    %v4909 = vadd.f32 %v4907, %v4908
    %v4910 = vsel %vm447, %v4868, 0.0
    %v4911 = vadd.f32 %v4909, %v4910
    %v4912 = vsel %vm447, %v4678, 0.0
    %v4913 = vsel %vm447, %v4742, 0.0
    %v4914 = vadd.f32 %v4912, %v4913
    %v4915 = vsel %vm447, %v4806, 0.0
    %v4916 = vadd.f32 %v4914, %v4915
    %v4917 = vsel %vm447, %v4870, 0.0
    %v4918 = vadd.f32 %v4916, %v4917
    %v4919 = vsel %vm447, %v4681, 0.0
    %v4920 = vsel %vm447, %v4745, 0.0
    %v4921 = vadd.f32 %v4919, %v4920
    %v4922 = vsel %vm447, %v4809, 0.0
    %v4923 = vadd.f32 %v4921, %v4922
    %v4924 = vsel %vm447, %v4873, 0.0
    %v4925 = vadd.f32 %v4923, %v4924
    %v4926 = vsel %vm447, %v4683, 0.0
    %v4927 = vsel %vm447, %v4747, 0.0
    %v4928 = vadd.f32 %v4926, %v4927
    %v4929 = vsel %vm447, %v4811, 0.0
    %v4930 = vadd.f32 %v4928, %v4929
    %v4931 = vsel %vm447, %v4875, 0.0
    %v4932 = vadd.f32 %v4930, %v4931
    %s4933 = scalar_lea.vmem %s16, 1
    %v4934 = vld [vmem:[%s4933] sm:$0x1]
    %v4936 = vperm.slane %v4934, 0
    %v4938 = vadd.f32 %v4883, %v4936
    %v4939 = vadd.f32 %v4890, %v4936
    %v4940 = vadd.f32 %v4897, %v4936
    %v4941 = vadd.f32 %v4904, %v4936
    %v4942 = vadd.f32 %v4911, %v4936
    %v4943 = vadd.f32 %v4918, %v4936
    %v4944 = vadd.f32 %v4925, %v4936
    %v4945 = vadd.f32 %v4932, %v4936
    %v4946 = vadd.f32 %v3477, %v4938
    %v4947 = vadd.f32 %v3478, %v4939
    %v4948 = vadd.f32 %v3479, %v4940
    %v4949 = vadd.f32 %v3480, %v4941
    %v4950 = vadd.f32 %v3481, %v4942
    %v4951 = vadd.f32 %v3482, %v4943
    %v4952 = vadd.f32 %v3483, %v4944
    %v4953 = vadd.f32 %v3484, %v4945
    %v4954 = vsel %vm447, %v4946, 0.0
    %4955 = vadd.xlane.f32.xlu0 %v4954
    %v4956 = vpop.xlane.xlu0 %4955
    %v4957 = vsel %vm447, %v4947, 0.0
    %4958 = vadd.xlane.f32.xlu0 %v4957
    %v4959 = vpop.xlane.xlu0 %4958
    %v4960 = vsel %vm447, %v4948, 0.0
    %4961 = vadd.xlane.f32.xlu0 %v4960
    %v4962 = vpop.xlane.xlu0 %4961
    %v4963 = vsel %vm447, %v4949, 0.0
    %4964 = vadd.xlane.f32.xlu0 %v4963
    %v4965 = vpop.xlane.xlu0 %4964
    %v4966 = vsel %vm447, %v4950, 0.0
    %4967 = vadd.xlane.f32.xlu0 %v4966
    %v4968 = vpop.xlane.xlu0 %4967
    %v4969 = vsel %vm447, %v4951, 0.0
    %4970 = vadd.xlane.f32.xlu0 %v4969
    %v4971 = vpop.xlane.xlu0 %4970
    %v4972 = vsel %vm447, %v4952, 0.0
    %4973 = vadd.xlane.f32.xlu0 %v4972
    %v4974 = vpop.xlane.xlu0 %4973
    %v4975 = vsel %vm447, %v4953, 0.0
    %4976 = vadd.xlane.f32.xlu0 %v4975
    %v4977 = vpop.xlane.xlu0 %4976
    %v4978 = vmul.f32 %v4956, %v2926
    %v4979 = vmul.f32 %v4959, %v2926
    %v4980 = vmul.f32 %v4962, %v2926
    %v4981 = vmul.f32 %v4965, %v2926
    %v4982 = vmul.f32 %v4968, %v2926
    %v4983 = vmul.f32 %v4971, %v2926
    %v4984 = vmul.f32 %v4974, %v2926
    %v4985 = vmul.f32 %v4977, %v2926
    %v4986 = vsub.f32 %v4946, %v4978
    %v4987 = vsub.f32 %v4947, %v4979
    %v4988 = vsub.f32 %v4948, %v4980
    %v4989 = vsub.f32 %v4949, %v4981
    %v4990 = vsub.f32 %v4950, %v4982
    %v4991 = vsub.f32 %v4951, %v4983
    %v4992 = vsub.f32 %v4952, %v4984
    %v4993 = vsub.f32 %v4953, %v4985
    %v4994 = vmul.f32 %v4986, %v4986
    %v4995 = vmul.f32 %v4987, %v4987
    %v4996 = vmul.f32 %v4988, %v4988
    %v4997 = vmul.f32 %v4989, %v4989
    %v4998 = vmul.f32 %v4990, %v4990
    %v4999 = vmul.f32 %v4991, %v4991
    %v5000 = vmul.f32 %v4992, %v4992
    %v5001 = vmul.f32 %v4993, %v4993
    %v5002 = vsel %vm447, %v4994, 0.0
    %5003 = vadd.xlane.f32.xlu0 %v5002
    %v5004 = vpop.xlane.xlu0 %5003
    %v5005 = vsel %vm447, %v4995, 0.0
    %5006 = vadd.xlane.f32.xlu0 %v5005
    %v5007 = vpop.xlane.xlu0 %5006
    %v5008 = vsel %vm447, %v4996, 0.0
    %5009 = vadd.xlane.f32.xlu0 %v5008
    %v5010 = vpop.xlane.xlu0 %5009
    %v5011 = vsel %vm447, %v4997, 0.0
    %5012 = vadd.xlane.f32.xlu0 %v5011
    %v5013 = vpop.xlane.xlu0 %5012
    %v5014 = vsel %vm447, %v4998, 0.0
    %5015 = vadd.xlane.f32.xlu0 %v5014
    %v5016 = vpop.xlane.xlu0 %5015
    %v5017 = vsel %vm447, %v4999, 0.0
    %5018 = vadd.xlane.f32.xlu0 %v5017
    %v5019 = vpop.xlane.xlu0 %5018
    %v5020 = vsel %vm447, %v5000, 0.0
    %5021 = vadd.xlane.f32.xlu0 %v5020
    %v5022 = vpop.xlane.xlu0 %5021
    %v5023 = vsel %vm447, %v5001, 0.0
    %5024 = vadd.xlane.f32.xlu0 %v5023
    %v5025 = vpop.xlane.xlu0 %5024
    %v5026 = vmul.f32 %v5004, %v2926
    %v5027 = vmul.f32 %v5007, %v2926
    %v5028 = vmul.f32 %v5010, %v2926
    %v5029 = vmul.f32 %v5013, %v2926
    %v5030 = vmul.f32 %v5016, %v2926
    %v5031 = vmul.f32 %v5019, %v2926
    %v5032 = vmul.f32 %v5022, %v2926
    %v5033 = vmul.f32 %v5025, %v2926
    %v5034 = vadd.f32 %v5026, 1e-05
    %v5035 = vadd.f32 %v5027, 1e-05
    %v5036 = vadd.f32 %v5028, 1e-05
    %v5037 = vadd.f32 %v5029, 1e-05
    %v5038 = vadd.f32 %v5030, 1e-05
    %v5039 = vadd.f32 %v5031, 1e-05
    %v5040 = vadd.f32 %v5032, 1e-05
    %v5041 = vadd.f32 %v5033, 1e-05
    %v5042 = vrsqrt.pop %v5034
    %v5043 = vmul.f32 %v5042, %v5034
    %v5044 = vmul.f32 %v5043, %v5042
    %v5045 = vmul.f32 0.5, %v5044
    %v5046 = vsub.f32 1.5, %v5045
    %v5047 = vmul.f32 %v5042, %v5046
    %vm5048 = vweird.f32 %v5034
    %vm5049 = vweird.f32 %v5042
    %vm5050 = vmor %vm5048, %vm5049
    %v5051 = vsel %vm5050, %v5042, %v5047
    %v5052 = vrsqrt.pop %v5035
    %v5053 = vmul.f32 %v5052, %v5035
    %v5054 = vmul.f32 %v5053, %v5052
    %v5055 = vmul.f32 0.5, %v5054
    %v5056 = vsub.f32 1.5, %v5055
    %v5057 = vmul.f32 %v5052, %v5056
    %vm5058 = vweird.f32 %v5035
    %vm5059 = vweird.f32 %v5052
    %vm5060 = vmor %vm5058, %vm5059
    %v5061 = vsel %vm5060, %v5052, %v5057
    %v5062 = vrsqrt.pop %v5036
    %v5063 = vmul.f32 %v5062, %v5036
    %v5064 = vmul.f32 %v5063, %v5062
    %v5065 = vmul.f32 0.5, %v5064
    %v5066 = vsub.f32 1.5, %v5065
    %v5067 = vmul.f32 %v5062, %v5066
    %vm5068 = vweird.f32 %v5036
    %vm5069 = vweird.f32 %v5062
    %vm5070 = vmor %vm5068, %vm5069
    %v5071 = vsel %vm5070, %v5062, %v5067
    %v5072 = vrsqrt.pop %v5037
    %v5073 = vmul.f32 %v5072, %v5037
    %v5074 = vmul.f32 %v5073, %v5072
    %v5075 = vmul.f32 0.5, %v5074
    %v5076 = vsub.f32 1.5, %v5075
    %v5077 = vmul.f32 %v5072, %v5076
    %vm5078 = vweird.f32 %v5037
    %vm5079 = vweird.f32 %v5072
    %vm5080 = vmor %vm5078, %vm5079
    %v5081 = vsel %vm5080, %v5072, %v5077
    %v5082 = vrsqrt.pop %v5038
    %v5083 = vmul.f32 %v5082, %v5038
    %v5084 = vmul.f32 %v5083, %v5082
    %v5085 = vmul.f32 0.5, %v5084
    %v5086 = vsub.f32 1.5, %v5085
    %v5087 = vmul.f32 %v5082, %v5086
    %vm5088 = vweird.f32 %v5038
    %vm5089 = vweird.f32 %v5082
    %vm5090 = vmor %vm5088, %vm5089
    %v5091 = vsel %vm5090, %v5082, %v5087
    %v5092 = vrsqrt.pop %v5039
    %v5093 = vmul.f32 %v5092, %v5039
    %v5094 = vmul.f32 %v5093, %v5092
    %v5095 = vmul.f32 0.5, %v5094
    %v5096 = vsub.f32 1.5, %v5095
    %v5097 = vmul.f32 %v5092, %v5096
    %vm5098 = vweird.f32 %v5039
    %vm5099 = vweird.f32 %v5092
    %vm5100 = vmor %vm5098, %vm5099
    %v5101 = vsel %vm5100, %v5092, %v5097
    %v5102 = vrsqrt.pop %v5040
    %v5103 = vmul.f32 %v5102, %v5040
    %v5104 = vmul.f32 %v5103, %v5102
    %v5105 = vmul.f32 0.5, %v5104
    %v5106 = vsub.f32 1.5, %v5105
    %v5107 = vmul.f32 %v5102, %v5106
    %vm5108 = vweird.f32 %v5040
    %vm5109 = vweird.f32 %v5102
    %vm5110 = vmor %vm5108, %vm5109
    %v5111 = vsel %vm5110, %v5102, %v5107
    %v5112 = vrsqrt.pop %v5041
    %v5113 = vmul.f32 %v5112, %v5041
    %v5114 = vmul.f32 %v5113, %v5112
    %v5115 = vmul.f32 0.5, %v5114
    %v5116 = vsub.f32 1.5, %v5115
    %v5117 = vmul.f32 %v5112, %v5116
    %vm5118 = vweird.f32 %v5041
    %vm5119 = vweird.f32 %v5112
    %vm5120 = vmor %vm5118, %vm5119
    %v5121 = vsel %vm5120, %v5112, %v5117
    %v5122 = vmul.f32 %v4986, %v5051
    %v5123 = vmul.f32 %v4987, %v5061
    %v5124 = vmul.f32 %v4988, %v5071
    %v5125 = vmul.f32 %v4989, %v5081
    %v5126 = vmul.f32 %v4990, %v5091
    %v5127 = vmul.f32 %v4991, %v5101
    %v5128 = vmul.f32 %v4992, %v5111
    %v5129 = vmul.f32 %v4993, %v5121
    %s5130 = scalar_lea.vmem %s17, 1
    %v5131 = vld [vmem:[%s5130] sm:$0x1]
    %v5133 = vperm.slane %v5131, 0
    %v5135 = vmul.f32 %v5122, %v5133
    %v5136 = vmul.f32 %v5123, %v5133
    %v5137 = vmul.f32 %v5124, %v5133
    %v5138 = vmul.f32 %v5125, %v5133
    %v5139 = vmul.f32 %v5126, %v5133
    %v5140 = vmul.f32 %v5127, %v5133
    %v5141 = vmul.f32 %v5128, %v5133
    %v5142 = vmul.f32 %v5129, %v5133
    %s5143 = scalar_lea.vmem %s18, 1
    %v5144 = vld [vmem:[%s5143] sm:$0x1]
    %v5146 = vperm.slane %v5144, 0
    %v5148 = vadd.f32 %v5135, %v5146
    %v5149 = vadd.f32 %v5136, %v5146
    %v5150 = vadd.f32 %v5137, %v5146
    %v5151 = vadd.f32 %v5138, %v5146
    %v5152 = vadd.f32 %v5139, %v5146
    %v5153 = vadd.f32 %v5140, %v5146
    %v5154 = vadd.f32 %v5141, %v5146
    %v5155 = vadd.f32 %v5142, %v5146
    %v5156 = vpack.c.bf16 %v5149, %v5148
    %v5157 = vpack.c.bf16 %v5151, %v5150
    %v5158 = vpack.c.bf16 %v5153, %v5152
    %v5159 = vpack.c.bf16 %v5155, %v5154
    %s5160 = scalar_lea.vmem %s19, 16
    %v5161 = vld [vmem:[%s5160] sm:$0xf]
    %v5162 = vld [vmem:[%s5160 + $0x4] sm:$0xf]
    %v5163 = vld [vmem:[%s5160 + $0x8] sm:$0xf]
    %v5164 = vld [vmem:[%s5160 + $0xc] sm:$0xf]
    %s5165 = scalar_lea.vmem %s20, 1
    %v5166 = vld [vmem:[%s5165] sm:$0x1]
    %v5168 = vperm.slane %v5166, 0
    %v5174 = vunpack.c.l.b16 %v5161
    %v5175 = vunpack.c.l.b16 %v5162
    %v5176 = vunpack.c.l.b16 %v5163
    %v5177 = vunpack.c.l.b16 %v5164
    %v5178 = vpack.c.b16 %v5175, %v5174
    %v5179 = vpack.c.b16 %v5177, %v5176
    %v5183 = vsel %vm447, %v5156, 0
    %v5186 = vsel %vm447, %v5157, 0
    %v5189 = vsel %vm447, %v5158, 0
    %v5192 = vsel %vm447, %v5159, 0
    %5194 = vmatpush.bf16.msra.mxu0 0
    %5195 = vmatpush.bf16.msra.mxu0 0
    %5196 = vmatpush.bf16.msra.mxu0 0
    %5197 = vmatpush.bf16.msra.mxu0 0
    %5198 = vmatpush.bf16.msra.mxu0 0
    %5199 = vmatpush.bf16.msra.mxu0 0
    %5200 = vmatpush.bf16.msra.mxu0 %v5179
    %5201 = vmatpush.bf16.msra.mxu0 %v5178
    %5202 = vmatmul.bf16.gmra.mxu0 %v5183
    %v5203 = vpop.f32.mrf.mxu0
    %v5204 = vadd.f32 %v5168, %v5203
    %v5205 = vpop.f32.mrf.mxu0
    %v5206 = vadd.f32 %v5168, %v5205
    %5207 = vmatmul.bf16.gmra.mxu0 %v5186
    %v5208 = vpop.f32.mrf.mxu0
    %v5209 = vadd.f32 %v5168, %v5208
    %v5210 = vpop.f32.mrf.mxu0
    %v5211 = vadd.f32 %v5168, %v5210
    %5212 = vmatmul.bf16.gmra.mxu0 %v5189
    %v5213 = vpop.f32.mrf.mxu0
    %v5214 = vadd.f32 %v5168, %v5213
    %v5215 = vpop.f32.mrf.mxu0
    %v5216 = vadd.f32 %v5168, %v5215
    %5217 = vmatmul.bf16.gmra.mxu0 %v5192
    %v5218 = vpop.f32.mrf.mxu0
    %v5219 = vadd.f32 %v5168, %v5218
    %v5220 = vpop.f32.mrf.mxu0
    %v5221 = vadd.f32 %v5168, %v5220
    %5222 = vdwg.mxu0
    %v5223 = vmax.f32 %v5204, 0.0
    %v5224 = vmax.f32 %v5206, 0.0
    %v5225 = vmax.f32 %v5209, 0.0
    %v5226 = vmax.f32 %v5211, 0.0
    %v5227 = vmax.f32 %v5214, 0.0
    %v5228 = vmax.f32 %v5216, 0.0
    %v5229 = vmax.f32 %v5219, 0.0
    %v5230 = vmax.f32 %v5221, 0.0
    %v5231 = vpack.c.bf16 %v5224, %v5223
    %v5232 = vpack.c.bf16 %v5226, %v5225
    %v5233 = vpack.c.bf16 %v5228, %v5227
    %v5234 = vpack.c.bf16 %v5230, %v5229
    %s5235 = scalar_lea.vmem %s21, 64
    %v5236 = vld [vmem:[%s5235] sm:$0xf]
    %v5237 = vld [vmem:[%s5235 + $0x4] sm:$0xf]
    %v5238 = vld [vmem:[%s5235 + $0x8] sm:$0xf]
    %v5239 = vld [vmem:[%s5235 + $0xc] sm:$0xf]
    %v5240 = vld [vmem:[%s5235 + $0x10] sm:$0xf]
    %v5241 = vld [vmem:[%s5235 + $0x14] sm:$0xf]
    %v5242 = vld [vmem:[%s5235 + $0x18] sm:$0xf]
    %v5243 = vld [vmem:[%s5235 + $0x1c] sm:$0xf]
    %v5244 = vld [vmem:[%s5235 + $0x20] sm:$0xf]
    %v5245 = vld [vmem:[%s5235 + $0x24] sm:$0xf]
    %v5246 = vld [vmem:[%s5235 + $0x28] sm:$0xf]
    %v5247 = vld [vmem:[%s5235 + $0x2c] sm:$0xf]
    %v5248 = vld [vmem:[%s5235 + $0x30] sm:$0xf]
    %v5249 = vld [vmem:[%s5235 + $0x34] sm:$0xf]
    %v5250 = vld [vmem:[%s5235 + $0x38] sm:$0xf]
    %v5251 = vld [vmem:[%s5235 + $0x3c] sm:$0xf]
    %s5252 = scalar_lea.vmem %s22, 1
    %v5253 = vld [vmem:[%s5252] sm:$0x1]
    %v5255 = vperm.slane %v5253, 0
    %v5273 = vunpack.c.l.b16 %v5236
    %v5274 = vunpack.c.l.b16 %v5237
    %v5275 = vunpack.c.l.b16 %v5238
    %v5276 = vunpack.c.l.b16 %v5239
    %v5277 = vunpack.c.l.b16 %v5240
    %v5278 = vunpack.c.l.b16 %v5241
    %v5279 = vunpack.c.l.b16 %v5242
    %v5280 = vunpack.c.l.b16 %v5243
    %v5281 = vunpack.c.l.b16 %v5244
    %v5282 = vunpack.c.l.b16 %v5245
    %v5283 = vunpack.c.l.b16 %v5246
    %v5284 = vunpack.c.l.b16 %v5247
    %v5285 = vunpack.c.l.b16 %v5248
    %v5286 = vunpack.c.l.b16 %v5249
    %v5287 = vunpack.c.l.b16 %v5250
    %v5288 = vunpack.c.l.b16 %v5251
    %v5289 = vpack.c.b16 %v5274, %v5273
    %v5290 = vpack.c.b16 %v5276, %v5275
    %v5291 = vpack.c.b16 %v5278, %v5277
    %v5292 = vpack.c.b16 %v5280, %v5279
    %v5293 = vpack.c.b16 %v5282, %v5281
    %v5294 = vpack.c.b16 %v5284, %v5283
    %v5295 = vpack.c.b16 %v5286, %v5285
    %v5296 = vpack.c.b16 %v5288, %v5287
    %5305 = vmatpush.bf16.msra.mxu0 %v5296
    %5306 = vmatpush.bf16.msra.mxu0 %v5295
    %5307 = vmatpush.bf16.msra.mxu0 %v5294
    %5308 = vmatpush.bf16.msra.mxu0 %v5293
    %5309 = vmatpush.bf16.msra.mxu0 %v5292
    %5310 = vmatpush.bf16.msra.mxu0 %v5291
    %5311 = vmatpush.bf16.msra.mxu0 %v5290
    %5312 = vmatpush.bf16.msra.mxu0 %v5289
    %5313 = vmatmul.bf16.gmra.mxu0 %v5231
    %v5314 = vpop.f32.mrf.mxu0
    %v5315 = vadd.f32 %v5255, %v5314
    %v5316 = vpop.f32.mrf.mxu0
    %v5317 = vadd.f32 %v5255, %v5316
    %5318 = vmatmul.bf16.gmra.mxu0 %v5232
    %v5319 = vpop.f32.mrf.mxu0
    %v5320 = vadd.f32 %v5255, %v5319
    %v5321 = vpop.f32.mrf.mxu0
    %v5322 = vadd.f32 %v5255, %v5321
    %5323 = vmatmul.bf16.gmra.mxu0 %v5233
    %v5324 = vpop.f32.mrf.mxu0
    %v5325 = vadd.f32 %v5255, %v5324
    %v5326 = vpop.f32.mrf.mxu0
    %v5327 = vadd.f32 %v5255, %v5326
    %5328 = vmatmul.bf16.gmra.mxu0 %v5234
    %v5329 = vpop.f32.mrf.mxu0
    %v5330 = vadd.f32 %v5255, %v5329
    %v5331 = vpop.f32.mrf.mxu0
    %v5332 = vadd.f32 %v5255, %v5331
    %5333 = vdwg.mxu0
    %v5334 = vadd.f32 %v5148, %v5315
    %v5335 = vadd.f32 %v5149, %v5317
    %v5336 = vadd.f32 %v5150, %v5320
    %v5337 = vadd.f32 %v5151, %v5322
    %v5338 = vadd.f32 %v5152, %v5325
    %v5339 = vadd.f32 %v5153, %v5327
    %v5340 = vadd.f32 %v5154, %v5330
    %v5341 = vadd.f32 %v5155, %v5332
    %v5342 = vsel %vm447, %v5334, 0.0
    %5343 = vadd.xlane.f32.xlu0 %v5342
    %v5344 = vpop.xlane.xlu0 %5343
    %v5345 = vsel %vm447, %v5335, 0.0
    %5346 = vadd.xlane.f32.xlu0 %v5345
    %v5347 = vpop.xlane.xlu0 %5346
    %v5348 = vsel %vm447, %v5336, 0.0
    %5349 = vadd.xlane.f32.xlu0 %v5348
    %v5350 = vpop.xlane.xlu0 %5349
    %v5351 = vsel %vm447, %v5337, 0.0
    %5352 = vadd.xlane.f32.xlu0 %v5351
    %v5353 = vpop.xlane.xlu0 %5352
    %v5354 = vsel %vm447, %v5338, 0.0
    %5355 = vadd.xlane.f32.xlu0 %v5354
    %v5356 = vpop.xlane.xlu0 %5355
    %v5357 = vsel %vm447, %v5339, 0.0
    %5358 = vadd.xlane.f32.xlu0 %v5357
    %v5359 = vpop.xlane.xlu0 %5358
    %v5360 = vsel %vm447, %v5340, 0.0
    %5361 = vadd.xlane.f32.xlu0 %v5360
    %v5362 = vpop.xlane.xlu0 %5361
    %v5363 = vsel %vm447, %v5341, 0.0
    %5364 = vadd.xlane.f32.xlu0 %v5363
    %v5365 = vpop.xlane.xlu0 %5364
    %v5366 = vmul.f32 %v5344, %v2926
    %v5367 = vmul.f32 %v5347, %v2926
    %v5368 = vmul.f32 %v5350, %v2926
    %v5369 = vmul.f32 %v5353, %v2926
    %v5370 = vmul.f32 %v5356, %v2926
    %v5371 = vmul.f32 %v5359, %v2926
    %v5372 = vmul.f32 %v5362, %v2926
    %v5373 = vmul.f32 %v5365, %v2926
    %v5374 = vsub.f32 %v5334, %v5366
    %v5375 = vsub.f32 %v5335, %v5367
    %v5376 = vsub.f32 %v5336, %v5368
    %v5377 = vsub.f32 %v5337, %v5369
    %v5378 = vsub.f32 %v5338, %v5370
    %v5379 = vsub.f32 %v5339, %v5371
    %v5380 = vsub.f32 %v5340, %v5372
    %v5381 = vsub.f32 %v5341, %v5373
    %v5382 = vmul.f32 %v5374, %v5374
    %v5383 = vmul.f32 %v5375, %v5375
    %v5384 = vmul.f32 %v5376, %v5376
    %v5385 = vmul.f32 %v5377, %v5377
    %v5386 = vmul.f32 %v5378, %v5378
    %v5387 = vmul.f32 %v5379, %v5379
    %v5388 = vmul.f32 %v5380, %v5380
    %v5389 = vmul.f32 %v5381, %v5381
    %v5390 = vsel %vm447, %v5382, 0.0
    %5391 = vadd.xlane.f32.xlu0 %v5390
    %v5392 = vpop.xlane.xlu0 %5391
    %v5393 = vsel %vm447, %v5383, 0.0
    %5394 = vadd.xlane.f32.xlu0 %v5393
    %v5395 = vpop.xlane.xlu0 %5394
    %v5396 = vsel %vm447, %v5384, 0.0
    %5397 = vadd.xlane.f32.xlu0 %v5396
    %v5398 = vpop.xlane.xlu0 %5397
    %v5399 = vsel %vm447, %v5385, 0.0
    %5400 = vadd.xlane.f32.xlu0 %v5399
    %v5401 = vpop.xlane.xlu0 %5400
    %v5402 = vsel %vm447, %v5386, 0.0
    %5403 = vadd.xlane.f32.xlu0 %v5402
    %v5404 = vpop.xlane.xlu0 %5403
    %v5405 = vsel %vm447, %v5387, 0.0
    %5406 = vadd.xlane.f32.xlu0 %v5405
    %v5407 = vpop.xlane.xlu0 %5406
    %v5408 = vsel %vm447, %v5388, 0.0
    %5409 = vadd.xlane.f32.xlu0 %v5408
    %v5410 = vpop.xlane.xlu0 %5409
    %v5411 = vsel %vm447, %v5389, 0.0
    %5412 = vadd.xlane.f32.xlu0 %v5411
    %v5413 = vpop.xlane.xlu0 %5412
    %v5414 = vmul.f32 %v5392, %v2926
    %v5415 = vmul.f32 %v5395, %v2926
    %v5416 = vmul.f32 %v5398, %v2926
    %v5417 = vmul.f32 %v5401, %v2926
    %v5418 = vmul.f32 %v5404, %v2926
    %v5419 = vmul.f32 %v5407, %v2926
    %v5420 = vmul.f32 %v5410, %v2926
    %v5421 = vmul.f32 %v5413, %v2926
    %v5422 = vadd.f32 %v5414, 1e-05
    %v5423 = vadd.f32 %v5415, 1e-05
    %v5424 = vadd.f32 %v5416, 1e-05
    %v5425 = vadd.f32 %v5417, 1e-05
    %v5426 = vadd.f32 %v5418, 1e-05
    %v5427 = vadd.f32 %v5419, 1e-05
    %v5428 = vadd.f32 %v5420, 1e-05
    %v5429 = vadd.f32 %v5421, 1e-05
    %v5430 = vrsqrt.pop %v5422
    %v5431 = vmul.f32 %v5430, %v5422
    %v5432 = vmul.f32 %v5431, %v5430
    %v5433 = vmul.f32 0.5, %v5432
    %v5434 = vsub.f32 1.5, %v5433
    %v5435 = vmul.f32 %v5430, %v5434
    %vm5436 = vweird.f32 %v5422
    %vm5437 = vweird.f32 %v5430
    %vm5438 = vmor %vm5436, %vm5437
    %v5439 = vsel %vm5438, %v5430, %v5435
    %v5440 = vrsqrt.pop %v5423
    %v5441 = vmul.f32 %v5440, %v5423
    %v5442 = vmul.f32 %v5441, %v5440
    %v5443 = vmul.f32 0.5, %v5442
    %v5444 = vsub.f32 1.5, %v5443
    %v5445 = vmul.f32 %v5440, %v5444
    %vm5446 = vweird.f32 %v5423
    %vm5447 = vweird.f32 %v5440
    %vm5448 = vmor %vm5446, %vm5447
    %v5449 = vsel %vm5448, %v5440, %v5445
    %v5450 = vrsqrt.pop %v5424
    %v5451 = vmul.f32 %v5450, %v5424
    %v5452 = vmul.f32 %v5451, %v5450
    %v5453 = vmul.f32 0.5, %v5452
    %v5454 = vsub.f32 1.5, %v5453
    %v5455 = vmul.f32 %v5450, %v5454
    %vm5456 = vweird.f32 %v5424
    %vm5457 = vweird.f32 %v5450
    %vm5458 = vmor %vm5456, %vm5457
    %v5459 = vsel %vm5458, %v5450, %v5455
    %v5460 = vrsqrt.pop %v5425
    %v5461 = vmul.f32 %v5460, %v5425
    %v5462 = vmul.f32 %v5461, %v5460
    %v5463 = vmul.f32 0.5, %v5462
    %v5464 = vsub.f32 1.5, %v5463
    %v5465 = vmul.f32 %v5460, %v5464
    %vm5466 = vweird.f32 %v5425
    %vm5467 = vweird.f32 %v5460
    %vm5468 = vmor %vm5466, %vm5467
    %v5469 = vsel %vm5468, %v5460, %v5465
    %v5470 = vrsqrt.pop %v5426
    %v5471 = vmul.f32 %v5470, %v5426
    %v5472 = vmul.f32 %v5471, %v5470
    %v5473 = vmul.f32 0.5, %v5472
    %v5474 = vsub.f32 1.5, %v5473
    %v5475 = vmul.f32 %v5470, %v5474
    %vm5476 = vweird.f32 %v5426
    %vm5477 = vweird.f32 %v5470
    %vm5478 = vmor %vm5476, %vm5477
    %v5479 = vsel %vm5478, %v5470, %v5475
    %v5480 = vrsqrt.pop %v5427
    %v5481 = vmul.f32 %v5480, %v5427
    %v5482 = vmul.f32 %v5481, %v5480
    %v5483 = vmul.f32 0.5, %v5482
    %v5484 = vsub.f32 1.5, %v5483
    %v5485 = vmul.f32 %v5480, %v5484
    %vm5486 = vweird.f32 %v5427
    %vm5487 = vweird.f32 %v5480
    %vm5488 = vmor %vm5486, %vm5487
    %v5489 = vsel %vm5488, %v5480, %v5485
    %v5490 = vrsqrt.pop %v5428
    %v5491 = vmul.f32 %v5490, %v5428
    %v5492 = vmul.f32 %v5491, %v5490
    %v5493 = vmul.f32 0.5, %v5492
    %v5494 = vsub.f32 1.5, %v5493
    %v5495 = vmul.f32 %v5490, %v5494
    %vm5496 = vweird.f32 %v5428
    %vm5497 = vweird.f32 %v5490
    %vm5498 = vmor %vm5496, %vm5497
    %v5499 = vsel %vm5498, %v5490, %v5495
    %v5500 = vrsqrt.pop %v5429
    %v5501 = vmul.f32 %v5500, %v5429
    %v5502 = vmul.f32 %v5501, %v5500
    %v5503 = vmul.f32 0.5, %v5502
    %v5504 = vsub.f32 1.5, %v5503
    %v5505 = vmul.f32 %v5500, %v5504
    %vm5506 = vweird.f32 %v5429
    %vm5507 = vweird.f32 %v5500
    %vm5508 = vmor %vm5506, %vm5507
    %v5509 = vsel %vm5508, %v5500, %v5505
    %v5510 = vmul.f32 %v5374, %v5439
    %v5511 = vmul.f32 %v5375, %v5449
    %v5512 = vmul.f32 %v5376, %v5459
    %v5513 = vmul.f32 %v5377, %v5469
    %v5514 = vmul.f32 %v5378, %v5479
    %v5515 = vmul.f32 %v5379, %v5489
    %v5516 = vmul.f32 %v5380, %v5499
    %v5517 = vmul.f32 %v5381, %v5509
    %s5518 = scalar_lea.vmem %s23, 1
    %v5519 = vld [vmem:[%s5518] sm:$0x1]
    %v5521 = vperm.slane %v5519, 0
    %v5523 = vmul.f32 %v5510, %v5521
    %v5524 = vmul.f32 %v5511, %v5521
    %v5525 = vmul.f32 %v5512, %v5521
    %v5526 = vmul.f32 %v5513, %v5521
    %v5527 = vmul.f32 %v5514, %v5521
    %v5528 = vmul.f32 %v5515, %v5521
    %v5529 = vmul.f32 %v5516, %v5521
    %v5530 = vmul.f32 %v5517, %v5521
    %s5531 = scalar_lea.vmem %s24, 1
    %v5532 = vld [vmem:[%s5531] sm:$0x1]
    %v5534 = vperm.slane %v5532, 0
    %v5536 = vadd.f32 %v5523, %v5534
    %v5537 = vadd.f32 %v5524, %v5534
    %v5538 = vadd.f32 %v5525, %v5534
    %v5539 = vadd.f32 %v5526, %v5534
    %v5540 = vadd.f32 %v5527, %v5534
    %v5541 = vadd.f32 %v5528, %v5534
    %v5542 = vadd.f32 %v5529, %v5534
    %v5543 = vadd.f32 %v5530, %v5534
    %5544 = vst.msk [vmem:[#allocation4] sm:$0xff] %vm447, %v5536
    %5545 = vst.msk [vmem:[#allocation4 + $0x8] sm:$0xff] %vm447, %v5537
    %5546 = vst.msk [vmem:[#allocation4 + $0x10] sm:$0xff] %vm447, %v5538
    %5547 = vst.msk [vmem:[#allocation4 + $0x18] sm:$0xff] %vm447, %v5539
    %5548 = vst.msk [vmem:[#allocation4 + $0x20] sm:$0xff] %vm447, %v5540
    %5549 = vst.msk [vmem:[#allocation4 + $0x28] sm:$0xff] %vm447, %v5541
    %5550 = vst.msk [vmem:[#allocation4 + $0x30] sm:$0xff] %vm447, %v5542
    %5551 = vst.msk [vmem:[#allocation4 + $0x38] sm:$0xff] %vm447, %v5543
    // Predicated region
    $region102: #{audio_encoder_forward.1} parent=1 // pred_check
      _
    $region103: #{audio_encoder_forward.1} parent=1 // pred_check_branch
      %5553 = sbr.rel (0) target = $region105
    $region104: #{audio_encoder_forward.1} parent=1 // pred_region
      %5555 = vsyncadd [#allocation5], 0
      %s5556 = sshll.u32 [#allocation4], 4
      %s5557 = int_to_ptr.vmem [resolvable:$true] %s5556
      %s5558 = sshll.u32 %s25, 4
      %s5559 = int_to_ptr.hbm [resolvable:$true] %s5558
      %5564 = dma.vmem_to_hbm [thread:$0]  %s5557, 1024, %s5559, [#allocation5], 128, 128, 8
    $region105: #{audio_encoder_forward.1} parent=1 // pred_fallthru
      _
    // Predicated region
    $region106: #{audio_encoder_forward.1} parent=1 // pred_check
      _
    $region107: #{audio_encoder_forward.1} parent=1 // pred_check_branch
      %5566 = sbr.rel (0) target = $region109
    $region108: #{audio_encoder_forward.1} parent=1 // pred_region
      %5568 = dma.done [#allocation5], 1024
    $region109: #{audio_encoder_forward.1} parent=1 // pred_fallthru
      _
    %5569 = vsyncpa [#allocation5], 1

</llo_original>
